<compile_context>
chip_gen: v7x
topology: tpu7x:2x2x1
jax: 0.10.0
libtpu: 0.0.40
codegen_flags: <defaults>
</compile_context>

<pallas_src>
import functools
import math

import jax
import jax.numpy as jnp
from jax.experimental import pallas as pl
from jax.experimental.pallas import tpu as pltpu


def gcn_kernel(x_ref, at_ref, wexp_ref, b_ref, o_ref, *,
               support_len, order, batch_tile):
    """Fused GraphConvNet forward for one batch tile.

    x_ref    : (1, V, TB*C*L)          node-major, lane-dense, batch folded into lanes
    at_ref   : (S, V, V)               pre-transposed adjacencies (A_s^T)
    wexp_ref : (K, C*L, C_out*L)       expanded 1x1-conv weights, K = order*S + 1
    b_ref    : (1, C_out*L)            expanded bias (f32)
    o_ref    : (1, V, TB*C_out*L)      output
    """
    v = at_ref.shape[-1]
    cl = wexp_ref.shape[1]          # C*L      (multiple of 128)
    coutl = wexp_ref.shape[2]       # C_out*L  (multiple of 128)
    mm_dtype = x_ref.dtype

    h_all = x_ref[0]                                        # (V, TB*CL), mm_dtype
    # Hoisted: one broadcast_in_dim for all batch elements (JAX doesn't CSE it).
    bias_full = jnp.broadcast_to(b_ref[...], (v, coutl))    # (V, C_out*L), f32

    # hop-0 (identity) term of the 1x1 conv; one accumulator chain per batch el.
    acc = [jnp.dot(h_all[:, b * cl:(b + 1) * cl], wexp_ref[0],
                   preferred_element_type=jnp.float32)
           for b in range(batch_tile)]

    k = 1
    for s in range(support_len):
        a_t = at_ref[s]                                     # (V, V) = A_s^T
        hk = h_all                                          # mm_dtype MXU operand
        part = [None] * batch_tile                          # per-support partials
        for _ in range(order):
            # diffusion hop: ONE batch-folded matmul, f32 accumulation on the MXU
            hk_f32 = jnp.dot(a_t, hk, preferred_element_type=jnp.float32)
            hk = hk_f32.astype(mm_dtype)                    # one operand cast / hop
            for b in range(batch_tile):
                # 128-aligned lane slice -> no relayout; hop-by-hop 1x1-conv acc.
                p = jnp.dot(hk[:, b * cl:(b + 1) * cl], wexp_ref[k],
                            preferred_element_type=jnp.float32)
                part[b] = p if part[b] is None else part[b] + p
            k += 1
        for b in range(batch_tile):                         # independent add chains
            acc[b] = acc[b] + part[b]

    for b in range(batch_tile):
        # lane-aligned (multiple-of-128) unmasked stores
        o_ref[0, :, b * coutl:(b + 1) * coutl] = (acc[b] + bias_full).astype(o_ref.dtype)


def graph_conv_net(x, supports, weight, bias, *, order=2, batch_tile=2,
                   compute_dtype=jnp.bfloat16,
                   vmem_limit_bytes=48 * 1024 * 1024):
    """x: (N, C, V, L); supports: (S, V, V); weight: (C_out, (order*S+1)*C); bias: (C_out,).

    compute_dtype: MXU operand dtype (default bf16; accumulation is always f32).
    batch_tile: raise to 4-8 at real (graph-wavenet) scale on v5e/v6e (128 MiB VMEM,
    step-overhead bound); keep smaller on v7x (64 MiB) and keep grid length >= 2 and
    even so both v7x TensorCores stay fed.  Prefer batch_tile dividing N.
    """
    n, c, v, l = x.shape
    s_len = supports.shape[0]
    k_hops = order * s_len + 1
    c_out = weight.shape[0]
    assert weight.shape == (c_out, k_hops * c)
    assert bias.shape == (c_out,)

    out_dtype = x.dtype
    mm_dtype = compute_dtype if compute_dtype is not None else x.dtype

    # ---------- wrapper-side layout plumbing (pure XLA, outside the kernel) ----------
    # (a) pad V to a sublane multiple of 8
    v_pad = -(-v // 8) * 8
    # (b) pad C / C_out so lane dims C*L and C_out*L are multiples of 128
    #     (zero-padded channels have zero weights/bias, so they contribute nothing)
    lane_mult = 128 // math.gcd(l, 128)
    c_pad = -(-c // lane_mult) * lane_mult
    c_out_pad = -(-c_out // lane_mult) * lane_mult
    cl, coutl = c_pad * l, c_out_pad * l

    x_p = jnp.pad(x, ((0, 0), (0, c_pad - c), (0, v_pad - v), (0, 0)))
    sup_p = jnp.pad(supports, ((0, 0), (0, v_pad - v), (0, v_pad - v)))

    # node-major, lane-dense features: (N, V, C*L), lane index = c*L + l
    x_t = jnp.transpose(x_p, (0, 2, 1, 3)).reshape(n, v_pad, cl)

    # (c) pad batch and fold the batch tile into the lane dim -> (V, TB*C*L)
    n_pad = -(-n // batch_tile) * batch_tile
    if n_pad != n:
        x_t = jnp.pad(x_t, ((0, n_pad - n), (0, 0), (0, 0)))
    n_tiles = n_pad // batch_tile
    x_fold = (x_t.reshape(n_tiles, batch_tile, v_pad, cl)
                 .transpose(0, 2, 1, 3)
                 .reshape(n_tiles, v_pad, batch_tile * cl))

    # pre-transposed adjacencies: each hop is A_s^T @ H (no in-kernel transpose)
    sup_t = jnp.swapaxes(sup_p, -1, -2)

    # expanded 1x1-conv weight: Wexp[k, c*L + l', o*L + m] = W[o, k*C + c] * (l' == m)
    w3 = weight.reshape(c_out, k_hops, c)
    w3 = jnp.pad(w3, ((0, c_out_pad - c_out), (0, 0), (0, c_pad - c)))
    w3 = jnp.transpose(w3, (1, 2, 0))                       # (K, C_pad, C_out_pad)
    eye = jnp.eye(l, dtype=weight.dtype)
    w_exp = jnp.einsum("kco,lm->kclom", w3, eye).reshape(k_hops, cl, coutl)

    # expanded bias: bias_row[0, o*L + l'] = bias[o]   (kept f32)
    bias_p = jnp.pad(bias, (0, c_out_pad - c_out)).astype(jnp.float32)
    bias_row = jnp.repeat(bias_p, l).reshape(1, coutl)

    x_fold = x_fold.astype(mm_dtype)
    sup_t = sup_t.astype(mm_dtype)
    w_exp = w_exp.astype(mm_dtype)

    kernel = functools.partial(gcn_kernel, support_len=s_len, order=order,
                               batch_tile=batch_tile)

    def call(single_buffer_invariants):
        # Grid-invariant operands: constant index_map; Buffered(1) drops the
        # default double-buffer and halves their VMEM footprint.
        inv = ({"pipeline_mode": pl.Buffered(1)} if single_buffer_invariants else {})
        grid_spec = pltpu.PrefetchScalarGridSpec(
            num_scalar_prefetch=0,
            grid=(n_tiles,),
            in_specs=[
                pl.BlockSpec((1, v_pad, batch_tile * cl), lambda i: (i, 0, 0)),
                pl.BlockSpec((s_len, v_pad, v_pad), lambda i: (0, 0, 0), **inv),
                pl.BlockSpec((k_hops, cl, coutl), lambda i: (0, 0, 0), **inv),
                pl.BlockSpec((1, coutl), lambda i: (0, 0), **inv),
            ],
            out_specs=pl.BlockSpec((1, v_pad, batch_tile * coutl),
                                   lambda i: (i, 0, 0)),
        )
        return pl.pallas_call(
            kernel,
            out_shape=jax.ShapeDtypeStruct((n_tiles, v_pad, batch_tile * coutl),
                                           out_dtype),
            grid_spec=grid_spec,
            compiler_params=pltpu.CompilerParams(
                dimension_semantics=("parallel",),
                vmem_limit_bytes=vmem_limit_bytes),
        )(x_fold, sup_t, w_exp, bias_row)

    try:
        out_fold = call(True)
    except Exception:
        # Fallback: some jax builds may not accept pipeline_mode=pl.Buffered(1);
        # correctness is identical, only the invariant-operand VMEM doubles.
        out_fold = call(False)

    # Back to the PyTorch layout (N, C_out, V, L), dropping all padding.
    out = (out_fold.reshape(n_tiles, v_pad, batch_tile, coutl)
                   .transpose(0, 2, 1, 3)
                   .reshape(n_pad, v_pad, coutl))
    out = out[:n, :v].reshape(n, v, c_out_pad, l)[:, :, :c_out, :]
    return jnp.transpose(out, (0, 2, 1, 3))


def reference_forward(x, supports, weight, bias, *, order=2):
    out = [x]
    for i in range(supports.shape[0]):
        a = supports[i]
        x1 = jnp.einsum("ncvl,vw->ncwl", x, a)
        out.append(x1)
        for _ in range(2, order + 1):
            x2 = jnp.einsum("ncvl,vw->ncwl", x1, a)
            out.append(x2)
            x1 = x2
    h = jnp.concatenate(out, axis=1)
    y = jnp.einsum("oc,ncvl->novl", weight, h) + bias.reshape(1, -1, 1, 1)
    return y  # dropout is identity in eval mode


if __name__ == "__main__":
    # Small shapes consistent with the module: order=2, support_len=3.
    # N=4, batch_tile=2 -> grid length 2 (even, keeps both v7x TCs busy).
    N, C_IN, V, L = 4, 4, 16, 16
    SUPPORT_LEN, ORDER = 3, 2
    C_OUT = 8
    C_BIG = (ORDER * SUPPORT_LEN + 1) * C_IN  # 28

    key = jax.random.PRNGKey(0)
    kx, ka, kw, kb = jax.random.split(key, 4)

    x = jax.random.normal(kx, (N, C_IN, V, L), dtype=jnp.float32)
    supports = jax.random.uniform(ka, (SUPPORT_LEN, V, V), dtype=jnp.float32)
    # row-normalize the adjacency matrices (typical graph-wavenet usage)
    supports = supports / jnp.sum(supports, axis=-1, keepdims=True)

    # Deterministic init for the 1x1 conv parameters (Conv2d(c_big, c_out, 1))
    weight = 0.1 * jax.random.normal(kw, (C_OUT, C_BIG), dtype=jnp.float32)
    bias = 0.1 * jax.random.normal(kb, (C_OUT,), dtype=jnp.float32)

    ref = reference_forward(x, supports, weight, bias, order=ORDER)

    # f32 operand path (loose-but-meaningful tolerance, robust across MXU
    # f32-matmul implementations on v5e/v6e/v7x).
    out_f32 = graph_conv_net(x, supports, weight, bias, order=ORDER,
                             batch_tile=2, compute_dtype=jnp.float32)
    out_f32 = jax.block_until_ready(out_f32)
    assert out_f32.shape == (N, C_OUT, V, L)
    assert jnp.allclose(out_f32, ref, atol=1e-2, rtol=1e-2), "f32 mismatch vs reference"

    # Default bf16 operand path (f32 accumulation): loose tolerance.
    out_bf16 = graph_conv_net(x, supports, weight, bias, order=ORDER, batch_tile=2)
    out_bf16 = jax.block_until_ready(out_bf16)
    assert out_bf16.shape == (N, C_OUT, V, L)
    assert jnp.allclose(out_bf16.astype(jnp.float32), ref,
                        atol=1.5e-1, rtol=1.5e-1), "bf16 mismatch vs reference"

    print("KERNEL_OK")
</pallas_src>

<mosaic_0001>
module attributes {stable_mosaic.version = 11 : i64} {
  func.func @gcn_kernel(%arg0: i32, %arg1: memref<1x16x256xf32, #tpu.memory_space<vmem>>, %arg2: memref<3x16x16xf32, #tpu.memory_space<vmem>>, %arg3: memref<7x128x128xf32, #tpu.memory_space<vmem>>, %arg4: memref<1x128xf32, #tpu.memory_space<vmem>>, %arg5: memref<1x16x256xf32, #tpu.memory_space<vmem>>) attributes {dimension_semantics = [#tpu.dimension_semantics<parallel>], iteration_bounds = array<i64: 2>, scalar_prefetch = 0 : i64, scratch_operands = 0 : i64, tpu.core_type = #tpu.core_type<tc>, window_params = [{transform_indices = @transform_0, window_bounds = array<i64: 1, 16, 256>}, {pipeline_mode = #tpu.pipeline_mode<synchronous>, transform_indices = @transform_1, window_bounds = array<i64: 3, 16, 16>}, {pipeline_mode = #tpu.pipeline_mode<synchronous>, transform_indices = @transform_2, window_bounds = array<i64: 7, 128, 128>}, {pipeline_mode = #tpu.pipeline_mode<synchronous>, transform_indices = @transform_3, window_bounds = array<i64: 1, 128>}, {transform_indices = @transform_4, window_bounds = array<i64: 1, 16, 256>}]} {
    %c0 = arith.constant 0 : index
    %c0_0 = arith.constant 0 : index
    %c0_1 = arith.constant 0 : index
    %0 = vector.load %arg1[%c0, %c0_0, %c0_1] : memref<1x16x256xf32, #tpu.memory_space<vmem>>, vector<1x16x256xf32>
    %1 = vector.shape_cast %0 : vector<1x16x256xf32> to vector<16x256xf32>
    %c0_2 = arith.constant 0 : index
    %c0_3 = arith.constant 0 : index
    %2 = vector.load %arg4[%c0_2, %c0_3] : memref<1x128xf32, #tpu.memory_space<vmem>>, vector<1x128xf32>
    %3 = vector.shape_cast %2 : vector<1x128xf32> to vector<1x128xf32>
    %4 = vector.broadcast %3 : vector<1x128xf32> to vector<16x128xf32>
    %5 = vector.extract_strided_slice %1 {offsets = [0, 0], sizes = [16, 128], strides = [1, 1]} : vector<16x256xf32> to vector<16x128xf32>
    %c0_4 = arith.constant 0 : index
    %c0_5 = arith.constant 0 : index
    %c0_6 = arith.constant 0 : index
    %6 = vector.load %arg3[%c0_4, %c0_5, %c0_6] : memref<7x128x128xf32, #tpu.memory_space<vmem>>, vector<1x128x128xf32>
    %7 = vector.shape_cast %6 : vector<1x128x128xf32> to vector<128x128xf32>
    %cst = arith.constant dense<0.000000e+00> : vector<16x128xf32>
    %8 = tpu.matmul %5, %7, %cst {dimension_numbers = #tpu.dot_dimension_numbers<[1], [0], [0], [1], [0, 0, 1, 1], [], []>} : vector<16x128xf32>, vector<128x128xf32>, vector<16x128xf32> -> vector<16x128xf32>
    %9 = vector.extract_strided_slice %1 {offsets = [0, 128], sizes = [16, 128], strides = [1, 1]} : vector<16x256xf32> to vector<16x128xf32>
    %c0_7 = arith.constant 0 : index
    %c0_8 = arith.constant 0 : index
    %c0_9 = arith.constant 0 : index
    %10 = vector.load %arg3[%c0_7, %c0_8, %c0_9] : memref<7x128x128xf32, #tpu.memory_space<vmem>>, vector<1x128x128xf32>
    %11 = vector.shape_cast %10 : vector<1x128x128xf32> to vector<128x128xf32>
    %cst_10 = arith.constant dense<0.000000e+00> : vector<16x128xf32>
    %12 = tpu.matmul %9, %11, %cst_10 {dimension_numbers = #tpu.dot_dimension_numbers<[1], [0], [0], [1], [0, 0, 1, 1], [], []>} : vector<16x128xf32>, vector<128x128xf32>, vector<16x128xf32> -> vector<16x128xf32>
    %c0_11 = arith.constant 0 : index
    %c0_12 = arith.constant 0 : index
    %c0_13 = arith.constant 0 : index
    %13 = vector.load %arg2[%c0_11, %c0_12, %c0_13] : memref<3x16x16xf32, #tpu.memory_space<vmem>>, vector<1x16x16xf32>
    %14 = vector.shape_cast %13 : vector<1x16x16xf32> to vector<16x16xf32>
    %cst_14 = arith.constant dense<0.000000e+00> : vector<16x256xf32>
    %15 = tpu.matmul %14, %1, %cst_14 {dimension_numbers = #tpu.dot_dimension_numbers<[1], [0], [0], [1], [0, 0, 1, 1], [], []>} : vector<16x16xf32>, vector<16x256xf32>, vector<16x256xf32> -> vector<16x256xf32>
    %16 = vector.extract_strided_slice %15 {offsets = [0, 0], sizes = [16, 128], strides = [1, 1]} : vector<16x256xf32> to vector<16x128xf32>
    %c1 = arith.constant 1 : index
    %c0_15 = arith.constant 0 : index
    %c0_16 = arith.constant 0 : index
    %17 = vector.load %arg3[%c1, %c0_15, %c0_16] : memref<7x128x128xf32, #tpu.memory_space<vmem>>, vector<1x128x128xf32>
    %18 = vector.shape_cast %17 : vector<1x128x128xf32> to vector<128x128xf32>
    %cst_17 = arith.constant dense<0.000000e+00> : vector<16x128xf32>
    %19 = tpu.matmul %16, %18, %cst_17 {dimension_numbers = #tpu.dot_dimension_numbers<[1], [0], [0], [1], [0, 0, 1, 1], [], []>} : vector<16x128xf32>, vector<128x128xf32>, vector<16x128xf32> -> vector<16x128xf32>
    %20 = vector.extract_strided_slice %15 {offsets = [0, 128], sizes = [16, 128], strides = [1, 1]} : vector<16x256xf32> to vector<16x128xf32>
    %c1_18 = arith.constant 1 : index
    %c0_19 = arith.constant 0 : index
    %c0_20 = arith.constant 0 : index
    %21 = vector.load %arg3[%c1_18, %c0_19, %c0_20] : memref<7x128x128xf32, #tpu.memory_space<vmem>>, vector<1x128x128xf32>
    %22 = vector.shape_cast %21 : vector<1x128x128xf32> to vector<128x128xf32>
    %cst_21 = arith.constant dense<0.000000e+00> : vector<16x128xf32>
    %23 = tpu.matmul %20, %22, %cst_21 {dimension_numbers = #tpu.dot_dimension_numbers<[1], [0], [0], [1], [0, 0, 1, 1], [], []>} : vector<16x128xf32>, vector<128x128xf32>, vector<16x128xf32> -> vector<16x128xf32>
    %cst_22 = arith.constant dense<0.000000e+00> : vector<16x256xf32>
    %24 = tpu.matmul %14, %15, %cst_22 {dimension_numbers = #tpu.dot_dimension_numbers<[1], [0], [0], [1], [0, 0, 1, 1], [], []>} : vector<16x16xf32>, vector<16x256xf32>, vector<16x256xf32> -> vector<16x256xf32>
    %25 = vector.extract_strided_slice %24 {offsets = [0, 0], sizes = [16, 128], strides = [1, 1]} : vector<16x256xf32> to vector<16x128xf32>
    %c2 = arith.constant 2 : index
    %c0_23 = arith.constant 0 : index
    %c0_24 = arith.constant 0 : index
    %26 = vector.load %arg3[%c2, %c0_23, %c0_24] : memref<7x128x128xf32, #tpu.memory_space<vmem>>, vector<1x128x128xf32>
    %27 = vector.shape_cast %26 : vector<1x128x128xf32> to vector<128x128xf32>
    %cst_25 = arith.constant dense<0.000000e+00> : vector<16x128xf32>
    %28 = tpu.matmul %25, %27, %cst_25 {dimension_numbers = #tpu.dot_dimension_numbers<[1], [0], [0], [1], [0, 0, 1, 1], [], []>} : vector<16x128xf32>, vector<128x128xf32>, vector<16x128xf32> -> vector<16x128xf32>
    %29 = arith.addf %19, %28 : vector<16x128xf32>
    %30 = vector.extract_strided_slice %24 {offsets = [0, 128], sizes = [16, 128], strides = [1, 1]} : vector<16x256xf32> to vector<16x128xf32>
    %c2_26 = arith.constant 2 : index
    %c0_27 = arith.constant 0 : index
    %c0_28 = arith.constant 0 : index
    %31 = vector.load %arg3[%c2_26, %c0_27, %c0_28] : memref<7x128x128xf32, #tpu.memory_space<vmem>>, vector<1x128x128xf32>
    %32 = vector.shape_cast %31 : vector<1x128x128xf32> to vector<128x128xf32>
    %cst_29 = arith.constant dense<0.000000e+00> : vector<16x128xf32>
    %33 = tpu.matmul %30, %32, %cst_29 {dimension_numbers = #tpu.dot_dimension_numbers<[1], [0], [0], [1], [0, 0, 1, 1], [], []>} : vector<16x128xf32>, vector<128x128xf32>, vector<16x128xf32> -> vector<16x128xf32>
    %34 = arith.addf %23, %33 : vector<16x128xf32>
    %35 = arith.addf %8, %29 : vector<16x128xf32>
    %36 = arith.addf %12, %34 : vector<16x128xf32>
    %c1_30 = arith.constant 1 : index
    %c0_31 = arith.constant 0 : index
    %c0_32 = arith.constant 0 : index
    %37 = vector.load %arg2[%c1_30, %c0_31, %c0_32] : memref<3x16x16xf32, #tpu.memory_space<vmem>>, vector<1x16x16xf32>
    %38 = vector.shape_cast %37 : vector<1x16x16xf32> to vector<16x16xf32>
    %cst_33 = arith.constant dense<0.000000e+00> : vector<16x256xf32>
    %39 = tpu.matmul %38, %1, %cst_33 {dimension_numbers = #tpu.dot_dimension_numbers<[1], [0], [0], [1], [0, 0, 1, 1], [], []>} : vector<16x16xf32>, vector<16x256xf32>, vector<16x256xf32> -> vector<16x256xf32>
    %40 = vector.extract_strided_slice %39 {offsets = [0, 0], sizes = [16, 128], strides = [1, 1]} : vector<16x256xf32> to vector<16x128xf32>
    %c3 = arith.constant 3 : index
    %c0_34 = arith.constant 0 : index
    %c0_35 = arith.constant 0 : index
    %41 = vector.load %arg3[%c3, %c0_34, %c0_35] : memref<7x128x128xf32, #tpu.memory_space<vmem>>, vector<1x128x128xf32>
    %42 = vector.shape_cast %41 : vector<1x128x128xf32> to vector<128x128xf32>
    %cst_36 = arith.constant dense<0.000000e+00> : vector<16x128xf32>
    %43 = tpu.matmul %40, %42, %cst_36 {dimension_numbers = #tpu.dot_dimension_numbers<[1], [0], [0], [1], [0, 0, 1, 1], [], []>} : vector<16x128xf32>, vector<128x128xf32>, vector<16x128xf32> -> vector<16x128xf32>
    %44 = vector.extract_strided_slice %39 {offsets = [0, 128], sizes = [16, 128], strides = [1, 1]} : vector<16x256xf32> to vector<16x128xf32>
    %c3_37 = arith.constant 3 : index
    %c0_38 = arith.constant 0 : index
    %c0_39 = arith.constant 0 : index
    %45 = vector.load %arg3[%c3_37, %c0_38, %c0_39] : memref<7x128x128xf32, #tpu.memory_space<vmem>>, vector<1x128x128xf32>
    %46 = vector.shape_cast %45 : vector<1x128x128xf32> to vector<128x128xf32>
    %cst_40 = arith.constant dense<0.000000e+00> : vector<16x128xf32>
    %47 = tpu.matmul %44, %46, %cst_40 {dimension_numbers = #tpu.dot_dimension_numbers<[1], [0], [0], [1], [0, 0, 1, 1], [], []>} : vector<16x128xf32>, vector<128x128xf32>, vector<16x128xf32> -> vector<16x128xf32>
    %cst_41 = arith.constant dense<0.000000e+00> : vector<16x256xf32>
    %48 = tpu.matmul %38, %39, %cst_41 {dimension_numbers = #tpu.dot_dimension_numbers<[1], [0], [0], [1], [0, 0, 1, 1], [], []>} : vector<16x16xf32>, vector<16x256xf32>, vector<16x256xf32> -> vector<16x256xf32>
    %49 = vector.extract_strided_slice %48 {offsets = [0, 0], sizes = [16, 128], strides = [1, 1]} : vector<16x256xf32> to vector<16x128xf32>
    %c4 = arith.constant 4 : index
    %c0_42 = arith.constant 0 : index
    %c0_43 = arith.constant 0 : index
    %50 = vector.load %arg3[%c4, %c0_42, %c0_43] : memref<7x128x128xf32, #tpu.memory_space<vmem>>, vector<1x128x128xf32>
    %51 = vector.shape_cast %50 : vector<1x128x128xf32> to vector<128x128xf32>
    %cst_44 = arith.constant dense<0.000000e+00> : vector<16x128xf32>
    %52 = tpu.matmul %49, %51, %cst_44 {dimension_numbers = #tpu.dot_dimension_numbers<[1], [0], [0], [1], [0, 0, 1, 1], [], []>} : vector<16x128xf32>, vector<128x128xf32>, vector<16x128xf32> -> vector<16x128xf32>
    %53 = arith.addf %43, %52 : vector<16x128xf32>
    %54 = vector.extract_strided_slice %48 {offsets = [0, 128], sizes = [16, 128], strides = [1, 1]} : vector<16x256xf32> to vector<16x128xf32>
    %c4_45 = arith.constant 4 : index
    %c0_46 = arith.constant 0 : index
    %c0_47 = arith.constant 0 : index
    %55 = vector.load %arg3[%c4_45, %c0_46, %c0_47] : memref<7x128x128xf32, #tpu.memory_space<vmem>>, vector<1x128x128xf32>
    %56 = vector.shape_cast %55 : vector<1x128x128xf32> to vector<128x128xf32>
    %cst_48 = arith.constant dense<0.000000e+00> : vector<16x128xf32>
    %57 = tpu.matmul %54, %56, %cst_48 {dimension_numbers = #tpu.dot_dimension_numbers<[1], [0], [0], [1], [0, 0, 1, 1], [], []>} : vector<16x128xf32>, vector<128x128xf32>, vector<16x128xf32> -> vector<16x128xf32>
    %58 = arith.addf %47, %57 : vector<16x128xf32>
    %59 = arith.addf %35, %53 : vector<16x128xf32>
    %60 = arith.addf %36, %58 : vector<16x128xf32>
    %c2_49 = arith.constant 2 : index
    %c0_50 = arith.constant 0 : index
    %c0_51 = arith.constant 0 : index
    %61 = vector.load %arg2[%c2_49, %c0_50, %c0_51] : memref<3x16x16xf32, #tpu.memory_space<vmem>>, vector<1x16x16xf32>
    %62 = vector.shape_cast %61 : vector<1x16x16xf32> to vector<16x16xf32>
    %cst_52 = arith.constant dense<0.000000e+00> : vector<16x256xf32>
    %63 = tpu.matmul %62, %1, %cst_52 {dimension_numbers = #tpu.dot_dimension_numbers<[1], [0], [0], [1], [0, 0, 1, 1], [], []>} : vector<16x16xf32>, vector<16x256xf32>, vector<16x256xf32> -> vector<16x256xf32>
    %64 = vector.extract_strided_slice %63 {offsets = [0, 0], sizes = [16, 128], strides = [1, 1]} : vector<16x256xf32> to vector<16x128xf32>
    %c5 = arith.constant 5 : index
    %c0_53 = arith.constant 0 : index
    %c0_54 = arith.constant 0 : index
    %65 = vector.load %arg3[%c5, %c0_53, %c0_54] : memref<7x128x128xf32, #tpu.memory_space<vmem>>, vector<1x128x128xf32>
    %66 = vector.shape_cast %65 : vector<1x128x128xf32> to vector<128x128xf32>
    %cst_55 = arith.constant dense<0.000000e+00> : vector<16x128xf32>
    %67 = tpu.matmul %64, %66, %cst_55 {dimension_numbers = #tpu.dot_dimension_numbers<[1], [0], [0], [1], [0, 0, 1, 1], [], []>} : vector<16x128xf32>, vector<128x128xf32>, vector<16x128xf32> -> vector<16x128xf32>
    %68 = vector.extract_strided_slice %63 {offsets = [0, 128], sizes = [16, 128], strides = [1, 1]} : vector<16x256xf32> to vector<16x128xf32>
    %c5_56 = arith.constant 5 : index
    %c0_57 = arith.constant 0 : index
    %c0_58 = arith.constant 0 : index
    %69 = vector.load %arg3[%c5_56, %c0_57, %c0_58] : memref<7x128x128xf32, #tpu.memory_space<vmem>>, vector<1x128x128xf32>
    %70 = vector.shape_cast %69 : vector<1x128x128xf32> to vector<128x128xf32>
    %cst_59 = arith.constant dense<0.000000e+00> : vector<16x128xf32>
    %71 = tpu.matmul %68, %70, %cst_59 {dimension_numbers = #tpu.dot_dimension_numbers<[1], [0], [0], [1], [0, 0, 1, 1], [], []>} : vector<16x128xf32>, vector<128x128xf32>, vector<16x128xf32> -> vector<16x128xf32>
    %cst_60 = arith.constant dense<0.000000e+00> : vector<16x256xf32>
    %72 = tpu.matmul %62, %63, %cst_60 {dimension_numbers = #tpu.dot_dimension_numbers<[1], [0], [0], [1], [0, 0, 1, 1], [], []>} : vector<16x16xf32>, vector<16x256xf32>, vector<16x256xf32> -> vector<16x256xf32>
    %73 = vector.extract_strided_slice %72 {offsets = [0, 0], sizes = [16, 128], strides = [1, 1]} : vector<16x256xf32> to vector<16x128xf32>
    %c6 = arith.constant 6 : index
    %c0_61 = arith.constant 0 : index
    %c0_62 = arith.constant 0 : index
    %74 = vector.load %arg3[%c6, %c0_61, %c0_62] : memref<7x128x128xf32, #tpu.memory_space<vmem>>, vector<1x128x128xf32>
    %75 = vector.shape_cast %74 : vector<1x128x128xf32> to vector<128x128xf32>
    %cst_63 = arith.constant dense<0.000000e+00> : vector<16x128xf32>
    %76 = tpu.matmul %73, %75, %cst_63 {dimension_numbers = #tpu.dot_dimension_numbers<[1], [0], [0], [1], [0, 0, 1, 1], [], []>} : vector<16x128xf32>, vector<128x128xf32>, vector<16x128xf32> -> vector<16x128xf32>
    %77 = arith.addf %67, %76 : vector<16x128xf32>
    %78 = vector.extract_strided_slice %72 {offsets = [0, 128], sizes = [16, 128], strides = [1, 1]} : vector<16x256xf32> to vector<16x128xf32>
    %c6_64 = arith.constant 6 : index
    %c0_65 = arith.constant 0 : index
    %c0_66 = arith.constant 0 : index
    %79 = vector.load %arg3[%c6_64, %c0_65, %c0_66] : memref<7x128x128xf32, #tpu.memory_space<vmem>>, vector<1x128x128xf32>
    %80 = vector.shape_cast %79 : vector<1x128x128xf32> to vector<128x128xf32>
    %cst_67 = arith.constant dense<0.000000e+00> : vector<16x128xf32>
    %81 = tpu.matmul %78, %80, %cst_67 {dimension_numbers = #tpu.dot_dimension_numbers<[1], [0], [0], [1], [0, 0, 1, 1], [], []>} : vector<16x128xf32>, vector<128x128xf32>, vector<16x128xf32> -> vector<16x128xf32>
    %82 = arith.addf %71, %81 : vector<16x128xf32>
    %83 = arith.addf %59, %77 : vector<16x128xf32>
    %84 = arith.addf %60, %82 : vector<16x128xf32>
    %85 = arith.addf %83, %4 : vector<16x128xf32>
    %c0_68 = arith.constant 0 : index
    %c0_69 = arith.constant 0 : index
    %c0_70 = arith.constant 0 : index
    %86 = vector.load %arg5[%c0_68, %c0_69, %c0_70] : memref<1x16x256xf32, #tpu.memory_space<vmem>>, vector<1x16x128xf32>
    %87 = vector.shape_cast %86 : vector<1x16x128xf32> to vector<16x128xf32>
    %88 = vector.shape_cast %85 : vector<16x128xf32> to vector<1x16x128xf32>
    tpu.vector_store %arg5[%c0_68, %c0_69, %c0_70], %88 {strides = array<i32>} : memref<1x16x256xf32, #tpu.memory_space<vmem>>, vector<1x16x128xf32>,
    %89 = arith.addf %84, %4 : vector<16x128xf32>
    %c0_71 = arith.constant 0 : index
    %c0_72 = arith.constant 0 : index
    %c128 = arith.constant 128 : index
    %90 = vector.load %arg5[%c0_71, %c0_72, %c128] : memref<1x16x256xf32, #tpu.memory_space<vmem>>, vector<1x16x128xf32>
    %91 = vector.shape_cast %90 : vector<1x16x128xf32> to vector<16x128xf32>
    %92 = vector.shape_cast %89 : vector<16x128xf32> to vector<1x16x128xf32>
    tpu.vector_store %arg5[%c0_71, %c0_72, %c128], %92 {strides = array<i32>} : memref<1x16x256xf32, #tpu.memory_space<vmem>>, vector<1x16x128xf32>,
    return
  }
  func.func @transform_0(%arg0: i32) -> (i32, i32, i32) {
    %c0_i32 = arith.constant 0 : i32
    %c0_i32_0 = arith.constant 0 : i32
    %c0_i32_1 = arith.constant 0 : i32
    return %arg0, %c0_i32, %c0_i32_0 : i32, i32, i32
  }
  func.func @transform_1(%arg0: i32) -> (i32, i32, i32) {
    %c0_i32 = arith.constant 0 : i32
    %c0_i32_0 = arith.constant 0 : i32
    %c0_i32_1 = arith.constant 0 : i32
    %c0_i32_2 = arith.constant 0 : i32
    return %c0_i32, %c0_i32_0, %c0_i32_1 : i32, i32, i32
  }
  func.func @transform_2(%arg0: i32) -> (i32, i32, i32) {
    %c0_i32 = arith.constant 0 : i32
    %c0_i32_0 = arith.constant 0 : i32
    %c0_i32_1 = arith.constant 0 : i32
    %c0_i32_2 = arith.constant 0 : i32
    return %c0_i32, %c0_i32_0, %c0_i32_1 : i32, i32, i32
  }
  func.func @transform_3(%arg0: i32) -> (i32, i32) {
    %c0_i32 = arith.constant 0 : i32
    %c0_i32_0 = arith.constant 0 : i32
    %c0_i32_1 = arith.constant 0 : i32
    return %c0_i32, %c0_i32_0 : i32, i32
  }
  func.func @transform_4(%arg0: i32) -> (i32, i32, i32) {
    %c0_i32 = arith.constant 0 : i32
    %c0_i32_0 = arith.constant 0 : i32
    %c0_i32_1 = arith.constant 0 : i32
    return %arg0, %c0_i32, %c0_i32_0 : i32, i32, i32
  }
}

module attributes {stable_mosaic.version = 11 : i64} {
  func.func @gcn_kernel(%arg0: i32, %arg1: memref<1x16x256xf32, #tpu.memory_space<vmem>>, %arg2: memref<3x16x16xf32, #tpu.memory_space<vmem>>, %arg3: memref<7x128x128xf32, #tpu.memory_space<vmem>>, %arg4: memref<1x128xf32, #tpu.memory_space<vmem>>, %arg5: memref<1x16x256xf32, #tpu.memory_space<vmem>>) attributes {dimension_semantics = [#tpu.dimension_semantics<parallel>], iteration_bounds = array<i64: 2>, scalar_prefetch = 0 : i64, scratch_operands = 0 : i64, tpu.core_type = #tpu.core_type<tc>, window_params = [{transform_indices = @transform_0, window_bounds = array<i64: 1, 16, 256>}, {pipeline_mode = #tpu.pipeline_mode<synchronous>, transform_indices = @transform_1, window_bounds = array<i64: 3, 16, 16>}, {pipeline_mode = #tpu.pipeline_mode<synchronous>, transform_indices = @transform_2, window_bounds = array<i64: 7, 128, 128>}, {pipeline_mode = #tpu.pipeline_mode<synchronous>, transform_indices = @transform_3, window_bounds = array<i64: 1, 128>}, {transform_indices = @transform_4, window_bounds = array<i64: 1, 16, 256>}]} {
    %c0 = arith.constant 0 : index
    %c0_0 = arith.constant 0 : index
    %c0_1 = arith.constant 0 : index
    %0 = vector.load %arg1[%c0, %c0_0, %c0_1] : memref<1x16x256xf32, #tpu.memory_space<vmem>>, vector<1x16x256xf32>
    %1 = vector.shape_cast %0 : vector<1x16x256xf32> to vector<16x256xf32>
    %c0_2 = arith.constant 0 : index
    %c0_3 = arith.constant 0 : index
    %2 = vector.load %arg4[%c0_2, %c0_3] : memref<1x128xf32, #tpu.memory_space<vmem>>, vector<1x128xf32>
    %3 = vector.shape_cast %2 : vector<1x128xf32> to vector<1x128xf32>
    %4 = vector.broadcast %3 : vector<1x128xf32> to vector<16x128xf32>
    %5 = vector.extract_strided_slice %1 {offsets = [0, 0], sizes = [16, 128], strides = [1, 1]} : vector<16x256xf32> to vector<16x128xf32>
    %c0_4 = arith.constant 0 : index
    %c0_5 = arith.constant 0 : index
    %c0_6 = arith.constant 0 : index
    %6 = vector.load %arg3[%c0_4, %c0_5, %c0_6] : memref<7x128x128xf32, #tpu.memory_space<vmem>>, vector<1x128x128xf32>
    %7 = vector.shape_cast %6 : vector<1x128x128xf32> to vector<128x128xf32>
    %cst = arith.constant dense<0.000000e+00> : vector<16x128xf32>
    %8 = tpu.matmul %5, %7, %cst {dimension_numbers = #tpu.dot_dimension_numbers<[1], [0], [0], [1], [0, 0, 1, 1], [], []>} : vector<16x128xf32>, vector<128x128xf32>, vector<16x128xf32> -> vector<16x128xf32>
    %9 = vector.extract_strided_slice %1 {offsets = [0, 128], sizes = [16, 128], strides = [1, 1]} : vector<16x256xf32> to vector<16x128xf32>
    %c0_7 = arith.constant 0 : index
    %c0_8 = arith.constant 0 : index
    %c0_9 = arith.constant 0 : index
    %10 = vector.load %arg3[%c0_7, %c0_8, %c0_9] : memref<7x128x128xf32, #tpu.memory_space<vmem>>, vector<1x128x128xf32>
    %11 = vector.shape_cast %10 : vector<1x128x128xf32> to vector<128x128xf32>
    %cst_10 = arith.constant dense<0.000000e+00> : vector<16x128xf32>
    %12 = tpu.matmul %9, %11, %cst_10 {dimension_numbers = #tpu.dot_dimension_numbers<[1], [0], [0], [1], [0, 0, 1, 1], [], []>} : vector<16x128xf32>, vector<128x128xf32>, vector<16x128xf32> -> vector<16x128xf32>
    %c0_11 = arith.constant 0 : index
    %c0_12 = arith.constant 0 : index
    %c0_13 = arith.constant 0 : index
    %13 = vector.load %arg2[%c0_11, %c0_12, %c0_13] : memref<3x16x16xf32, #tpu.memory_space<vmem>>, vector<1x16x16xf32>
    %14 = vector.shape_cast %13 : vector<1x16x16xf32> to vector<16x16xf32>
    %cst_14 = arith.constant dense<0.000000e+00> : vector<16x256xf32>
    %15 = tpu.matmul %14, %1, %cst_14 {dimension_numbers = #tpu.dot_dimension_numbers<[1], [0], [0], [1], [0, 0, 1, 1], [], []>} : vector<16x16xf32>, vector<16x256xf32>, vector<16x256xf32> -> vector<16x256xf32>
    %16 = vector.extract_strided_slice %15 {offsets = [0, 0], sizes = [16, 128], strides = [1, 1]} : vector<16x256xf32> to vector<16x128xf32>
    %c1 = arith.constant 1 : index
    %c0_15 = arith.constant 0 : index
    %c0_16 = arith.constant 0 : index
    %17 = vector.load %arg3[%c1, %c0_15, %c0_16] : memref<7x128x128xf32, #tpu.memory_space<vmem>>, vector<1x128x128xf32>
    %18 = vector.shape_cast %17 : vector<1x128x128xf32> to vector<128x128xf32>
    %cst_17 = arith.constant dense<0.000000e+00> : vector<16x128xf32>
    %19 = tpu.matmul %16, %18, %cst_17 {dimension_numbers = #tpu.dot_dimension_numbers<[1], [0], [0], [1], [0, 0, 1, 1], [], []>} : vector<16x128xf32>, vector<128x128xf32>, vector<16x128xf32> -> vector<16x128xf32>
    %20 = vector.extract_strided_slice %15 {offsets = [0, 128], sizes = [16, 128], strides = [1, 1]} : vector<16x256xf32> to vector<16x128xf32>
    %c1_18 = arith.constant 1 : index
    %c0_19 = arith.constant 0 : index
    %c0_20 = arith.constant 0 : index
    %21 = vector.load %arg3[%c1_18, %c0_19, %c0_20] : memref<7x128x128xf32, #tpu.memory_space<vmem>>, vector<1x128x128xf32>
    %22 = vector.shape_cast %21 : vector<1x128x128xf32> to vector<128x128xf32>
    %cst_21 = arith.constant dense<0.000000e+00> : vector<16x128xf32>
    %23 = tpu.matmul %20, %22, %cst_21 {dimension_numbers = #tpu.dot_dimension_numbers<[1], [0], [0], [1], [0, 0, 1, 1], [], []>} : vector<16x128xf32>, vector<128x128xf32>, vector<16x128xf32> -> vector<16x128xf32>
    %cst_22 = arith.constant dense<0.000000e+00> : vector<16x256xf32>
    %24 = tpu.matmul %14, %15, %cst_22 {dimension_numbers = #tpu.dot_dimension_numbers<[1], [0], [0], [1], [0, 0, 1, 1], [], []>} : vector<16x16xf32>, vector<16x256xf32>, vector<16x256xf32> -> vector<16x256xf32>
    %25 = vector.extract_strided_slice %24 {offsets = [0, 0], sizes = [16, 128], strides = [1, 1]} : vector<16x256xf32> to vector<16x128xf32>
    %c2 = arith.constant 2 : index
    %c0_23 = arith.constant 0 : index
    %c0_24 = arith.constant 0 : index
    %26 = vector.load %arg3[%c2, %c0_23, %c0_24] : memref<7x128x128xf32, #tpu.memory_space<vmem>>, vector<1x128x128xf32>
    %27 = vector.shape_cast %26 : vector<1x128x128xf32> to vector<128x128xf32>
    %cst_25 = arith.constant dense<0.000000e+00> : vector<16x128xf32>
    %28 = tpu.matmul %25, %27, %cst_25 {dimension_numbers = #tpu.dot_dimension_numbers<[1], [0], [0], [1], [0, 0, 1, 1], [], []>} : vector<16x128xf32>, vector<128x128xf32>, vector<16x128xf32> -> vector<16x128xf32>
    %29 = arith.addf %19, %28 : vector<16x128xf32>
    %30 = vector.extract_strided_slice %24 {offsets = [0, 128], sizes = [16, 128], strides = [1, 1]} : vector<16x256xf32> to vector<16x128xf32>
    %c2_26 = arith.constant 2 : index
    %c0_27 = arith.constant 0 : index
    %c0_28 = arith.constant 0 : index
    %31 = vector.load %arg3[%c2_26, %c0_27, %c0_28] : memref<7x128x128xf32, #tpu.memory_space<vmem>>, vector<1x128x128xf32>
    %32 = vector.shape_cast %31 : vector<1x128x128xf32> to vector<128x128xf32>
    %cst_29 = arith.constant dense<0.000000e+00> : vector<16x128xf32>
    %33 = tpu.matmul %30, %32, %cst_29 {dimension_numbers = #tpu.dot_dimension_numbers<[1], [0], [0], [1], [0, 0, 1, 1], [], []>} : vector<16x128xf32>, vector<128x128xf32>, vector<16x128xf32> -> vector<16x128xf32>
    %34 = arith.addf %23, %33 : vector<16x128xf32>
    %35 = arith.addf %8, %29 : vector<16x128xf32>
    %36 = arith.addf %12, %34 : vector<16x128xf32>
    %c1_30 = arith.constant 1 : index
    %c0_31 = arith.constant 0 : index
    %c0_32 = arith.constant 0 : index
    %37 = vector.load %arg2[%c1_30, %c0_31, %c0_32] : memref<3x16x16xf32, #tpu.memory_space<vmem>>, vector<1x16x16xf32>
    %38 = vector.shape_cast %37 : vector<1x16x16xf32> to vector<16x16xf32>
    %cst_33 = arith.constant dense<0.000000e+00> : vector<16x256xf32>
    %39 = tpu.matmul %38, %1, %cst_33 {dimension_numbers = #tpu.dot_dimension_numbers<[1], [0], [0], [1], [0, 0, 1, 1], [], []>} : vector<16x16xf32>, vector<16x256xf32>, vector<16x256xf32> -> vector<16x256xf32>
    %40 = vector.extract_strided_slice %39 {offsets = [0, 0], sizes = [16, 128], strides = [1, 1]} : vector<16x256xf32> to vector<16x128xf32>
    %c3 = arith.constant 3 : index
    %c0_34 = arith.constant 0 : index
    %c0_35 = arith.constant 0 : index
    %41 = vector.load %arg3[%c3, %c0_34, %c0_35] : memref<7x128x128xf32, #tpu.memory_space<vmem>>, vector<1x128x128xf32>
    %42 = vector.shape_cast %41 : vector<1x128x128xf32> to vector<128x128xf32>
    %cst_36 = arith.constant dense<0.000000e+00> : vector<16x128xf32>
    %43 = tpu.matmul %40, %42, %cst_36 {dimension_numbers = #tpu.dot_dimension_numbers<[1], [0], [0], [1], [0, 0, 1, 1], [], []>} : vector<16x128xf32>, vector<128x128xf32>, vector<16x128xf32> -> vector<16x128xf32>
    %44 = vector.extract_strided_slice %39 {offsets = [0, 128], sizes = [16, 128], strides = [1, 1]} : vector<16x256xf32> to vector<16x128xf32>
    %c3_37 = arith.constant 3 : index
    %c0_38 = arith.constant 0 : index
    %c0_39 = arith.constant 0 : index
    %45 = vector.load %arg3[%c3_37, %c0_38, %c0_39] : memref<7x128x128xf32, #tpu.memory_space<vmem>>, vector<1x128x128xf32>
    %46 = vector.shape_cast %45 : vector<1x128x128xf32> to vector<128x128xf32>
    %cst_40 = arith.constant dense<0.000000e+00> : vector<16x128xf32>
    %47 = tpu.matmul %44, %46, %cst_40 {dimension_numbers = #tpu.dot_dimension_numbers<[1], [0], [0], [1], [0, 0, 1, 1], [], []>} : vector<16x128xf32>, vector<128x128xf32>, vector<16x128xf32> -> vector<16x128xf32>
    %cst_41 = arith.constant dense<0.000000e+00> : vector<16x256xf32>
    %48 = tpu.matmul %38, %39, %cst_41 {dimension_numbers = #tpu.dot_dimension_numbers<[1], [0], [0], [1], [0, 0, 1, 1], [], []>} : vector<16x16xf32>, vector<16x256xf32>, vector<16x256xf32> -> vector<16x256xf32>
    %49 = vector.extract_strided_slice %48 {offsets = [0, 0], sizes = [16, 128], strides = [1, 1]} : vector<16x256xf32> to vector<16x128xf32>
    %c4 = arith.constant 4 : index
    %c0_42 = arith.constant 0 : index
    %c0_43 = arith.constant 0 : index
    %50 = vector.load %arg3[%c4, %c0_42, %c0_43] : memref<7x128x128xf32, #tpu.memory_space<vmem>>, vector<1x128x128xf32>
    %51 = vector.shape_cast %50 : vector<1x128x128xf32> to vector<128x128xf32>
    %cst_44 = arith.constant dense<0.000000e+00> : vector<16x128xf32>
    %52 = tpu.matmul %49, %51, %cst_44 {dimension_numbers = #tpu.dot_dimension_numbers<[1], [0], [0], [1], [0, 0, 1, 1], [], []>} : vector<16x128xf32>, vector<128x128xf32>, vector<16x128xf32> -> vector<16x128xf32>
    %53 = arith.addf %43, %52 : vector<16x128xf32>
    %54 = vector.extract_strided_slice %48 {offsets = [0, 128], sizes = [16, 128], strides = [1, 1]} : vector<16x256xf32> to vector<16x128xf32>
    %c4_45 = arith.constant 4 : index
    %c0_46 = arith.constant 0 : index
    %c0_47 = arith.constant 0 : index
    %55 = vector.load %arg3[%c4_45, %c0_46, %c0_47] : memref<7x128x128xf32, #tpu.memory_space<vmem>>, vector<1x128x128xf32>
    %56 = vector.shape_cast %55 : vector<1x128x128xf32> to vector<128x128xf32>
    %cst_48 = arith.constant dense<0.000000e+00> : vector<16x128xf32>
    %57 = tpu.matmul %54, %56, %cst_48 {dimension_numbers = #tpu.dot_dimension_numbers<[1], [0], [0], [1], [0, 0, 1, 1], [], []>} : vector<16x128xf32>, vector<128x128xf32>, vector<16x128xf32> -> vector<16x128xf32>
    %58 = arith.addf %47, %57 : vector<16x128xf32>
    %59 = arith.addf %35, %53 : vector<16x128xf32>
    %60 = arith.addf %36, %58 : vector<16x128xf32>
    %c2_49 = arith.constant 2 : index
    %c0_50 = arith.constant 0 : index
    %c0_51 = arith.constant 0 : index
    %61 = vector.load %arg2[%c2_49, %c0_50, %c0_51] : memref<3x16x16xf32, #tpu.memory_space<vmem>>, vector<1x16x16xf32>
    %62 = vector.shape_cast %61 : vector<1x16x16xf32> to vector<16x16xf32>
    %cst_52 = arith.constant dense<0.000000e+00> : vector<16x256xf32>
    %63 = tpu.matmul %62, %1, %cst_52 {dimension_numbers = #tpu.dot_dimension_numbers<[1], [0], [0], [1], [0, 0, 1, 1], [], []>} : vector<16x16xf32>, vector<16x256xf32>, vector<16x256xf32> -> vector<16x256xf32>
    %64 = vector.extract_strided_slice %63 {offsets = [0, 0], sizes = [16, 128], strides = [1, 1]} : vector<16x256xf32> to vector<16x128xf32>
    %c5 = arith.constant 5 : index
    %c0_53 = arith.constant 0 : index
    %c0_54 = arith.constant 0 : index
    %65 = vector.load %arg3[%c5, %c0_53, %c0_54] : memref<7x128x128xf32, #tpu.memory_space<vmem>>, vector<1x128x128xf32>
    %66 = vector.shape_cast %65 : vector<1x128x128xf32> to vector<128x128xf32>
    %cst_55 = arith.constant dense<0.000000e+00> : vector<16x128xf32>
    %67 = tpu.matmul %64, %66, %cst_55 {dimension_numbers = #tpu.dot_dimension_numbers<[1], [0], [0], [1], [0, 0, 1, 1], [], []>} : vector<16x128xf32>, vector<128x128xf32>, vector<16x128xf32> -> vector<16x128xf32>
    %68 = vector.extract_strided_slice %63 {offsets = [0, 128], sizes = [16, 128], strides = [1, 1]} : vector<16x256xf32> to vector<16x128xf32>
    %c5_56 = arith.constant 5 : index
    %c0_57 = arith.constant 0 : index
    %c0_58 = arith.constant 0 : index
    %69 = vector.load %arg3[%c5_56, %c0_57, %c0_58] : memref<7x128x128xf32, #tpu.memory_space<vmem>>, vector<1x128x128xf32>
    %70 = vector.shape_cast %69 : vector<1x128x128xf32> to vector<128x128xf32>
    %cst_59 = arith.constant dense<0.000000e+00> : vector<16x128xf32>
    %71 = tpu.matmul %68, %70, %cst_59 {dimension_numbers = #tpu.dot_dimension_numbers<[1], [0], [0], [1], [0, 0, 1, 1], [], []>} : vector<16x128xf32>, vector<128x128xf32>, vector<16x128xf32> -> vector<16x128xf32>
    %cst_60 = arith.constant dense<0.000000e+00> : vector<16x256xf32>
    %72 = tpu.matmul %62, %63, %cst_60 {dimension_numbers = #tpu.dot_dimension_numbers<[1], [0], [0], [1], [0, 0, 1, 1], [], []>} : vector<16x16xf32>, vector<16x256xf32>, vector<16x256xf32> -> vector<16x256xf32>
    %73 = vector.extract_strided_slice %72 {offsets = [0, 0], sizes = [16, 128], strides = [1, 1]} : vector<16x256xf32> to vector<16x128xf32>
    %c6 = arith.constant 6 : index
    %c0_61 = arith.constant 0 : index
    %c0_62 = arith.constant 0 : index
    %74 = vector.load %arg3[%c6, %c0_61, %c0_62] : memref<7x128x128xf32, #tpu.memory_space<vmem>>, vector<1x128x128xf32>
    %75 = vector.shape_cast %74 : vector<1x128x128xf32> to vector<128x128xf32>
    %cst_63 = arith.constant dense<0.000000e+00> : vector<16x128xf32>
    %76 = tpu.matmul %73, %75, %cst_63 {dimension_numbers = #tpu.dot_dimension_numbers<[1], [0], [0], [1], [0, 0, 1, 1], [], []>} : vector<16x128xf32>, vector<128x128xf32>, vector<16x128xf32> -> vector<16x128xf32>
    %77 = arith.addf %67, %76 : vector<16x128xf32>
    %78 = vector.extract_strided_slice %72 {offsets = [0, 128], sizes = [16, 128], strides = [1, 1]} : vector<16x256xf32> to vector<16x128xf32>
    %c6_64 = arith.constant 6 : index
    %c0_65 = arith.constant 0 : index
    %c0_66 = arith.constant 0 : index
    %79 = vector.load %arg3[%c6_64, %c0_65, %c0_66] : memref<7x128x128xf32, #tpu.memory_space<vmem>>, vector<1x128x128xf32>
    %80 = vector.shape_cast %79 : vector<1x128x128xf32> to vector<128x128xf32>
    %cst_67 = arith.constant dense<0.000000e+00> : vector<16x128xf32>
    %81 = tpu.matmul %78, %80, %cst_67 {dimension_numbers = #tpu.dot_dimension_numbers<[1], [0], [0], [1], [0, 0, 1, 1], [], []>} : vector<16x128xf32>, vector<128x128xf32>, vector<16x128xf32> -> vector<16x128xf32>
    %82 = arith.addf %71, %81 : vector<16x128xf32>
    %83 = arith.addf %59, %77 : vector<16x128xf32>
    %84 = arith.addf %60, %82 : vector<16x128xf32>
    %85 = arith.addf %83, %4 : vector<16x128xf32>
    %c0_68 = arith.constant 0 : index
    %c0_69 = arith.constant 0 : index
    %c0_70 = arith.constant 0 : index
    %86 = vector.load %arg5[%c0_68, %c0_69, %c0_70] : memref<1x16x256xf32, #tpu.memory_space<vmem>>, vector<1x16x128xf32>
    %87 = vector.shape_cast %86 : vector<1x16x128xf32> to vector<16x128xf32>
    %88 = vector.shape_cast %85 : vector<16x128xf32> to vector<1x16x128xf32>
    tpu.vector_store %arg5[%c0_68, %c0_69, %c0_70], %88 {strides = array<i32>} : memref<1x16x256xf32, #tpu.memory_space<vmem>>, vector<1x16x128xf32>,
    %89 = arith.addf %84, %4 : vector<16x128xf32>
    %c0_71 = arith.constant 0 : index
    %c0_72 = arith.constant 0 : index
    %c128 = arith.constant 128 : index
    %90 = vector.load %arg5[%c0_71, %c0_72, %c128] : memref<1x16x256xf32, #tpu.memory_space<vmem>>, vector<1x16x128xf32>
    %91 = vector.shape_cast %90 : vector<1x16x128xf32> to vector<16x128xf32>
    %92 = vector.shape_cast %89 : vector<16x128xf32> to vector<1x16x128xf32>
    tpu.vector_store %arg5[%c0_71, %c0_72, %c128], %92 {strides = array<i32>} : memref<1x16x256xf32, #tpu.memory_space<vmem>>, vector<1x16x128xf32>,
    return
  }
  func.func @transform_0(%arg0: i32) -> (i32, i32, i32) {
    %c0_i32 = arith.constant 0 : i32
    %c0_i32_0 = arith.constant 0 : i32
    %c0_i32_1 = arith.constant 0 : i32
    return %arg0, %c0_i32, %c0_i32_0 : i32, i32, i32
  }
  func.func @transform_1(%arg0: i32) -> (i32, i32, i32) {
    %c0_i32 = arith.constant 0 : i32
    %c0_i32_0 = arith.constant 0 : i32
    %c0_i32_1 = arith.constant 0 : i32
    %c0_i32_2 = arith.constant 0 : i32
    return %c0_i32, %c0_i32_0, %c0_i32_1 : i32, i32, i32
  }
  func.func @transform_2(%arg0: i32) -> (i32, i32, i32) {
    %c0_i32 = arith.constant 0 : i32
    %c0_i32_0 = arith.constant 0 : i32
    %c0_i32_1 = arith.constant 0 : i32
    %c0_i32_2 = arith.constant 0 : i32
    return %c0_i32, %c0_i32_0, %c0_i32_1 : i32, i32, i32
  }
  func.func @transform_3(%arg0: i32) -> (i32, i32) {
    %c0_i32 = arith.constant 0 : i32
    %c0_i32_0 = arith.constant 0 : i32
    %c0_i32_1 = arith.constant 0 : i32
    return %c0_i32, %c0_i32_0 : i32, i32
  }
  func.func @transform_4(%arg0: i32) -> (i32, i32, i32) {
    %c0_i32 = arith.constant 0 : i32
    %c0_i32_0 = arith.constant 0 : i32
    %c0_i32_1 = arith.constant 0 : i32
    return %arg0, %c0_i32, %c0_i32_0 : i32, i32, i32
  }
}

</mosaic_0001>

<llo_original>
// kernel: tpu_custom_call.1
$region0: #{tpu_custom_call.1}
  #allocation0 [shape = 'u32[]', space=smem, size = 0x4, offset = 0x4, fixed_abs, tag = 'smem constant byte address 0x4 - core index']
  #allocation1 [shape = 'u32[144,128]{1,0:T(1,128)}', space=vmem, size = 0x12000, scoped, tag = 'internal scratch']
  %s0 = inlined_call_operand.hbm [shape: f32[2,16,256], index: 0, kind: input, shape index: {}]
  %s1 = inlined_call_operand.hbm [shape: f32[3,16,16], index: 1, kind: input, shape index: {}]
  %s2 = inlined_call_operand.hbm [shape: f32[7,128,128], index: 2, kind: input, shape index: {}]
  %s3 = inlined_call_operand.vmem [shape: f32[1,128], index: 3, kind: input, shape index: {}]
  %s4 = inlined_call_operand.hbm [shape: f32[2,16,256], index: 4, kind: output, shape index: {}]
  %s5 = sld [smem:[#allocation0]]
  $region61: #{tpu_custom_call.1} parent=0
    _
  %s7 = ssub.s32 1, %s5
  %s8 = scalar_select 0, %s7, %s5
  $region1: #{tpu_custom_call.1} parent=0
    #allocation2 [shape = 'u8[32768]{0}', space=vmem, size = 0x8000, scoped, tag = 'input window, operand 0']
    #allocation3 [shape = 's32[2]{0}', space=sflag, size = 0x8, scoped, tag = 'scoped memory for tpu_custom_call.1']
    #allocation4 [shape = 's32[2]{0}', space=sflag, size = 0x8, scoped, tag = 'scoped memory for tpu_custom_call.1']
    #allocation5 [shape = 'u8[24576]{0}', space=vmem, size = 0x6000, scoped, tag = 'input window, operand 1, single buffered']
    #allocation6 [shape = 's32[1]{0}', space=sflag, size = 0x4, scoped, tag = 'scoped memory for tpu_custom_call.1']
    #allocation7 [shape = 'u8[458752]{0}', space=vmem, size = 0x70000, scoped, tag = 'input window, operand 2, single buffered']
    #allocation8 [shape = 'u8[32768]{0}', space=vmem, size = 0x8000, scoped, tag = 'output window, operand 0']
    %9 = vsyncpa [#allocation3], 0
    %s10 = scalar_lea.sflag [#allocation3], 1
    %11 = vsyncpa %s10, 0
    %12 = vsyncpa [#allocation6], 0
    %13 = vsyncpa [#allocation4], 0
    %s14 = scalar_lea.sflag [#allocation4], 1
    %15 = vsyncpa %s14, 0
    loop: start=0, step=1, limit=4
    $region2: #{tpu_custom_call.1} parent=1 // loop_pre_header
      _
    $region3: #{tpu_custom_call.1} parent=1 // loop_header
      %s17 = sphi 0, %s21
      %p18 = scmp.ge.s32.totalorder %s17, 4
      %s27 = sphi 0, %s29
      %s30 = sphi 0, %s27
      %s31 = sphi 0, %s30
      %s47 = sphi 0, %s31
      %s51 = sphi 0, %s51
      %s53 = sphi 0, %s51
      %s54 = sphi 0, %s53
      %s68 = sphi 0, %s54
      %s72 = sphi 0, %s72
      %s74 = sphi 0, %s72
      %s75 = sphi 0, %s74
      %s89 = sphi 0, %s75
      %s93 = sphi 0, %s93
      %s95 = sphi 0, %s93
      %s96 = sphi 0, %s95
      %s110 = sphi 0, %s96
      %s116 = sphi 0, %s118
      %s119 = sphi 0, %s116
      %s120 = sphi 0, %s119
      %s136 = sphi 0, %s120
    $region4: #{tpu_custom_call.1} parent=1 // loop_header_branch
      %20 = sbr.rel (%p18) target = $region8
    $region5: #{tpu_custom_call.1} parent=1 // loop_body
      %s22 = ssub.s32 %s17, 1
      %s23 = ssub.s32 %s17, 2
      %s24 = sadd.s32 %s17, 1
      %s25 = ssub.s32 %s17, %s24
      %p26 = scmp.eq.s32.totalorder %s25, 0
      %s28 = sadd.s32 %s27, 1
      %s29 = scalar_select %p26, %s27, %s28
      %p32 = pneg %p26
      %p33 = scmp.eq.s32.totalorder %s17, 1
      %p34 = por %p32, %p33
      %p35 = scmp.ne.s32.totalorder %s27, %s30
      %p36 = scmp.eq.s32.totalorder %s17, 0
      %p37 = por %p35, %p36
      %p38 = scmp.ne.s32.totalorder %s27, %s30
      %p39 = scmp.eq.s32.totalorder %s22, 1
      %p40 = por %p38, %p39
      %p41 = scmp.ne.s32.totalorder %s30, %s31
      %p42 = scmp.eq.s32.totalorder %s22, 0
      %p43 = por %p41, %p42
      %p44 = scmp.ne.s32.totalorder %s30, %s31
      %p45 = scmp.eq.s32.totalorder %s23, 1
      %p46 = por %p44, %p45
      %p48 = scmp.ne.s32.totalorder %s31, %s47
      %p49 = scmp.eq.s32.totalorder %s23, 0
      %p50 = por %p48, %p49
      %s52 = sadd.s32 %s51, 1
      %p55 = scmp.eq.s32.totalorder %s17, 1
      %p56 = scmp.ne.s32.totalorder %s51, %s53
      %p57 = scmp.eq.s32.totalorder %s17, 0
      %p58 = por %p56, %p57
      %p59 = scmp.ne.s32.totalorder %s51, %s53
      %p60 = scmp.eq.s32.totalorder %s22, 1
      %p61 = por %p59, %p60
      %p62 = scmp.ne.s32.totalorder %s53, %s54
      %p63 = scmp.eq.s32.totalorder %s22, 0
      %p64 = por %p62, %p63
      %p65 = scmp.ne.s32.totalorder %s53, %s54
      %p66 = scmp.eq.s32.totalorder %s23, 1
      %p67 = por %p65, %p66
      %p69 = scmp.ne.s32.totalorder %s54, %s68
      %p70 = scmp.eq.s32.totalorder %s23, 0
      %p71 = por %p69, %p70
      %s73 = sadd.s32 %s72, 1
      %p76 = scmp.eq.s32.totalorder %s17, 1
      %p77 = scmp.ne.s32.totalorder %s72, %s74
      %p78 = scmp.eq.s32.totalorder %s17, 0
      %p79 = por %p77, %p78
      %p80 = scmp.ne.s32.totalorder %s72, %s74
      %p81 = scmp.eq.s32.totalorder %s22, 1
      %p82 = por %p80, %p81
      %p83 = scmp.ne.s32.totalorder %s74, %s75
      %p84 = scmp.eq.s32.totalorder %s22, 0
      %p85 = por %p83, %p84
      %p86 = scmp.ne.s32.totalorder %s74, %s75
      %p87 = scmp.eq.s32.totalorder %s23, 1
      %p88 = por %p86, %p87
      %p90 = scmp.ne.s32.totalorder %s75, %s89
      %p91 = scmp.eq.s32.totalorder %s23, 0
      %p92 = por %p90, %p91
      %s94 = sadd.s32 %s93, 1
      %p97 = scmp.eq.s32.totalorder %s17, 1
      %p98 = scmp.ne.s32.totalorder %s93, %s95
      %p99 = scmp.eq.s32.totalorder %s17, 0
      %p100 = por %p98, %p99
      %p101 = scmp.ne.s32.totalorder %s93, %s95
      %p102 = scmp.eq.s32.totalorder %s22, 1
      %p103 = por %p101, %p102
      %p104 = scmp.ne.s32.totalorder %s95, %s96
      %p105 = scmp.eq.s32.totalorder %s22, 0
      %p106 = por %p104, %p105
      %p107 = scmp.ne.s32.totalorder %s95, %s96
      %p108 = scmp.eq.s32.totalorder %s23, 1
      %p109 = por %p107, %p108
      %p111 = scmp.ne.s32.totalorder %s96, %s110
      %p112 = scmp.eq.s32.totalorder %s23, 0
      %p113 = por %p111, %p112
      %s114 = ssub.s32 %s17, %s24
      %p115 = scmp.eq.s32.totalorder %s114, 0
      %s117 = sadd.s32 %s116, 1
      %s118 = scalar_select %p115, %s116, %s117
      %p121 = pneg %p115
      %p122 = scmp.eq.s32.totalorder %s17, 1
      %p123 = por %p121, %p122
      %p124 = scmp.ne.s32.totalorder %s116, %s119
      %p125 = scmp.eq.s32.totalorder %s17, 0
      %p126 = por %p124, %p125
      %p127 = scmp.ne.s32.totalorder %s116, %s119
      %p128 = scmp.eq.s32.totalorder %s22, 1
      %p129 = por %p127, %p128
      %p130 = scmp.ne.s32.totalorder %s119, %s120
      %p131 = scmp.eq.s32.totalorder %s22, 0
      %p132 = por %p130, %p131
      %p133 = scmp.ne.s32.totalorder %s119, %s120
      %p134 = scmp.eq.s32.totalorder %s23, 1
      %p135 = por %p133, %p134
      %p137 = scmp.ne.s32.totalorder %s120, %s136
      %p138 = scmp.eq.s32.totalorder %s23, 0
      %p139 = por %p137, %p138
      %p140 = scmp.le.s32.totalorder 1, %s17
      %p141 = scmp.lt.s32.totalorder %s17, 3
      %p142 = pnand %p140, %p141
      %p143 = pneg %p142
      // Predicated region
      $region9: #{tpu_custom_call.1} parent=5 // pred_check
        _
      $region10: #{tpu_custom_call.1} parent=5 // pred_check_branch
        %145 = sbr.rel (%p142) target = $region12
      $region11: #{tpu_custom_call.1} parent=5 // pred_region
        %s146 = ssub.s32 %s17, 1
        // Predicated region
        $region13: #{tpu_custom_call.1} parent=11 // pred_check
          %p147 = pneg %p64
        $region14: #{tpu_custom_call.1} parent=11 // pred_check_branch
          %149 = sbr.rel (%p147) target = $region16
        $region15: #{tpu_custom_call.1} parent=11 // pred_region
          %s151 = ssub.s32 768, 768
          %152 = vsyncadd [#allocation6], %s151
          %s153 = sshll.u32 [#allocation5], 4
          %s154 = int_to_ptr.vmem [resolvable:$true] %s153
          %159 = dma.hbm_to_vmem [thread:$0]  %s1, 768, %s154, [#allocation6], 128, 128, 8
        $region16: #{tpu_custom_call.1} parent=11 // pred_fallthru
          _
        // Predicated region
        $region17: #{tpu_custom_call.1} parent=11 // pred_check
          %p160 = pneg %p85
        $region18: #{tpu_custom_call.1} parent=11 // pred_check_branch
          %162 = sbr.rel (%p160) target = $region20
        $region19: #{tpu_custom_call.1} parent=11 // pred_region
          %s164 = ssub.s32 14336, 14336
          %165 = vsyncadd [#allocation6], %s164
          %s166 = sshll.u32 [#allocation7], 4
          %s167 = int_to_ptr.vmem [resolvable:$true] %s166
          %172 = dma.hbm_to_vmem [thread:$0]  %s2, 14336, %s167, [#allocation6], 128, 128, 8
        $region20: #{tpu_custom_call.1} parent=11 // pred_fallthru
          _
        // Predicated region
        $region21: #{tpu_custom_call.1} parent=11 // pred_check
          %p173 = pneg %p106
        $region22: #{tpu_custom_call.1} parent=11 // pred_check_branch
          %175 = sbr.rel (%p173) target = $region24
        $region23: #{tpu_custom_call.1} parent=11 // pred_region
          _
        $region24: #{tpu_custom_call.1} parent=11 // pred_fallthru
          _
      $region12: #{tpu_custom_call.1} parent=5 // pred_fallthru
        _
      %p176 = scmp.lt.s32.totalorder %s17, 2
      // Predicated region
      $region25: #{tpu_custom_call.1} parent=5 // pred_check
        %p177 = pneg %p176
      $region26: #{tpu_custom_call.1} parent=5 // pred_check_branch
        %179 = sbr.rel (%p177) target = $region28
      $region27: #{tpu_custom_call.1} parent=5 // pred_region
        // Predicated region
        $region29: #{tpu_custom_call.1} parent=27 // pred_check
          %p180 = pneg %p37
        $region30: #{tpu_custom_call.1} parent=27 // pred_check_branch
          %182 = sbr.rel (%p180) target = $region32
        $region31: #{tpu_custom_call.1} parent=27 // pred_region
          %s183 = sand.u32 %s27, 1
          %s184 = scalar_lea.sflag [#allocation3], %s183
          %s185 = sand.u32 %s27, 1
          %s186 = smul.addr %s185, 32
          %s187 = scalar_lea.vmem [#allocation2], %s186
          %s189 = ssub.s32 512, 512
          %190 = vsyncadd %s184, %s189
          %s191 = smul.addr %s17, 4
          %s192 = smul.addr %s191, 128
          %s193 = scalar_lea.hbm %s0, %s192
          %s194 = sshll.u32 %s187, 4
          %s195 = int_to_ptr.vmem [resolvable:$true] %s194
          %200 = dma.hbm_to_vmem [thread:$0]  %s193, 512, %s195, %s184, 256, 256, 16
        $region32: #{tpu_custom_call.1} parent=27 // pred_fallthru
          _
      $region28: #{tpu_custom_call.1} parent=5 // pred_fallthru
        _
      %p201 = scmp.le.s32.totalorder 1, %s17
      %p202 = scmp.lt.s32.totalorder %s17, 3
      %p203 = pnand %p201, %p202
      %p204 = pneg %p203
      // Predicated region
      $region33: #{tpu_custom_call.1} parent=5 // pred_check
        _
      $region34: #{tpu_custom_call.1} parent=5 // pred_check_branch
        %206 = sbr.rel (%p203) target = $region36
      $region35: #{tpu_custom_call.1} parent=5 // pred_region
        %s207 = ssub.s32 %s17, 1
        %s208 = sand.u32 %s30, 1
        %s209 = scalar_lea.sflag [#allocation3], %s208
        %s210 = sand.u32 %s30, 1
        %s211 = smul.addr %s210, 32
        %s212 = scalar_lea.vmem [#allocation2], %s211
        // Predicated region
        $region37: #{tpu_custom_call.1} parent=35 // pred_check
          %p213 = pneg %p43
        $region38: #{tpu_custom_call.1} parent=35 // pred_check_branch
          %215 = sbr.rel (%p213) target = $region40
        $region39: #{tpu_custom_call.1} parent=35 // pred_region
          %216 = dma.done %s209, 512
        $region40: #{tpu_custom_call.1} parent=35 // pred_fallthru
          _
        // Predicated region
        $region41: #{tpu_custom_call.1} parent=35 // pred_check
          %p217 = pneg %p64
        $region42: #{tpu_custom_call.1} parent=35 // pred_check_branch
          %219 = sbr.rel (%p217) target = $region44
        $region43: #{tpu_custom_call.1} parent=35 // pred_region
          %220 = dma.done [#allocation6], 768
        $region44: #{tpu_custom_call.1} parent=35 // pred_fallthru
          _
        // Predicated region
        $region45: #{tpu_custom_call.1} parent=35 // pred_check
          %p221 = pneg %p85
        $region46: #{tpu_custom_call.1} parent=35 // pred_check_branch
          %223 = sbr.rel (%p221) target = $region48
        $region47: #{tpu_custom_call.1} parent=35 // pred_region
          %224 = dma.done [#allocation6], 14336
        $region48: #{tpu_custom_call.1} parent=35 // pred_fallthru
          _
        %s225 = sand.u32 %s30, 1
        %s226 = scalar_lea.sflag [#allocation3], %s225
        %s227 = sand.u32 %s30, 1
        %s228 = smul.addr %s227, 32
        %s229 = scalar_lea.vmem [#allocation2], %s228
        %p230 = pneg %p43
        %p231 = pneg %p40
        %p232 = pneg %p64
        %p233 = pneg %p61
        %p234 = pneg %p85
        %p235 = pneg %p82
        %p236 = pneg %p106
        %p237 = pneg %p103
        %p238 = pneg %p132
        %p239 = pneg %p129
        %s240 = sand.u32 %s119, 1
        %s241 = scalar_lea.sflag [#allocation4], %s240
        %s242 = sand.u32 %s119, 1
        %s243 = smul.addr %s242, 32
        %s244 = scalar_lea.vmem [#allocation8], %s243
        %v245 = vld [vmem:[%s212] sm:$0xff]
        %v246 = vld [vmem:[%s212 + $0x8] sm:$0xff]
        %v247 = vld [vmem:[%s212 + $0x10] sm:$0xff]
        %v248 = vld [vmem:[%s212 + $0x18] sm:$0xff]
        %v249 = vld [vmem:[%s3] sm:$0x1]
        %v251 = vlaneseq
        %v252 = vshrl.u32 %v251, 7
        %v253 = vsub.s32 0, %v252
        %v254 = vrot.slane %v249, %v253
        %v256 = vld [vmem:[#allocation7] sm:$0xff]
        %v257 = vld [vmem:[#allocation7 + $0x8] sm:$0xff]
        %v258 = vld [vmem:[#allocation7 + $0x10] sm:$0xff]
        %v259 = vld [vmem:[#allocation7 + $0x18] sm:$0xff]
        %v260 = vld [vmem:[#allocation7 + $0x20] sm:$0xff]
        %v261 = vld [vmem:[#allocation7 + $0x28] sm:$0xff]
        %v262 = vld [vmem:[#allocation7 + $0x30] sm:$0xff]
        %v263 = vld [vmem:[#allocation7 + $0x38] sm:$0xff]
        %v264 = vld [vmem:[#allocation7 + $0x40] sm:$0xff]
        %v265 = vld [vmem:[#allocation7 + $0x48] sm:$0xff]
        %v266 = vld [vmem:[#allocation7 + $0x50] sm:$0xff]
        %v267 = vld [vmem:[#allocation7 + $0x58] sm:$0xff]
        %v268 = vld [vmem:[#allocation7 + $0x60] sm:$0xff]
        %v269 = vld [vmem:[#allocation7 + $0x68] sm:$0xff]
        %v270 = vld [vmem:[#allocation7 + $0x70] sm:$0xff]
        %v271 = vld [vmem:[#allocation7 + $0x78] sm:$0xff]
        %v272 = vld [vmem:[#allocation5] sm:$0xff]
        %v273 = vld [vmem:[#allocation5 + $0x8] sm:$0xff]
        %vm274 = vcmask 130048
        %v276 = vsel %vm274, %v272, 0
        %v279 = vsel %vm274, %v273, 0
        %281 = vmatprep.subr.mxu0 %v246
        %282 = vmatpush1.msra.mxu0 %v245
        %283 = vmatprep.subr.mxu0 %v248
        %284 = vmatpush1.msra.mxu0 %v247
        %285 = vmatprep.subr.mxu0 0.0
        %286 = vmatpush1.msra.mxu0 0.0
        %287 = vmatprep.subr.mxu0 0.0
        %288 = vmatpush1.msra.mxu0 0.0
        %289 = vmatprep.subr.mxu0 0.0
        %290 = vmatpush1.msra.mxu0 0.0
        %291 = vmatprep.subr.mxu0 0.0
        %292 = vmatpush1.msra.mxu0 0.0
        %293 = vmatprep.subr.mxu0 0.0
        %294 = vmatpush1.msra.mxu0 0.0
        %295 = vmatprep.subr.mxu0 0.0
        %296 = vmatpush1.msra.mxu0 0.0
        %297 = vmatprep.subr.mxu0 0.0
        %298 = vmatpush1.msra.mxu0 0.0
        %299 = vmatprep.subr.mxu0 0.0
        %300 = vmatpush1.msra.mxu0 0.0
        %301 = vmatprep.subr.mxu0 0.0
        %302 = vmatpush1.msra.mxu0 0.0
        %303 = vmatprep.subr.mxu0 0.0
        %304 = vmatpush1.msra.mxu0 0.0
        %305 = vmatprep.subr.mxu0 0.0
        %306 = vmatpush1.msra.mxu0 0.0
        %307 = vmatprep.subr.mxu0 0.0
        %308 = vmatpush1.msra.mxu0 0.0
        %309 = vmatprep.subr.mxu0 0.0
        %310 = vmatpush1.msra.mxu0 0.0
        %311 = vmatprep.subr.mxu0 0.0
        %312 = vmatpush1.msra.mxu0 0.0
        %313 = vmatprep.subr.mxu0 0.0
        %314 = vmatpush1.msra.mxu0 0.0
        %315 = vmatprep.subr.mxu0 0.0
        %316 = vmatpush1.msra.mxu0 0.0
        %317 = vmatprep.subr.mxu0 0.0
        %318 = vmatpush1.msra.mxu0 0.0
        %319 = vmatprep.subr.mxu0 0.0
        %320 = vmatpush1.msra.mxu0 0.0
        %321 = vmatprep.subr.mxu0 0.0
        %322 = vmatpush1.msra.mxu0 0.0
        %323 = vmatprep.subr.mxu0 0.0
        %324 = vmatpush1.msra.mxu0 0.0
        %325 = vmatprep.subr.mxu0 0.0
        %326 = vmatpush1.msra.mxu0 0.0
        %327 = vmatprep.subr.mxu0 0.0
        %328 = vmatpush1.msra.mxu0 0.0
        %329 = vmatprep.subr.mxu0 0.0
        %330 = vmatpush1.msra.mxu0 0.0
        %331 = vmatprep.subr.mxu0 0.0
        %332 = vmatpush1.msra.mxu0 0.0
        %333 = vmatprep.subr.mxu0 0.0
        %334 = vmatpush1.msra.mxu0 0.0
        %335 = vmatprep.subr.mxu0 0.0
        %336 = vmatpush1.msra.mxu0 0.0
        %337 = vmatprep.subr.mxu0 0.0
        %338 = vmatpush1.msra.mxu0 0.0
        %339 = vmatprep.subr.mxu0 0.0
        %340 = vmatpush1.msra.mxu0 0.0
        %341 = vmatprep.subr.mxu0 0.0
        %342 = vmatpush1.msra.mxu0 0.0
        %343 = vmatprep.subr.mxu0 0.0
        %344 = vmatpush1.msra.mxu0 0.0
        %345 = vmatprep.mubr.f32.mxu0 0.0
        %346 = vmatmul.mubr.f32.gmra.mrb[0].mxu0 %v276
        %v347 = vpop.f32.mrb[0].mxu0
        %v348 = vadd.f32 0.0, %v347
        %v349 = vpop.f32.mrb[0].mxu0
        %v350 = vadd.f32 0.0, %v349
        %351 = vmatprep.mubr.f32.mxu0 0.0
        %352 = vmatmul.mubr.f32.gmra.mrb[0].mxu0 %v279
        %v353 = vpop.f32.mrb[0].mxu0
        %v354 = vadd.f32 0.0, %v353
        %v355 = vpop.f32.mrb[0].mxu0
        %v356 = vadd.f32 0.0, %v355
        %357 = vdwg.mxu0
        %s358 = scalar_lea.vmem [#allocation7], 128
        %v359 = vld [vmem:[%s358] sm:$0xff]
        %v360 = vld [vmem:[%s358 + $0x8] sm:$0xff]
        %v361 = vld [vmem:[%s358 + $0x10] sm:$0xff]
        %v362 = vld [vmem:[%s358 + $0x18] sm:$0xff]
        %v363 = vld [vmem:[%s358 + $0x20] sm:$0xff]
        %v364 = vld [vmem:[%s358 + $0x28] sm:$0xff]
        %v365 = vld [vmem:[%s358 + $0x30] sm:$0xff]
        %v366 = vld [vmem:[%s358 + $0x38] sm:$0xff]
        %v367 = vld [vmem:[%s358 + $0x40] sm:$0xff]
        %v368 = vld [vmem:[%s358 + $0x48] sm:$0xff]
        %v369 = vld [vmem:[%s358 + $0x50] sm:$0xff]
        %v370 = vld [vmem:[%s358 + $0x58] sm:$0xff]
        %v371 = vld [vmem:[%s358 + $0x60] sm:$0xff]
        %v372 = vld [vmem:[%s358 + $0x68] sm:$0xff]
        %v373 = vld [vmem:[%s358 + $0x70] sm:$0xff]
        %v374 = vld [vmem:[%s358 + $0x78] sm:$0xff]
        %375 = vmatprep.subr.mxu0 %v350
        %376 = vmatpush1.msra.mxu0 %v348
        %377 = vmatprep.subr.mxu0 %v356
        %378 = vmatpush1.msra.mxu0 %v354
        %379 = vmatprep.subr.mxu0 0.0
        %380 = vmatpush1.msra.mxu0 0.0
        %381 = vmatprep.subr.mxu0 0.0
        %382 = vmatpush1.msra.mxu0 0.0
        %383 = vmatprep.subr.mxu0 0.0
        %384 = vmatpush1.msra.mxu0 0.0
        %385 = vmatprep.subr.mxu0 0.0
        %386 = vmatpush1.msra.mxu0 0.0
        %387 = vmatprep.subr.mxu0 0.0
        %388 = vmatpush1.msra.mxu0 0.0
        %389 = vmatprep.subr.mxu0 0.0
        %390 = vmatpush1.msra.mxu0 0.0
        %391 = vmatprep.subr.mxu0 0.0
        %392 = vmatpush1.msra.mxu0 0.0
        %393 = vmatprep.subr.mxu0 0.0
        %394 = vmatpush1.msra.mxu0 0.0
        %395 = vmatprep.subr.mxu0 0.0
        %396 = vmatpush1.msra.mxu0 0.0
        %397 = vmatprep.subr.mxu0 0.0
        %398 = vmatpush1.msra.mxu0 0.0
        %399 = vmatprep.subr.mxu0 0.0
        %400 = vmatpush1.msra.mxu0 0.0
        %401 = vmatprep.subr.mxu0 0.0
        %402 = vmatpush1.msra.mxu0 0.0
        %403 = vmatprep.subr.mxu0 0.0
        %404 = vmatpush1.msra.mxu0 0.0
        %405 = vmatprep.subr.mxu0 0.0
        %406 = vmatpush1.msra.mxu0 0.0
        %407 = vmatprep.subr.mxu0 0.0
        %408 = vmatpush1.msra.mxu0 0.0
        %409 = vmatprep.subr.mxu0 0.0
        %410 = vmatpush1.msra.mxu0 0.0
        %411 = vmatprep.subr.mxu0 0.0
        %412 = vmatpush1.msra.mxu0 0.0
        %413 = vmatprep.subr.mxu0 0.0
        %414 = vmatpush1.msra.mxu0 0.0
        %415 = vmatprep.subr.mxu0 0.0
        %416 = vmatpush1.msra.mxu0 0.0
        %417 = vmatprep.subr.mxu0 0.0
        %418 = vmatpush1.msra.mxu0 0.0
        %419 = vmatprep.subr.mxu0 0.0
        %420 = vmatpush1.msra.mxu0 0.0
        %421 = vmatprep.subr.mxu0 0.0
        %422 = vmatpush1.msra.mxu0 0.0
        %423 = vmatprep.subr.mxu0 0.0
        %424 = vmatpush1.msra.mxu0 0.0
        %425 = vmatprep.subr.mxu0 0.0
        %426 = vmatpush1.msra.mxu0 0.0
        %427 = vmatprep.subr.mxu0 0.0
        %428 = vmatpush1.msra.mxu0 0.0
        %429 = vmatprep.subr.mxu0 0.0
        %430 = vmatpush1.msra.mxu0 0.0
        %431 = vmatprep.subr.mxu0 0.0
        %432 = vmatpush1.msra.mxu0 0.0
        %433 = vmatprep.subr.mxu0 0.0
        %434 = vmatpush1.msra.mxu0 0.0
        %435 = vmatprep.subr.mxu0 0.0
        %436 = vmatpush1.msra.mxu0 0.0
        %437 = vmatprep.subr.mxu0 0.0
        %438 = vmatpush1.msra.mxu0 0.0
        %439 = vmatprep.mubr.f32.mxu0 0.0
        %440 = vmatmul.mubr.f32.gmra.mrb[0].mxu0 %v276
        %v441 = vpop.f32.mrb[0].mxu0
        %v442 = vadd.f32 0.0, %v441
        %v443 = vpop.f32.mrb[0].mxu0
        %v444 = vadd.f32 0.0, %v443
        %445 = vmatprep.mubr.f32.mxu0 0.0
        %446 = vmatmul.mubr.f32.gmra.mrb[0].mxu0 %v279
        %v447 = vpop.f32.mrb[0].mxu0
        %v448 = vadd.f32 0.0, %v447
        %v449 = vpop.f32.mrb[0].mxu0
        %v450 = vadd.f32 0.0, %v449
        %451 = vdwg.mxu0
        %s452 = scalar_lea.vmem [#allocation7], 256
        %v453 = vld [vmem:[%s452] sm:$0xff]
        %v454 = vld [vmem:[%s452 + $0x8] sm:$0xff]
        %v455 = vld [vmem:[%s452 + $0x10] sm:$0xff]
        %v456 = vld [vmem:[%s452 + $0x18] sm:$0xff]
        %v457 = vld [vmem:[%s452 + $0x20] sm:$0xff]
        %v458 = vld [vmem:[%s452 + $0x28] sm:$0xff]
        %v459 = vld [vmem:[%s452 + $0x30] sm:$0xff]
        %v460 = vld [vmem:[%s452 + $0x38] sm:$0xff]
        %v461 = vld [vmem:[%s452 + $0x40] sm:$0xff]
        %v462 = vld [vmem:[%s452 + $0x48] sm:$0xff]
        %v463 = vld [vmem:[%s452 + $0x50] sm:$0xff]
        %v464 = vld [vmem:[%s452 + $0x58] sm:$0xff]
        %v465 = vld [vmem:[%s452 + $0x60] sm:$0xff]
        %v466 = vld [vmem:[%s452 + $0x68] sm:$0xff]
        %v467 = vld [vmem:[%s452 + $0x70] sm:$0xff]
        %v468 = vld [vmem:[%s452 + $0x78] sm:$0xff]
        %469 = vmatprep.subr.mxu0 0.0
        %470 = vmatpush1.msra.mxu0 %v453
        %471 = vmatprep.subr.mxu0 0.0
        %472 = vmatpush1.msra.mxu0 %v454
        %473 = vmatprep.subr.mxu0 0.0
        %474 = vmatpush1.msra.mxu0 %v455
        %475 = vmatprep.subr.mxu0 0.0
        %476 = vmatpush1.msra.mxu0 %v456
        %477 = vmatprep.subr.mxu0 0.0
        %478 = vmatpush1.msra.mxu0 %v457
        %479 = vmatprep.subr.mxu0 0.0
        %480 = vmatpush1.msra.mxu0 %v458
        %481 = vmatprep.subr.mxu0 0.0
        %482 = vmatpush1.msra.mxu0 %v459
        %483 = vmatprep.subr.mxu0 0.0
        %484 = vmatpush1.msra.mxu0 %v460
        %485 = vmatprep.subr.mxu0 0.0
        %486 = vmatpush1.msra.mxu0 %v461
        %487 = vmatprep.subr.mxu0 0.0
        %488 = vmatpush1.msra.mxu0 %v462
        %489 = vmatprep.subr.mxu0 0.0
        %490 = vmatpush1.msra.mxu0 %v463
        %491 = vmatprep.subr.mxu0 0.0
        %492 = vmatpush1.msra.mxu0 %v464
        %493 = vmatprep.subr.mxu0 0.0
        %494 = vmatpush1.msra.mxu0 %v465
        %495 = vmatprep.subr.mxu0 0.0
        %496 = vmatpush1.msra.mxu0 %v466
        %497 = vmatprep.subr.mxu0 0.0
        %498 = vmatpush1.msra.mxu0 %v467
        %499 = vmatprep.subr.mxu0 0.0
        %500 = vmatpush1.msra.mxu0 %v468
        %501 = vmatprep.subr.mxu0 0.0
        %502 = vmatpush1.msra.mxu0 0.0
        %503 = vmatprep.subr.mxu0 0.0
        %504 = vmatpush1.msra.mxu0 0.0
        %505 = vmatprep.subr.mxu0 0.0
        %506 = vmatpush1.msra.mxu0 0.0
        %507 = vmatprep.subr.mxu0 0.0
        %508 = vmatpush1.msra.mxu0 0.0
        %509 = vmatprep.subr.mxu0 0.0
        %510 = vmatpush1.msra.mxu0 0.0
        %511 = vmatprep.subr.mxu0 0.0
        %512 = vmatpush1.msra.mxu0 0.0
        %513 = vmatprep.subr.mxu0 0.0
        %514 = vmatpush1.msra.mxu0 0.0
        %515 = vmatprep.subr.mxu0 0.0
        %516 = vmatpush1.msra.mxu0 0.0
        %517 = vmatprep.subr.mxu0 0.0
        %518 = vmatpush1.msra.mxu0 0.0
        %519 = vmatprep.subr.mxu0 0.0
        %520 = vmatpush1.msra.mxu0 0.0
        %521 = vmatprep.subr.mxu0 0.0
        %522 = vmatpush1.msra.mxu0 0.0
        %523 = vmatprep.subr.mxu0 0.0
        %524 = vmatpush1.msra.mxu0 0.0
        %525 = vmatprep.subr.mxu0 0.0
        %526 = vmatpush1.msra.mxu0 0.0
        %527 = vmatprep.subr.mxu0 0.0
        %528 = vmatpush1.msra.mxu0 0.0
        %529 = vmatprep.subr.mxu0 0.0
        %530 = vmatpush1.msra.mxu0 0.0
        %531 = vmatprep.subr.mxu0 0.0
        %532 = vmatpush1.msra.mxu0 0.0
        %533 = vmatprep.mubr.f32.mxu0 0.0
        %534 = vmatmul.mubr.f32.gmra.mrb[0].mxu0 %v442
        %v535 = vpop.f32.mrb[0].mxu0
        %v536 = vadd.f32 0.0, %v535
        %v537 = vpop.f32.mrb[0].mxu0
        %538 = vmatprep.mubr.f32.mxu0 0.0
        %539 = vmatmul.mubr.f32.gmra.mrb[0].mxu0 %v448
        %v540 = vpop.f32.mrb[0].mxu0
        %v541 = vadd.f32 0.0, %v540
        %v542 = vpop.f32.mrb[0].mxu0
        %543 = vdwg.mxu0
        %544 = vmatprep.subr.mxu0 0.0
        %545 = vmatpush1.msra.mxu0 %v359
        %546 = vmatprep.subr.mxu0 0.0
        %547 = vmatpush1.msra.mxu0 %v360
        %548 = vmatprep.subr.mxu0 0.0
        %549 = vmatpush1.msra.mxu0 %v361
        %550 = vmatprep.subr.mxu0 0.0
        %551 = vmatpush1.msra.mxu0 %v362
        %552 = vmatprep.subr.mxu0 0.0
        %553 = vmatpush1.msra.mxu0 %v363
        %554 = vmatprep.subr.mxu0 0.0
        %555 = vmatpush1.msra.mxu0 %v364
        %556 = vmatprep.subr.mxu0 0.0
        %557 = vmatpush1.msra.mxu0 %v365
        %558 = vmatprep.subr.mxu0 0.0
        %559 = vmatpush1.msra.mxu0 %v366
        %560 = vmatprep.subr.mxu0 0.0
        %561 = vmatpush1.msra.mxu0 %v367
        %562 = vmatprep.subr.mxu0 0.0
        %563 = vmatpush1.msra.mxu0 %v368
        %564 = vmatprep.subr.mxu0 0.0
        %565 = vmatpush1.msra.mxu0 %v369
        %566 = vmatprep.subr.mxu0 0.0
        %567 = vmatpush1.msra.mxu0 %v370
        %568 = vmatprep.subr.mxu0 0.0
        %569 = vmatpush1.msra.mxu0 %v371
        %570 = vmatprep.subr.mxu0 0.0
        %571 = vmatpush1.msra.mxu0 %v372
        %572 = vmatprep.subr.mxu0 0.0
        %573 = vmatpush1.msra.mxu0 %v373
        %574 = vmatprep.subr.mxu0 0.0
        %575 = vmatpush1.msra.mxu0 %v374
        %576 = vmatprep.subr.mxu0 0.0
        %577 = vmatpush1.msra.mxu0 0.0
        %578 = vmatprep.subr.mxu0 0.0
        %579 = vmatpush1.msra.mxu0 0.0
        %580 = vmatprep.subr.mxu0 0.0
        %581 = vmatpush1.msra.mxu0 0.0
        %582 = vmatprep.subr.mxu0 0.0
        %583 = vmatpush1.msra.mxu0 0.0
        %584 = vmatprep.subr.mxu0 0.0
        %585 = vmatpush1.msra.mxu0 0.0
        %586 = vmatprep.subr.mxu0 0.0
        %587 = vmatpush1.msra.mxu0 0.0
        %588 = vmatprep.subr.mxu0 0.0
        %589 = vmatpush1.msra.mxu0 0.0
        %590 = vmatprep.subr.mxu0 0.0
        %591 = vmatpush1.msra.mxu0 0.0
        %592 = vmatprep.subr.mxu0 0.0
        %593 = vmatpush1.msra.mxu0 0.0
        %594 = vmatprep.subr.mxu0 0.0
        %595 = vmatpush1.msra.mxu0 0.0
        %596 = vmatprep.subr.mxu0 0.0
        %597 = vmatpush1.msra.mxu0 0.0
        %598 = vmatprep.subr.mxu0 0.0
        %599 = vmatpush1.msra.mxu0 0.0
        %600 = vmatprep.subr.mxu0 0.0
        %601 = vmatpush1.msra.mxu0 0.0
        %602 = vmatprep.subr.mxu0 0.0
        %603 = vmatpush1.msra.mxu0 0.0
        %604 = vmatprep.subr.mxu0 0.0
        %605 = vmatpush1.msra.mxu0 0.0
        %606 = vmatprep.subr.mxu0 0.0
        %607 = vmatpush1.msra.mxu0 0.0
        %608 = vmatprep.mubr.f32.mxu0 0.0
        %609 = vmatmul.mubr.f32.gmra.mrb[0].mxu0 %v348
        %v610 = vpop.f32.mrb[0].mxu0
        %v611 = vadd.f32 %v536, %v610
        %v612 = vpop.f32.mrb[0].mxu0
        %613 = vmatprep.mubr.f32.mxu0 0.0
        %614 = vmatmul.mubr.f32.gmra.mrb[0].mxu0 %v354
        %v615 = vpop.f32.mrb[0].mxu0
        %v616 = vadd.f32 %v541, %v615
        %v617 = vpop.f32.mrb[0].mxu0
        %618 = vdwg.mxu0
        %619 = vmatprep.subr.mxu0 0.0
        %620 = vmatpush1.msra.mxu0 %v453
        %621 = vmatprep.subr.mxu0 0.0
        %622 = vmatpush1.msra.mxu0 %v454
        %623 = vmatprep.subr.mxu0 0.0
        %624 = vmatpush1.msra.mxu0 %v455
        %625 = vmatprep.subr.mxu0 0.0
        %626 = vmatpush1.msra.mxu0 %v456
        %627 = vmatprep.subr.mxu0 0.0
        %628 = vmatpush1.msra.mxu0 %v457
        %629 = vmatprep.subr.mxu0 0.0
        %630 = vmatpush1.msra.mxu0 %v458
        %631 = vmatprep.subr.mxu0 0.0
        %632 = vmatpush1.msra.mxu0 %v459
        %633 = vmatprep.subr.mxu0 0.0
        %634 = vmatpush1.msra.mxu0 %v460
        %635 = vmatprep.subr.mxu0 0.0
        %636 = vmatpush1.msra.mxu0 %v461
        %637 = vmatprep.subr.mxu0 0.0
        %638 = vmatpush1.msra.mxu0 %v462
        %639 = vmatprep.subr.mxu0 0.0
        %640 = vmatpush1.msra.mxu0 %v463
        %641 = vmatprep.subr.mxu0 0.0
        %642 = vmatpush1.msra.mxu0 %v464
        %643 = vmatprep.subr.mxu0 0.0
        %644 = vmatpush1.msra.mxu0 %v465
        %645 = vmatprep.subr.mxu0 0.0
        %646 = vmatpush1.msra.mxu0 %v466
        %647 = vmatprep.subr.mxu0 0.0
        %648 = vmatpush1.msra.mxu0 %v467
        %649 = vmatprep.subr.mxu0 0.0
        %650 = vmatpush1.msra.mxu0 %v468
        %651 = vmatprep.subr.mxu0 0.0
        %652 = vmatpush1.msra.mxu0 0.0
        %653 = vmatprep.subr.mxu0 0.0
        %654 = vmatpush1.msra.mxu0 0.0
        %655 = vmatprep.subr.mxu0 0.0
        %656 = vmatpush1.msra.mxu0 0.0
        %657 = vmatprep.subr.mxu0 0.0
        %658 = vmatpush1.msra.mxu0 0.0
        %659 = vmatprep.subr.mxu0 0.0
        %660 = vmatpush1.msra.mxu0 0.0
        %661 = vmatprep.subr.mxu0 0.0
        %662 = vmatpush1.msra.mxu0 0.0
        %663 = vmatprep.subr.mxu0 0.0
        %664 = vmatpush1.msra.mxu0 0.0
        %665 = vmatprep.subr.mxu0 0.0
        %666 = vmatpush1.msra.mxu0 0.0
        %667 = vmatprep.subr.mxu0 0.0
        %668 = vmatpush1.msra.mxu0 0.0
        %669 = vmatprep.subr.mxu0 0.0
        %670 = vmatpush1.msra.mxu0 0.0
        %671 = vmatprep.subr.mxu0 0.0
        %672 = vmatpush1.msra.mxu0 0.0
        %673 = vmatprep.subr.mxu0 0.0
        %674 = vmatpush1.msra.mxu0 0.0
        %675 = vmatprep.subr.mxu0 0.0
        %676 = vmatpush1.msra.mxu0 0.0
        %677 = vmatprep.subr.mxu0 0.0
        %678 = vmatpush1.msra.mxu0 0.0
        %679 = vmatprep.subr.mxu0 0.0
        %680 = vmatpush1.msra.mxu0 0.0
        %681 = vmatprep.subr.mxu0 0.0
        %682 = vmatpush1.msra.mxu0 0.0
        %683 = vmatprep.mubr.f32.mxu0 0.0
        %684 = vmatmul.mubr.f32.gmra.mrb[0].mxu0 %v444
        %v685 = vpop.f32.mrb[0].mxu0
        %v686 = vadd.f32 0.0, %v685
        %v687 = vpop.f32.mrb[0].mxu0
        %688 = vmatprep.mubr.f32.mxu0 0.0
        %689 = vmatmul.mubr.f32.gmra.mrb[0].mxu0 %v450
        %v690 = vpop.f32.mrb[0].mxu0
        %v691 = vadd.f32 0.0, %v690
        %v692 = vpop.f32.mrb[0].mxu0
        %693 = vdwg.mxu0
        %694 = vmatprep.subr.mxu0 0.0
        %695 = vmatpush1.msra.mxu0 %v359
        %696 = vmatprep.subr.mxu0 0.0
        %697 = vmatpush1.msra.mxu0 %v360
        %698 = vmatprep.subr.mxu0 0.0
        %699 = vmatpush1.msra.mxu0 %v361
        %700 = vmatprep.subr.mxu0 0.0
        %701 = vmatpush1.msra.mxu0 %v362
        %702 = vmatprep.subr.mxu0 0.0
        %703 = vmatpush1.msra.mxu0 %v363
        %704 = vmatprep.subr.mxu0 0.0
        %705 = vmatpush1.msra.mxu0 %v364
        %706 = vmatprep.subr.mxu0 0.0
        %707 = vmatpush1.msra.mxu0 %v365
        %708 = vmatprep.subr.mxu0 0.0
        %709 = vmatpush1.msra.mxu0 %v366
        %710 = vmatprep.subr.mxu0 0.0
        %711 = vmatpush1.msra.mxu0 %v367
        %712 = vmatprep.subr.mxu0 0.0
        %713 = vmatpush1.msra.mxu0 %v368
        %714 = vmatprep.subr.mxu0 0.0
        %715 = vmatpush1.msra.mxu0 %v369
        %716 = vmatprep.subr.mxu0 0.0
        %717 = vmatpush1.msra.mxu0 %v370
        %718 = vmatprep.subr.mxu0 0.0
        %719 = vmatpush1.msra.mxu0 %v371
        %720 = vmatprep.subr.mxu0 0.0
        %721 = vmatpush1.msra.mxu0 %v372
        %722 = vmatprep.subr.mxu0 0.0
        %723 = vmatpush1.msra.mxu0 %v373
        %724 = vmatprep.subr.mxu0 0.0
        %725 = vmatpush1.msra.mxu0 %v374
        %726 = vmatprep.subr.mxu0 0.0
        %727 = vmatpush1.msra.mxu0 0.0
        %728 = vmatprep.subr.mxu0 0.0
        %729 = vmatpush1.msra.mxu0 0.0
        %730 = vmatprep.subr.mxu0 0.0
        %731 = vmatpush1.msra.mxu0 0.0
        %732 = vmatprep.subr.mxu0 0.0
        %733 = vmatpush1.msra.mxu0 0.0
        %734 = vmatprep.subr.mxu0 0.0
        %735 = vmatpush1.msra.mxu0 0.0
        %736 = vmatprep.subr.mxu0 0.0
        %737 = vmatpush1.msra.mxu0 0.0
        %738 = vmatprep.subr.mxu0 0.0
        %739 = vmatpush1.msra.mxu0 0.0
        %740 = vmatprep.subr.mxu0 0.0
        %741 = vmatpush1.msra.mxu0 0.0
        %742 = vmatprep.subr.mxu0 0.0
        %743 = vmatpush1.msra.mxu0 0.0
        %744 = vmatprep.subr.mxu0 0.0
        %745 = vmatpush1.msra.mxu0 0.0
        %746 = vmatprep.subr.mxu0 0.0
        %747 = vmatpush1.msra.mxu0 0.0
        %748 = vmatprep.subr.mxu0 0.0
        %749 = vmatpush1.msra.mxu0 0.0
        %750 = vmatprep.subr.mxu0 0.0
        %751 = vmatpush1.msra.mxu0 0.0
        %752 = vmatprep.subr.mxu0 0.0
        %753 = vmatpush1.msra.mxu0 0.0
        %754 = vmatprep.subr.mxu0 0.0
        %755 = vmatpush1.msra.mxu0 0.0
        %756 = vmatprep.subr.mxu0 0.0
        %757 = vmatpush1.msra.mxu0 0.0
        %758 = vmatprep.mubr.f32.mxu0 0.0
        %759 = vmatmul.mubr.f32.gmra.mrb[0].mxu0 %v350
        %v760 = vpop.f32.mrb[0].mxu0
        %v761 = vadd.f32 %v686, %v760
        %v762 = vpop.f32.mrb[0].mxu0
        %763 = vmatprep.mubr.f32.mxu0 0.0
        %764 = vmatmul.mubr.f32.gmra.mrb[0].mxu0 %v356
        %v765 = vpop.f32.mrb[0].mxu0
        %v766 = vadd.f32 %v691, %v765
        %v767 = vpop.f32.mrb[0].mxu0
        %768 = vdwg.mxu0
        %769 = vmatprep.subr.mxu0 0.0
        %770 = vmatpush1.msra.mxu0 %v256
        %771 = vmatprep.subr.mxu0 0.0
        %772 = vmatpush1.msra.mxu0 %v257
        %773 = vmatprep.subr.mxu0 0.0
        %774 = vmatpush1.msra.mxu0 %v258
        %775 = vmatprep.subr.mxu0 0.0
        %776 = vmatpush1.msra.mxu0 %v259
        %777 = vmatprep.subr.mxu0 0.0
        %778 = vmatpush1.msra.mxu0 %v260
        %779 = vmatprep.subr.mxu0 0.0
        %780 = vmatpush1.msra.mxu0 %v261
        %781 = vmatprep.subr.mxu0 0.0
        %782 = vmatpush1.msra.mxu0 %v262
        %783 = vmatprep.subr.mxu0 0.0
        %784 = vmatpush1.msra.mxu0 %v263
        %785 = vmatprep.subr.mxu0 0.0
        %786 = vmatpush1.msra.mxu0 %v264
        %787 = vmatprep.subr.mxu0 0.0
        %788 = vmatpush1.msra.mxu0 %v265
        %789 = vmatprep.subr.mxu0 0.0
        %790 = vmatpush1.msra.mxu0 %v266
        %791 = vmatprep.subr.mxu0 0.0
        %792 = vmatpush1.msra.mxu0 %v267
        %793 = vmatprep.subr.mxu0 0.0
        %794 = vmatpush1.msra.mxu0 %v268
        %795 = vmatprep.subr.mxu0 0.0
        %796 = vmatpush1.msra.mxu0 %v269
        %797 = vmatprep.subr.mxu0 0.0
        %798 = vmatpush1.msra.mxu0 %v270
        %799 = vmatprep.subr.mxu0 0.0
        %800 = vmatpush1.msra.mxu0 %v271
        %801 = vmatprep.subr.mxu0 0.0
        %802 = vmatpush1.msra.mxu0 0.0
        %803 = vmatprep.subr.mxu0 0.0
        %804 = vmatpush1.msra.mxu0 0.0
        %805 = vmatprep.subr.mxu0 0.0
        %806 = vmatpush1.msra.mxu0 0.0
        %807 = vmatprep.subr.mxu0 0.0
        %808 = vmatpush1.msra.mxu0 0.0
        %809 = vmatprep.subr.mxu0 0.0
        %810 = vmatpush1.msra.mxu0 0.0
        %811 = vmatprep.subr.mxu0 0.0
        %812 = vmatpush1.msra.mxu0 0.0
        %813 = vmatprep.subr.mxu0 0.0
        %814 = vmatpush1.msra.mxu0 0.0
        %815 = vmatprep.subr.mxu0 0.0
        %816 = vmatpush1.msra.mxu0 0.0
        %817 = vmatprep.subr.mxu0 0.0
        %818 = vmatpush1.msra.mxu0 0.0
        %819 = vmatprep.subr.mxu0 0.0
        %820 = vmatpush1.msra.mxu0 0.0
        %821 = vmatprep.subr.mxu0 0.0
        %822 = vmatpush1.msra.mxu0 0.0
        %823 = vmatprep.subr.mxu0 0.0
        %824 = vmatpush1.msra.mxu0 0.0
        %825 = vmatprep.subr.mxu0 0.0
        %826 = vmatpush1.msra.mxu0 0.0
        %827 = vmatprep.subr.mxu0 0.0
        %828 = vmatpush1.msra.mxu0 0.0
        %829 = vmatprep.subr.mxu0 0.0
        %830 = vmatpush1.msra.mxu0 0.0
        %831 = vmatprep.subr.mxu0 0.0
        %832 = vmatpush1.msra.mxu0 0.0
        %833 = vmatprep.mubr.f32.mxu0 0.0
        %834 = vmatmul.mubr.f32.gmra.mrb[0].mxu0 %v245
        %v835 = vpop.f32.mrb[0].mxu0
        %v836 = vadd.f32 %v611, %v835
        %v837 = vpop.f32.mrb[0].mxu0
        %838 = vmatprep.mubr.f32.mxu0 0.0
        %839 = vmatmul.mubr.f32.gmra.mrb[0].mxu0 %v247
        %v840 = vpop.f32.mrb[0].mxu0
        %v841 = vadd.f32 %v616, %v840
        %v842 = vpop.f32.mrb[0].mxu0
        %843 = vdwg.mxu0
        %844 = vmatprep.subr.mxu0 0.0
        %845 = vmatpush1.msra.mxu0 %v256
        %846 = vmatprep.subr.mxu0 0.0
        %847 = vmatpush1.msra.mxu0 %v257
        %848 = vmatprep.subr.mxu0 0.0
        %849 = vmatpush1.msra.mxu0 %v258
        %850 = vmatprep.subr.mxu0 0.0
        %851 = vmatpush1.msra.mxu0 %v259
        %852 = vmatprep.subr.mxu0 0.0
        %853 = vmatpush1.msra.mxu0 %v260
        %854 = vmatprep.subr.mxu0 0.0
        %855 = vmatpush1.msra.mxu0 %v261
        %856 = vmatprep.subr.mxu0 0.0
        %857 = vmatpush1.msra.mxu0 %v262
        %858 = vmatprep.subr.mxu0 0.0
        %859 = vmatpush1.msra.mxu0 %v263
        %860 = vmatprep.subr.mxu0 0.0
        %861 = vmatpush1.msra.mxu0 %v264
        %862 = vmatprep.subr.mxu0 0.0
        %863 = vmatpush1.msra.mxu0 %v265
        %864 = vmatprep.subr.mxu0 0.0
        %865 = vmatpush1.msra.mxu0 %v266
        %866 = vmatprep.subr.mxu0 0.0
        %867 = vmatpush1.msra.mxu0 %v267
        %868 = vmatprep.subr.mxu0 0.0
        %869 = vmatpush1.msra.mxu0 %v268
        %870 = vmatprep.subr.mxu0 0.0
        %871 = vmatpush1.msra.mxu0 %v269
        %872 = vmatprep.subr.mxu0 0.0
        %873 = vmatpush1.msra.mxu0 %v270
        %874 = vmatprep.subr.mxu0 0.0
        %875 = vmatpush1.msra.mxu0 %v271
        %876 = vmatprep.subr.mxu0 0.0
        %877 = vmatpush1.msra.mxu0 0.0
        %878 = vmatprep.subr.mxu0 0.0
        %879 = vmatpush1.msra.mxu0 0.0
        %880 = vmatprep.subr.mxu0 0.0
        %881 = vmatpush1.msra.mxu0 0.0
        %882 = vmatprep.subr.mxu0 0.0
        %883 = vmatpush1.msra.mxu0 0.0
        %884 = vmatprep.subr.mxu0 0.0
        %885 = vmatpush1.msra.mxu0 0.0
        %886 = vmatprep.subr.mxu0 0.0
        %887 = vmatpush1.msra.mxu0 0.0
        %888 = vmatprep.subr.mxu0 0.0
        %889 = vmatpush1.msra.mxu0 0.0
        %890 = vmatprep.subr.mxu0 0.0
        %891 = vmatpush1.msra.mxu0 0.0
        %892 = vmatprep.subr.mxu0 0.0
        %893 = vmatpush1.msra.mxu0 0.0
        %894 = vmatprep.subr.mxu0 0.0
        %895 = vmatpush1.msra.mxu0 0.0
        %896 = vmatprep.subr.mxu0 0.0
        %897 = vmatpush1.msra.mxu0 0.0
        %898 = vmatprep.subr.mxu0 0.0
        %899 = vmatpush1.msra.mxu0 0.0
        %900 = vmatprep.subr.mxu0 0.0
        %901 = vmatpush1.msra.mxu0 0.0
        %902 = vmatprep.subr.mxu0 0.0
        %903 = vmatpush1.msra.mxu0 0.0
        %904 = vmatprep.subr.mxu0 0.0
        %905 = vmatpush1.msra.mxu0 0.0
        %906 = vmatprep.subr.mxu0 0.0
        %907 = vmatpush1.msra.mxu0 0.0
        %908 = vmatprep.mubr.f32.mxu0 0.0
        %909 = vmatmul.mubr.f32.gmra.mrb[0].mxu0 %v246
        %v910 = vpop.f32.mrb[0].mxu0
        %v911 = vadd.f32 %v761, %v910
        %v912 = vpop.f32.mrb[0].mxu0
        %913 = vmatprep.mubr.f32.mxu0 0.0
        %914 = vmatmul.mubr.f32.gmra.mrb[0].mxu0 %v248
        %v915 = vpop.f32.mrb[0].mxu0
        %v916 = vadd.f32 %v766, %v915
        %v917 = vpop.f32.mrb[0].mxu0
        %918 = vdwg.mxu0
        %s919 = scalar_lea.vmem [#allocation5], 16
        %v920 = vld [vmem:[%s919] sm:$0xff]
        %v921 = vld [vmem:[%s919 + $0x8] sm:$0xff]
        %v923 = vsel %vm274, %v920, 0
        %v926 = vsel %vm274, %v921, 0
        %928 = vmatprep.subr.mxu0 %v246
        %929 = vmatpush1.msra.mxu0 %v245
        %930 = vmatprep.subr.mxu0 %v248
        %931 = vmatpush1.msra.mxu0 %v247
        %932 = vmatprep.subr.mxu0 0.0
        %933 = vmatpush1.msra.mxu0 0.0
        %934 = vmatprep.subr.mxu0 0.0
        %935 = vmatpush1.msra.mxu0 0.0
        %936 = vmatprep.subr.mxu0 0.0
        %937 = vmatpush1.msra.mxu0 0.0
        %938 = vmatprep.subr.mxu0 0.0
        %939 = vmatpush1.msra.mxu0 0.0
        %940 = vmatprep.subr.mxu0 0.0
        %941 = vmatpush1.msra.mxu0 0.0
        %942 = vmatprep.subr.mxu0 0.0
        %943 = vmatpush1.msra.mxu0 0.0
        %944 = vmatprep.subr.mxu0 0.0
        %945 = vmatpush1.msra.mxu0 0.0
        %946 = vmatprep.subr.mxu0 0.0
        %947 = vmatpush1.msra.mxu0 0.0
        %948 = vmatprep.subr.mxu0 0.0
        %949 = vmatpush1.msra.mxu0 0.0
        %950 = vmatprep.subr.mxu0 0.0
        %951 = vmatpush1.msra.mxu0 0.0
        %952 = vmatprep.subr.mxu0 0.0
        %953 = vmatpush1.msra.mxu0 0.0
        %954 = vmatprep.subr.mxu0 0.0
        %955 = vmatpush1.msra.mxu0 0.0
        %956 = vmatprep.subr.mxu0 0.0
        %957 = vmatpush1.msra.mxu0 0.0
        %958 = vmatprep.subr.mxu0 0.0
        %959 = vmatpush1.msra.mxu0 0.0
        %960 = vmatprep.subr.mxu0 0.0
        %961 = vmatpush1.msra.mxu0 0.0
        %962 = vmatprep.subr.mxu0 0.0
        %963 = vmatpush1.msra.mxu0 0.0
        %964 = vmatprep.subr.mxu0 0.0
        %965 = vmatpush1.msra.mxu0 0.0
        %966 = vmatprep.subr.mxu0 0.0
        %967 = vmatpush1.msra.mxu0 0.0
        %968 = vmatprep.subr.mxu0 0.0
        %969 = vmatpush1.msra.mxu0 0.0
        %970 = vmatprep.subr.mxu0 0.0
        %971 = vmatpush1.msra.mxu0 0.0
        %972 = vmatprep.subr.mxu0 0.0
        %973 = vmatpush1.msra.mxu0 0.0
        %974 = vmatprep.subr.mxu0 0.0
        %975 = vmatpush1.msra.mxu0 0.0
        %976 = vmatprep.subr.mxu0 0.0
        %977 = vmatpush1.msra.mxu0 0.0
        %978 = vmatprep.subr.mxu0 0.0
        %979 = vmatpush1.msra.mxu0 0.0
        %980 = vmatprep.subr.mxu0 0.0
        %981 = vmatpush1.msra.mxu0 0.0
        %982 = vmatprep.subr.mxu0 0.0
        %983 = vmatpush1.msra.mxu0 0.0
        %984 = vmatprep.subr.mxu0 0.0
        %985 = vmatpush1.msra.mxu0 0.0
        %986 = vmatprep.subr.mxu0 0.0
        %987 = vmatpush1.msra.mxu0 0.0
        %988 = vmatprep.subr.mxu0 0.0
        %989 = vmatpush1.msra.mxu0 0.0
        %990 = vmatprep.subr.mxu0 0.0
        %991 = vmatpush1.msra.mxu0 0.0
        %992 = vmatprep.mubr.f32.mxu0 0.0
        %993 = vmatmul.mubr.f32.gmra.mrb[0].mxu0 %v923
        %v994 = vpop.f32.mrb[0].mxu0
        %v995 = vadd.f32 0.0, %v994
        %v996 = vpop.f32.mrb[0].mxu0
        %v997 = vadd.f32 0.0, %v996
        %998 = vmatprep.mubr.f32.mxu0 0.0
        %999 = vmatmul.mubr.f32.gmra.mrb[0].mxu0 %v926
        %v1000 = vpop.f32.mrb[0].mxu0
        %v1001 = vadd.f32 0.0, %v1000
        %v1002 = vpop.f32.mrb[0].mxu0
        %v1003 = vadd.f32 0.0, %v1002
        %1004 = vdwg.mxu0
        %s1005 = scalar_lea.vmem [#allocation7], 384
        %v1006 = vld [vmem:[%s1005] sm:$0xff]
        %v1007 = vld [vmem:[%s1005 + $0x8] sm:$0xff]
        %v1008 = vld [vmem:[%s1005 + $0x10] sm:$0xff]
        %v1009 = vld [vmem:[%s1005 + $0x18] sm:$0xff]
        %v1010 = vld [vmem:[%s1005 + $0x20] sm:$0xff]
        %v1011 = vld [vmem:[%s1005 + $0x28] sm:$0xff]
        %v1012 = vld [vmem:[%s1005 + $0x30] sm:$0xff]
        %v1013 = vld [vmem:[%s1005 + $0x38] sm:$0xff]
        %v1014 = vld [vmem:[%s1005 + $0x40] sm:$0xff]
        %v1015 = vld [vmem:[%s1005 + $0x48] sm:$0xff]
        %v1016 = vld [vmem:[%s1005 + $0x50] sm:$0xff]
        %v1017 = vld [vmem:[%s1005 + $0x58] sm:$0xff]
        %v1018 = vld [vmem:[%s1005 + $0x60] sm:$0xff]
        %v1019 = vld [vmem:[%s1005 + $0x68] sm:$0xff]
        %v1020 = vld [vmem:[%s1005 + $0x70] sm:$0xff]
        %v1021 = vld [vmem:[%s1005 + $0x78] sm:$0xff]
        %1022 = vmatprep.subr.mxu0 %v997
        %1023 = vmatpush1.msra.mxu0 %v995
        %1024 = vmatprep.subr.mxu0 %v1003
        %1025 = vmatpush1.msra.mxu0 %v1001
        %1026 = vmatprep.subr.mxu0 0.0
        %1027 = vmatpush1.msra.mxu0 0.0
        %1028 = vmatprep.subr.mxu0 0.0
        %1029 = vmatpush1.msra.mxu0 0.0
        %1030 = vmatprep.subr.mxu0 0.0
        %1031 = vmatpush1.msra.mxu0 0.0
        %1032 = vmatprep.subr.mxu0 0.0
        %1033 = vmatpush1.msra.mxu0 0.0
        %1034 = vmatprep.subr.mxu0 0.0
        %1035 = vmatpush1.msra.mxu0 0.0
        %1036 = vmatprep.subr.mxu0 0.0
        %1037 = vmatpush1.msra.mxu0 0.0
        %1038 = vmatprep.subr.mxu0 0.0
        %1039 = vmatpush1.msra.mxu0 0.0
        %1040 = vmatprep.subr.mxu0 0.0
        %1041 = vmatpush1.msra.mxu0 0.0
        %1042 = vmatprep.subr.mxu0 0.0
        %1043 = vmatpush1.msra.mxu0 0.0
        %1044 = vmatprep.subr.mxu0 0.0
        %1045 = vmatpush1.msra.mxu0 0.0
        %1046 = vmatprep.subr.mxu0 0.0
        %1047 = vmatpush1.msra.mxu0 0.0
        %1048 = vmatprep.subr.mxu0 0.0
        %1049 = vmatpush1.msra.mxu0 0.0
        %1050 = vmatprep.subr.mxu0 0.0
        %1051 = vmatpush1.msra.mxu0 0.0
        %1052 = vmatprep.subr.mxu0 0.0
        %1053 = vmatpush1.msra.mxu0 0.0
        %1054 = vmatprep.subr.mxu0 0.0
        %1055 = vmatpush1.msra.mxu0 0.0
        %1056 = vmatprep.subr.mxu0 0.0
        %1057 = vmatpush1.msra.mxu0 0.0
        %1058 = vmatprep.subr.mxu0 0.0
        %1059 = vmatpush1.msra.mxu0 0.0
        %1060 = vmatprep.subr.mxu0 0.0
        %1061 = vmatpush1.msra.mxu0 0.0
        %1062 = vmatprep.subr.mxu0 0.0
        %1063 = vmatpush1.msra.mxu0 0.0
        %1064 = vmatprep.subr.mxu0 0.0
        %1065 = vmatpush1.msra.mxu0 0.0
        %1066 = vmatprep.subr.mxu0 0.0
        %1067 = vmatpush1.msra.mxu0 0.0
        %1068 = vmatprep.subr.mxu0 0.0
        %1069 = vmatpush1.msra.mxu0 0.0
        %1070 = vmatprep.subr.mxu0 0.0
        %1071 = vmatpush1.msra.mxu0 0.0
        %1072 = vmatprep.subr.mxu0 0.0
        %1073 = vmatpush1.msra.mxu0 0.0
        %1074 = vmatprep.subr.mxu0 0.0
        %1075 = vmatpush1.msra.mxu0 0.0
        %1076 = vmatprep.subr.mxu0 0.0
        %1077 = vmatpush1.msra.mxu0 0.0
        %1078 = vmatprep.subr.mxu0 0.0
        %1079 = vmatpush1.msra.mxu0 0.0
        %1080 = vmatprep.subr.mxu0 0.0
        %1081 = vmatpush1.msra.mxu0 0.0
        %1082 = vmatprep.subr.mxu0 0.0
        %1083 = vmatpush1.msra.mxu0 0.0
        %1084 = vmatprep.subr.mxu0 0.0
        %1085 = vmatpush1.msra.mxu0 0.0
        %1086 = vmatprep.mubr.f32.mxu0 0.0
        %1087 = vmatmul.mubr.f32.gmra.mrb[0].mxu0 %v923
        %v1088 = vpop.f32.mrb[0].mxu0
        %v1089 = vadd.f32 0.0, %v1088
        %v1090 = vpop.f32.mrb[0].mxu0
        %v1091 = vadd.f32 0.0, %v1090
        %1092 = vmatprep.mubr.f32.mxu0 0.0
        %1093 = vmatmul.mubr.f32.gmra.mrb[0].mxu0 %v926
        %v1094 = vpop.f32.mrb[0].mxu0
        %v1095 = vadd.f32 0.0, %v1094
        %v1096 = vpop.f32.mrb[0].mxu0
        %v1097 = vadd.f32 0.0, %v1096
        %1098 = vdwg.mxu0
        %s1099 = scalar_lea.vmem [#allocation7], 512
        %v1100 = vld [vmem:[%s1099] sm:$0xff]
        %v1101 = vld [vmem:[%s1099 + $0x8] sm:$0xff]
        %v1102 = vld [vmem:[%s1099 + $0x10] sm:$0xff]
        %v1103 = vld [vmem:[%s1099 + $0x18] sm:$0xff]
        %v1104 = vld [vmem:[%s1099 + $0x20] sm:$0xff]
        %v1105 = vld [vmem:[%s1099 + $0x28] sm:$0xff]
        %v1106 = vld [vmem:[%s1099 + $0x30] sm:$0xff]
        %v1107 = vld [vmem:[%s1099 + $0x38] sm:$0xff]
        %v1108 = vld [vmem:[%s1099 + $0x40] sm:$0xff]
        %v1109 = vld [vmem:[%s1099 + $0x48] sm:$0xff]
        %v1110 = vld [vmem:[%s1099 + $0x50] sm:$0xff]
        %v1111 = vld [vmem:[%s1099 + $0x58] sm:$0xff]
        %v1112 = vld [vmem:[%s1099 + $0x60] sm:$0xff]
        %v1113 = vld [vmem:[%s1099 + $0x68] sm:$0xff]
        %v1114 = vld [vmem:[%s1099 + $0x70] sm:$0xff]
        %v1115 = vld [vmem:[%s1099 + $0x78] sm:$0xff]
        %1116 = vmatprep.subr.mxu0 0.0
        %1117 = vmatpush1.msra.mxu0 %v1100
        %1118 = vmatprep.subr.mxu0 0.0
        %1119 = vmatpush1.msra.mxu0 %v1101
        %1120 = vmatprep.subr.mxu0 0.0
        %1121 = vmatpush1.msra.mxu0 %v1102
        %1122 = vmatprep.subr.mxu0 0.0
        %1123 = vmatpush1.msra.mxu0 %v1103
        %1124 = vmatprep.subr.mxu0 0.0
        %1125 = vmatpush1.msra.mxu0 %v1104
        %1126 = vmatprep.subr.mxu0 0.0
        %1127 = vmatpush1.msra.mxu0 %v1105
        %1128 = vmatprep.subr.mxu0 0.0
        %1129 = vmatpush1.msra.mxu0 %v1106
        %1130 = vmatprep.subr.mxu0 0.0
        %1131 = vmatpush1.msra.mxu0 %v1107
        %1132 = vmatprep.subr.mxu0 0.0
        %1133 = vmatpush1.msra.mxu0 %v1108
        %1134 = vmatprep.subr.mxu0 0.0
        %1135 = vmatpush1.msra.mxu0 %v1109
        %1136 = vmatprep.subr.mxu0 0.0
        %1137 = vmatpush1.msra.mxu0 %v1110
        %1138 = vmatprep.subr.mxu0 0.0
        %1139 = vmatpush1.msra.mxu0 %v1111
        %1140 = vmatprep.subr.mxu0 0.0
        %1141 = vmatpush1.msra.mxu0 %v1112
        %1142 = vmatprep.subr.mxu0 0.0
        %1143 = vmatpush1.msra.mxu0 %v1113
        %1144 = vmatprep.subr.mxu0 0.0
        %1145 = vmatpush1.msra.mxu0 %v1114
        %1146 = vmatprep.subr.mxu0 0.0
        %1147 = vmatpush1.msra.mxu0 %v1115
        %1148 = vmatprep.subr.mxu0 0.0
        %1149 = vmatpush1.msra.mxu0 0.0
        %1150 = vmatprep.subr.mxu0 0.0
        %1151 = vmatpush1.msra.mxu0 0.0
        %1152 = vmatprep.subr.mxu0 0.0
        %1153 = vmatpush1.msra.mxu0 0.0
        %1154 = vmatprep.subr.mxu0 0.0
        %1155 = vmatpush1.msra.mxu0 0.0
        %1156 = vmatprep.subr.mxu0 0.0
        %1157 = vmatpush1.msra.mxu0 0.0
        %1158 = vmatprep.subr.mxu0 0.0
        %1159 = vmatpush1.msra.mxu0 0.0
        %1160 = vmatprep.subr.mxu0 0.0
        %1161 = vmatpush1.msra.mxu0 0.0
        %1162 = vmatprep.subr.mxu0 0.0
        %1163 = vmatpush1.msra.mxu0 0.0
        %1164 = vmatprep.subr.mxu0 0.0
        %1165 = vmatpush1.msra.mxu0 0.0
        %1166 = vmatprep.subr.mxu0 0.0
        %1167 = vmatpush1.msra.mxu0 0.0
        %1168 = vmatprep.subr.mxu0 0.0
        %1169 = vmatpush1.msra.mxu0 0.0
        %1170 = vmatprep.subr.mxu0 0.0
        %1171 = vmatpush1.msra.mxu0 0.0
        %1172 = vmatprep.subr.mxu0 0.0
        %1173 = vmatpush1.msra.mxu0 0.0
        %1174 = vmatprep.subr.mxu0 0.0
        %1175 = vmatpush1.msra.mxu0 0.0
        %1176 = vmatprep.subr.mxu0 0.0
        %1177 = vmatpush1.msra.mxu0 0.0
        %1178 = vmatprep.subr.mxu0 0.0
        %1179 = vmatpush1.msra.mxu0 0.0
        %1180 = vmatprep.mubr.f32.mxu0 0.0
        %1181 = vmatmul.mubr.f32.gmra.mrb[0].mxu0 %v1089
        %v1182 = vpop.f32.mrb[0].mxu0
        %v1183 = vadd.f32 0.0, %v1182
        %v1184 = vpop.f32.mrb[0].mxu0
        %1185 = vmatprep.mubr.f32.mxu0 0.0
        %1186 = vmatmul.mubr.f32.gmra.mrb[0].mxu0 %v1095
        %v1187 = vpop.f32.mrb[0].mxu0
        %v1188 = vadd.f32 0.0, %v1187
        %v1189 = vpop.f32.mrb[0].mxu0
        %1190 = vdwg.mxu0
        %1191 = vmatprep.subr.mxu0 0.0
        %1192 = vmatpush1.msra.mxu0 %v1006
        %1193 = vmatprep.subr.mxu0 0.0
        %1194 = vmatpush1.msra.mxu0 %v1007
        %1195 = vmatprep.subr.mxu0 0.0
        %1196 = vmatpush1.msra.mxu0 %v1008
        %1197 = vmatprep.subr.mxu0 0.0
        %1198 = vmatpush1.msra.mxu0 %v1009
        %1199 = vmatprep.subr.mxu0 0.0
        %1200 = vmatpush1.msra.mxu0 %v1010
        %1201 = vmatprep.subr.mxu0 0.0
        %1202 = vmatpush1.msra.mxu0 %v1011
        %1203 = vmatprep.subr.mxu0 0.0
        %1204 = vmatpush1.msra.mxu0 %v1012
        %1205 = vmatprep.subr.mxu0 0.0
        %1206 = vmatpush1.msra.mxu0 %v1013
        %1207 = vmatprep.subr.mxu0 0.0
        %1208 = vmatpush1.msra.mxu0 %v1014
        %1209 = vmatprep.subr.mxu0 0.0
        %1210 = vmatpush1.msra.mxu0 %v1015
        %1211 = vmatprep.subr.mxu0 0.0
        %1212 = vmatpush1.msra.mxu0 %v1016
        %1213 = vmatprep.subr.mxu0 0.0
        %1214 = vmatpush1.msra.mxu0 %v1017
        %1215 = vmatprep.subr.mxu0 0.0
        %1216 = vmatpush1.msra.mxu0 %v1018
        %1217 = vmatprep.subr.mxu0 0.0
        %1218 = vmatpush1.msra.mxu0 %v1019
        %1219 = vmatprep.subr.mxu0 0.0
        %1220 = vmatpush1.msra.mxu0 %v1020
        %1221 = vmatprep.subr.mxu0 0.0
        %1222 = vmatpush1.msra.mxu0 %v1021
        %1223 = vmatprep.subr.mxu0 0.0
        %1224 = vmatpush1.msra.mxu0 0.0
        %1225 = vmatprep.subr.mxu0 0.0
        %1226 = vmatpush1.msra.mxu0 0.0
        %1227 = vmatprep.subr.mxu0 0.0
        %1228 = vmatpush1.msra.mxu0 0.0
        %1229 = vmatprep.subr.mxu0 0.0
        %1230 = vmatpush1.msra.mxu0 0.0
        %1231 = vmatprep.subr.mxu0 0.0
        %1232 = vmatpush1.msra.mxu0 0.0
        %1233 = vmatprep.subr.mxu0 0.0
        %1234 = vmatpush1.msra.mxu0 0.0
        %1235 = vmatprep.subr.mxu0 0.0
        %1236 = vmatpush1.msra.mxu0 0.0
        %1237 = vmatprep.subr.mxu0 0.0
        %1238 = vmatpush1.msra.mxu0 0.0
        %1239 = vmatprep.subr.mxu0 0.0
        %1240 = vmatpush1.msra.mxu0 0.0
        %1241 = vmatprep.subr.mxu0 0.0
        %1242 = vmatpush1.msra.mxu0 0.0
        %1243 = vmatprep.subr.mxu0 0.0
        %1244 = vmatpush1.msra.mxu0 0.0
        %1245 = vmatprep.subr.mxu0 0.0
        %1246 = vmatpush1.msra.mxu0 0.0
        %1247 = vmatprep.subr.mxu0 0.0
        %1248 = vmatpush1.msra.mxu0 0.0
        %1249 = vmatprep.subr.mxu0 0.0
        %1250 = vmatpush1.msra.mxu0 0.0
        %1251 = vmatprep.subr.mxu0 0.0
        %1252 = vmatpush1.msra.mxu0 0.0
        %1253 = vmatprep.subr.mxu0 0.0
        %1254 = vmatpush1.msra.mxu0 0.0
        %1255 = vmatprep.mubr.f32.mxu0 0.0
        %1256 = vmatmul.mubr.f32.gmra.mrb[0].mxu0 %v995
        %v1257 = vpop.f32.mrb[0].mxu0
        %v1258 = vadd.f32 %v1183, %v1257
        %v1259 = vpop.f32.mrb[0].mxu0
        %1260 = vmatprep.mubr.f32.mxu0 0.0
        %1261 = vmatmul.mubr.f32.gmra.mrb[0].mxu0 %v1001
        %v1262 = vpop.f32.mrb[0].mxu0
        %v1263 = vadd.f32 %v1188, %v1262
        %v1264 = vpop.f32.mrb[0].mxu0
        %1265 = vdwg.mxu0
        %1266 = vmatprep.subr.mxu0 0.0
        %1267 = vmatpush1.msra.mxu0 %v1100
        %1268 = vmatprep.subr.mxu0 0.0
        %1269 = vmatpush1.msra.mxu0 %v1101
        %1270 = vmatprep.subr.mxu0 0.0
        %1271 = vmatpush1.msra.mxu0 %v1102
        %1272 = vmatprep.subr.mxu0 0.0
        %1273 = vmatpush1.msra.mxu0 %v1103
        %1274 = vmatprep.subr.mxu0 0.0
        %1275 = vmatpush1.msra.mxu0 %v1104
        %1276 = vmatprep.subr.mxu0 0.0
        %1277 = vmatpush1.msra.mxu0 %v1105
        %1278 = vmatprep.subr.mxu0 0.0
        %1279 = vmatpush1.msra.mxu0 %v1106
        %1280 = vmatprep.subr.mxu0 0.0
        %1281 = vmatpush1.msra.mxu0 %v1107
        %1282 = vmatprep.subr.mxu0 0.0
        %1283 = vmatpush1.msra.mxu0 %v1108
        %1284 = vmatprep.subr.mxu0 0.0
        %1285 = vmatpush1.msra.mxu0 %v1109
        %1286 = vmatprep.subr.mxu0 0.0
        %1287 = vmatpush1.msra.mxu0 %v1110
        %1288 = vmatprep.subr.mxu0 0.0
        %1289 = vmatpush1.msra.mxu0 %v1111
        %1290 = vmatprep.subr.mxu0 0.0
        %1291 = vmatpush1.msra.mxu0 %v1112
        %1292 = vmatprep.subr.mxu0 0.0
        %1293 = vmatpush1.msra.mxu0 %v1113
        %1294 = vmatprep.subr.mxu0 0.0
        %1295 = vmatpush1.msra.mxu0 %v1114
        %1296 = vmatprep.subr.mxu0 0.0
        %1297 = vmatpush1.msra.mxu0 %v1115
        %1298 = vmatprep.subr.mxu0 0.0
        %1299 = vmatpush1.msra.mxu0 0.0
        %1300 = vmatprep.subr.mxu0 0.0
        %1301 = vmatpush1.msra.mxu0 0.0
        %1302 = vmatprep.subr.mxu0 0.0
        %1303 = vmatpush1.msra.mxu0 0.0
        %1304 = vmatprep.subr.mxu0 0.0
        %1305 = vmatpush1.msra.mxu0 0.0
        %1306 = vmatprep.subr.mxu0 0.0
        %1307 = vmatpush1.msra.mxu0 0.0
        %1308 = vmatprep.subr.mxu0 0.0
        %1309 = vmatpush1.msra.mxu0 0.0
        %1310 = vmatprep.subr.mxu0 0.0
        %1311 = vmatpush1.msra.mxu0 0.0
        %1312 = vmatprep.subr.mxu0 0.0
        %1313 = vmatpush1.msra.mxu0 0.0
        %1314 = vmatprep.subr.mxu0 0.0
        %1315 = vmatpush1.msra.mxu0 0.0
        %1316 = vmatprep.subr.mxu0 0.0
        %1317 = vmatpush1.msra.mxu0 0.0
        %1318 = vmatprep.subr.mxu0 0.0
        %1319 = vmatpush1.msra.mxu0 0.0
        %1320 = vmatprep.subr.mxu0 0.0
        %1321 = vmatpush1.msra.mxu0 0.0
        %1322 = vmatprep.subr.mxu0 0.0
        %1323 = vmatpush1.msra.mxu0 0.0
        %1324 = vmatprep.subr.mxu0 0.0
        %1325 = vmatpush1.msra.mxu0 0.0
        %1326 = vmatprep.subr.mxu0 0.0
        %1327 = vmatpush1.msra.mxu0 0.0
        %1328 = vmatprep.subr.mxu0 0.0
        %1329 = vmatpush1.msra.mxu0 0.0
        %1330 = vmatprep.mubr.f32.mxu0 0.0
        %1331 = vmatmul.mubr.f32.gmra.mrb[0].mxu0 %v1091
        %v1332 = vpop.f32.mrb[0].mxu0
        %v1333 = vadd.f32 0.0, %v1332
        %v1334 = vpop.f32.mrb[0].mxu0
        %1335 = vmatprep.mubr.f32.mxu0 0.0
        %1336 = vmatmul.mubr.f32.gmra.mrb[0].mxu0 %v1097
        %v1337 = vpop.f32.mrb[0].mxu0
        %v1338 = vadd.f32 0.0, %v1337
        %v1339 = vpop.f32.mrb[0].mxu0
        %1340 = vdwg.mxu0
        %1341 = vmatprep.subr.mxu0 0.0
        %1342 = vmatpush1.msra.mxu0 %v1006
        %1343 = vmatprep.subr.mxu0 0.0
        %1344 = vmatpush1.msra.mxu0 %v1007
        %1345 = vmatprep.subr.mxu0 0.0
        %1346 = vmatpush1.msra.mxu0 %v1008
        %1347 = vmatprep.subr.mxu0 0.0
        %1348 = vmatpush1.msra.mxu0 %v1009
        %1349 = vmatprep.subr.mxu0 0.0
        %1350 = vmatpush1.msra.mxu0 %v1010
        %1351 = vmatprep.subr.mxu0 0.0
        %1352 = vmatpush1.msra.mxu0 %v1011
        %1353 = vmatprep.subr.mxu0 0.0
        %1354 = vmatpush1.msra.mxu0 %v1012
        %1355 = vmatprep.subr.mxu0 0.0
        %1356 = vmatpush1.msra.mxu0 %v1013
        %1357 = vmatprep.subr.mxu0 0.0
        %1358 = vmatpush1.msra.mxu0 %v1014
        %1359 = vmatprep.subr.mxu0 0.0
        %1360 = vmatpush1.msra.mxu0 %v1015
        %1361 = vmatprep.subr.mxu0 0.0
        %1362 = vmatpush1.msra.mxu0 %v1016
        %1363 = vmatprep.subr.mxu0 0.0
        %1364 = vmatpush1.msra.mxu0 %v1017
        %1365 = vmatprep.subr.mxu0 0.0
        %1366 = vmatpush1.msra.mxu0 %v1018
        %1367 = vmatprep.subr.mxu0 0.0
        %1368 = vmatpush1.msra.mxu0 %v1019
        %1369 = vmatprep.subr.mxu0 0.0
        %1370 = vmatpush1.msra.mxu0 %v1020
        %1371 = vmatprep.subr.mxu0 0.0
        %1372 = vmatpush1.msra.mxu0 %v1021
        %1373 = vmatprep.subr.mxu0 0.0
        %1374 = vmatpush1.msra.mxu0 0.0
        %1375 = vmatprep.subr.mxu0 0.0
        %1376 = vmatpush1.msra.mxu0 0.0
        %1377 = vmatprep.subr.mxu0 0.0
        %1378 = vmatpush1.msra.mxu0 0.0
        %1379 = vmatprep.subr.mxu0 0.0
        %1380 = vmatpush1.msra.mxu0 0.0
        %1381 = vmatprep.subr.mxu0 0.0
        %1382 = vmatpush1.msra.mxu0 0.0
        %1383 = vmatprep.subr.mxu0 0.0
        %1384 = vmatpush1.msra.mxu0 0.0
        %1385 = vmatprep.subr.mxu0 0.0
        %1386 = vmatpush1.msra.mxu0 0.0
        %1387 = vmatprep.subr.mxu0 0.0
        %1388 = vmatpush1.msra.mxu0 0.0
        %1389 = vmatprep.subr.mxu0 0.0
        %1390 = vmatpush1.msra.mxu0 0.0
        %1391 = vmatprep.subr.mxu0 0.0
        %1392 = vmatpush1.msra.mxu0 0.0
        %1393 = vmatprep.subr.mxu0 0.0
        %1394 = vmatpush1.msra.mxu0 0.0
        %1395 = vmatprep.subr.mxu0 0.0
        %1396 = vmatpush1.msra.mxu0 0.0
        %1397 = vmatprep.subr.mxu0 0.0
        %1398 = vmatpush1.msra.mxu0 0.0
        %1399 = vmatprep.subr.mxu0 0.0
        %1400 = vmatpush1.msra.mxu0 0.0
        %1401 = vmatprep.subr.mxu0 0.0
        %1402 = vmatpush1.msra.mxu0 0.0
        %1403 = vmatprep.subr.mxu0 0.0
        %1404 = vmatpush1.msra.mxu0 0.0
        %1405 = vmatprep.mubr.f32.mxu0 0.0
        %1406 = vmatmul.mubr.f32.gmra.mrb[0].mxu0 %v997
        %v1407 = vpop.f32.mrb[0].mxu0
        %v1408 = vadd.f32 %v1333, %v1407
        %v1409 = vpop.f32.mrb[0].mxu0
        %1410 = vmatprep.mubr.f32.mxu0 0.0
        %1411 = vmatmul.mubr.f32.gmra.mrb[0].mxu0 %v1003
        %v1412 = vpop.f32.mrb[0].mxu0
        %v1413 = vadd.f32 %v1338, %v1412
        %v1414 = vpop.f32.mrb[0].mxu0
        %1415 = vdwg.mxu0
        %v1416 = vadd.f32 %v836, %v1258
        %v1417 = vadd.f32 %v841, %v1263
        %v1418 = vadd.f32 %v911, %v1408
        %v1419 = vadd.f32 %v916, %v1413
        %s1420 = scalar_lea.vmem [#allocation5], 32
        %v1421 = vld [vmem:[%s1420] sm:$0xff]
        %v1422 = vld [vmem:[%s1420 + $0x8] sm:$0xff]
        %v1424 = vsel %vm274, %v1421, 0
        %v1427 = vsel %vm274, %v1422, 0
        %1429 = vmatprep.subr.mxu0 %v246
        %1430 = vmatpush1.msra.mxu0 %v245
        %1431 = vmatprep.subr.mxu0 %v248
        %1432 = vmatpush1.msra.mxu0 %v247
        %1433 = vmatprep.subr.mxu0 0.0
        %1434 = vmatpush1.msra.mxu0 0.0
        %1435 = vmatprep.subr.mxu0 0.0
        %1436 = vmatpush1.msra.mxu0 0.0
        %1437 = vmatprep.subr.mxu0 0.0
        %1438 = vmatpush1.msra.mxu0 0.0
        %1439 = vmatprep.subr.mxu0 0.0
        %1440 = vmatpush1.msra.mxu0 0.0
        %1441 = vmatprep.subr.mxu0 0.0
        %1442 = vmatpush1.msra.mxu0 0.0
        %1443 = vmatprep.subr.mxu0 0.0
        %1444 = vmatpush1.msra.mxu0 0.0
        %1445 = vmatprep.subr.mxu0 0.0
        %1446 = vmatpush1.msra.mxu0 0.0
        %1447 = vmatprep.subr.mxu0 0.0
        %1448 = vmatpush1.msra.mxu0 0.0
        %1449 = vmatprep.subr.mxu0 0.0
        %1450 = vmatpush1.msra.mxu0 0.0
        %1451 = vmatprep.subr.mxu0 0.0
        %1452 = vmatpush1.msra.mxu0 0.0
        %1453 = vmatprep.subr.mxu0 0.0
        %1454 = vmatpush1.msra.mxu0 0.0
        %1455 = vmatprep.subr.mxu0 0.0
        %1456 = vmatpush1.msra.mxu0 0.0
        %1457 = vmatprep.subr.mxu0 0.0
        %1458 = vmatpush1.msra.mxu0 0.0
        %1459 = vmatprep.subr.mxu0 0.0
        %1460 = vmatpush1.msra.mxu0 0.0
        %1461 = vmatprep.subr.mxu0 0.0
        %1462 = vmatpush1.msra.mxu0 0.0
        %1463 = vmatprep.subr.mxu0 0.0
        %1464 = vmatpush1.msra.mxu0 0.0
        %1465 = vmatprep.subr.mxu0 0.0
        %1466 = vmatpush1.msra.mxu0 0.0
        %1467 = vmatprep.subr.mxu0 0.0
        %1468 = vmatpush1.msra.mxu0 0.0
        %1469 = vmatprep.subr.mxu0 0.0
        %1470 = vmatpush1.msra.mxu0 0.0
        %1471 = vmatprep.subr.mxu0 0.0
        %1472 = vmatpush1.msra.mxu0 0.0
        %1473 = vmatprep.subr.mxu0 0.0
        %1474 = vmatpush1.msra.mxu0 0.0
        %1475 = vmatprep.subr.mxu0 0.0
        %1476 = vmatpush1.msra.mxu0 0.0
        %1477 = vmatprep.subr.mxu0 0.0
        %1478 = vmatpush1.msra.mxu0 0.0
        %1479 = vmatprep.subr.mxu0 0.0
        %1480 = vmatpush1.msra.mxu0 0.0
        %1481 = vmatprep.subr.mxu0 0.0
        %1482 = vmatpush1.msra.mxu0 0.0
        %1483 = vmatprep.subr.mxu0 0.0
        %1484 = vmatpush1.msra.mxu0 0.0
        %1485 = vmatprep.subr.mxu0 0.0
        %1486 = vmatpush1.msra.mxu0 0.0
        %1487 = vmatprep.subr.mxu0 0.0
        %1488 = vmatpush1.msra.mxu0 0.0
        %1489 = vmatprep.subr.mxu0 0.0
        %1490 = vmatpush1.msra.mxu0 0.0
        %1491 = vmatprep.subr.mxu0 0.0
        %1492 = vmatpush1.msra.mxu0 0.0
        %1493 = vmatprep.mubr.f32.mxu0 0.0
        %1494 = vmatmul.mubr.f32.gmra.mrb[0].mxu0 %v1424
        %v1495 = vpop.f32.mrb[0].mxu0
        %v1496 = vadd.f32 0.0, %v1495
        %v1497 = vpop.f32.mrb[0].mxu0
        %v1498 = vadd.f32 0.0, %v1497
        %1499 = vmatprep.mubr.f32.mxu0 0.0
        %1500 = vmatmul.mubr.f32.gmra.mrb[0].mxu0 %v1427
        %v1501 = vpop.f32.mrb[0].mxu0
        %v1502 = vadd.f32 0.0, %v1501
        %v1503 = vpop.f32.mrb[0].mxu0
        %v1504 = vadd.f32 0.0, %v1503
        %1505 = vdwg.mxu0
        %s1506 = scalar_lea.vmem [#allocation7], 640
        %v1507 = vld [vmem:[%s1506] sm:$0xff]
        %v1508 = vld [vmem:[%s1506 + $0x8] sm:$0xff]
        %v1509 = vld [vmem:[%s1506 + $0x10] sm:$0xff]
        %v1510 = vld [vmem:[%s1506 + $0x18] sm:$0xff]
        %v1511 = vld [vmem:[%s1506 + $0x20] sm:$0xff]
        %v1512 = vld [vmem:[%s1506 + $0x28] sm:$0xff]
        %v1513 = vld [vmem:[%s1506 + $0x30] sm:$0xff]
        %v1514 = vld [vmem:[%s1506 + $0x38] sm:$0xff]
        %v1515 = vld [vmem:[%s1506 + $0x40] sm:$0xff]
        %v1516 = vld [vmem:[%s1506 + $0x48] sm:$0xff]
        %v1517 = vld [vmem:[%s1506 + $0x50] sm:$0xff]
        %v1518 = vld [vmem:[%s1506 + $0x58] sm:$0xff]
        %v1519 = vld [vmem:[%s1506 + $0x60] sm:$0xff]
        %v1520 = vld [vmem:[%s1506 + $0x68] sm:$0xff]
        %v1521 = vld [vmem:[%s1506 + $0x70] sm:$0xff]
        %v1522 = vld [vmem:[%s1506 + $0x78] sm:$0xff]
        %1523 = vmatprep.subr.mxu0 %v1498
        %1524 = vmatpush1.msra.mxu0 %v1496
        %1525 = vmatprep.subr.mxu0 %v1504
        %1526 = vmatpush1.msra.mxu0 %v1502
        %1527 = vmatprep.subr.mxu0 0.0
        %1528 = vmatpush1.msra.mxu0 0.0
        %1529 = vmatprep.subr.mxu0 0.0
        %1530 = vmatpush1.msra.mxu0 0.0
        %1531 = vmatprep.subr.mxu0 0.0
        %1532 = vmatpush1.msra.mxu0 0.0
        %1533 = vmatprep.subr.mxu0 0.0
        %1534 = vmatpush1.msra.mxu0 0.0
        %1535 = vmatprep.subr.mxu0 0.0
        %1536 = vmatpush1.msra.mxu0 0.0
        %1537 = vmatprep.subr.mxu0 0.0
        %1538 = vmatpush1.msra.mxu0 0.0
        %1539 = vmatprep.subr.mxu0 0.0
        %1540 = vmatpush1.msra.mxu0 0.0
        %1541 = vmatprep.subr.mxu0 0.0
        %1542 = vmatpush1.msra.mxu0 0.0
        %1543 = vmatprep.subr.mxu0 0.0
        %1544 = vmatpush1.msra.mxu0 0.0
        %1545 = vmatprep.subr.mxu0 0.0
        %1546 = vmatpush1.msra.mxu0 0.0
        %1547 = vmatprep.subr.mxu0 0.0
        %1548 = vmatpush1.msra.mxu0 0.0
        %1549 = vmatprep.subr.mxu0 0.0
        %1550 = vmatpush1.msra.mxu0 0.0
        %1551 = vmatprep.subr.mxu0 0.0
        %1552 = vmatpush1.msra.mxu0 0.0
        %1553 = vmatprep.subr.mxu0 0.0
        %1554 = vmatpush1.msra.mxu0 0.0
        %1555 = vmatprep.subr.mxu0 0.0
        %1556 = vmatpush1.msra.mxu0 0.0
        %1557 = vmatprep.subr.mxu0 0.0
        %1558 = vmatpush1.msra.mxu0 0.0
        %1559 = vmatprep.subr.mxu0 0.0
        %1560 = vmatpush1.msra.mxu0 0.0
        %1561 = vmatprep.subr.mxu0 0.0
        %1562 = vmatpush1.msra.mxu0 0.0
        %1563 = vmatprep.subr.mxu0 0.0
        %1564 = vmatpush1.msra.mxu0 0.0
        %1565 = vmatprep.subr.mxu0 0.0
        %1566 = vmatpush1.msra.mxu0 0.0
        %1567 = vmatprep.subr.mxu0 0.0
        %1568 = vmatpush1.msra.mxu0 0.0
        %1569 = vmatprep.subr.mxu0 0.0
        %1570 = vmatpush1.msra.mxu0 0.0
        %1571 = vmatprep.subr.mxu0 0.0
        %1572 = vmatpush1.msra.mxu0 0.0
        %1573 = vmatprep.subr.mxu0 0.0
        %1574 = vmatpush1.msra.mxu0 0.0
        %1575 = vmatprep.subr.mxu0 0.0
        %1576 = vmatpush1.msra.mxu0 0.0
        %1577 = vmatprep.subr.mxu0 0.0
        %1578 = vmatpush1.msra.mxu0 0.0
        %1579 = vmatprep.subr.mxu0 0.0
        %1580 = vmatpush1.msra.mxu0 0.0
        %1581 = vmatprep.subr.mxu0 0.0
        %1582 = vmatpush1.msra.mxu0 0.0
        %1583 = vmatprep.subr.mxu0 0.0
        %1584 = vmatpush1.msra.mxu0 0.0
        %1585 = vmatprep.subr.mxu0 0.0
        %1586 = vmatpush1.msra.mxu0 0.0
        %1587 = vmatprep.mubr.f32.mxu0 0.0
        %1588 = vmatmul.mubr.f32.gmra.mrb[0].mxu0 %v1424
        %v1589 = vpop.f32.mrb[0].mxu0
        %v1590 = vadd.f32 0.0, %v1589
        %v1591 = vpop.f32.mrb[0].mxu0
        %v1592 = vadd.f32 0.0, %v1591
        %1593 = vmatprep.mubr.f32.mxu0 0.0
        %1594 = vmatmul.mubr.f32.gmra.mrb[0].mxu0 %v1427
        %v1595 = vpop.f32.mrb[0].mxu0
        %v1596 = vadd.f32 0.0, %v1595
        %v1597 = vpop.f32.mrb[0].mxu0
        %v1598 = vadd.f32 0.0, %v1597
        %1599 = vdwg.mxu0
        %s1600 = scalar_lea.vmem [#allocation7], 768
        %v1601 = vld [vmem:[%s1600] sm:$0xff]
        %v1602 = vld [vmem:[%s1600 + $0x8] sm:$0xff]
        %v1603 = vld [vmem:[%s1600 + $0x10] sm:$0xff]
        %v1604 = vld [vmem:[%s1600 + $0x18] sm:$0xff]
        %v1605 = vld [vmem:[%s1600 + $0x20] sm:$0xff]
        %v1606 = vld [vmem:[%s1600 + $0x28] sm:$0xff]
        %v1607 = vld [vmem:[%s1600 + $0x30] sm:$0xff]
        %v1608 = vld [vmem:[%s1600 + $0x38] sm:$0xff]
        %v1609 = vld [vmem:[%s1600 + $0x40] sm:$0xff]
        %v1610 = vld [vmem:[%s1600 + $0x48] sm:$0xff]
        %v1611 = vld [vmem:[%s1600 + $0x50] sm:$0xff]
        %v1612 = vld [vmem:[%s1600 + $0x58] sm:$0xff]
        %v1613 = vld [vmem:[%s1600 + $0x60] sm:$0xff]
        %v1614 = vld [vmem:[%s1600 + $0x68] sm:$0xff]
        %v1615 = vld [vmem:[%s1600 + $0x70] sm:$0xff]
        %v1616 = vld [vmem:[%s1600 + $0x78] sm:$0xff]
        %1617 = vmatprep.subr.mxu0 0.0
        %1618 = vmatpush1.msra.mxu0 %v1601
        %1619 = vmatprep.subr.mxu0 0.0
        %1620 = vmatpush1.msra.mxu0 %v1602
        %1621 = vmatprep.subr.mxu0 0.0
        %1622 = vmatpush1.msra.mxu0 %v1603
        %1623 = vmatprep.subr.mxu0 0.0
        %1624 = vmatpush1.msra.mxu0 %v1604
        %1625 = vmatprep.subr.mxu0 0.0
        %1626 = vmatpush1.msra.mxu0 %v1605
        %1627 = vmatprep.subr.mxu0 0.0
        %1628 = vmatpush1.msra.mxu0 %v1606
        %1629 = vmatprep.subr.mxu0 0.0
        %1630 = vmatpush1.msra.mxu0 %v1607
        %1631 = vmatprep.subr.mxu0 0.0
        %1632 = vmatpush1.msra.mxu0 %v1608
        %1633 = vmatprep.subr.mxu0 0.0
        %1634 = vmatpush1.msra.mxu0 %v1609
        %1635 = vmatprep.subr.mxu0 0.0
        %1636 = vmatpush1.msra.mxu0 %v1610
        %1637 = vmatprep.subr.mxu0 0.0
        %1638 = vmatpush1.msra.mxu0 %v1611
        %1639 = vmatprep.subr.mxu0 0.0
        %1640 = vmatpush1.msra.mxu0 %v1612
        %1641 = vmatprep.subr.mxu0 0.0
        %1642 = vmatpush1.msra.mxu0 %v1613
        %1643 = vmatprep.subr.mxu0 0.0
        %1644 = vmatpush1.msra.mxu0 %v1614
        %1645 = vmatprep.subr.mxu0 0.0
        %1646 = vmatpush1.msra.mxu0 %v1615
        %1647 = vmatprep.subr.mxu0 0.0
        %1648 = vmatpush1.msra.mxu0 %v1616
        %1649 = vmatprep.subr.mxu0 0.0
        %1650 = vmatpush1.msra.mxu0 0.0
        %1651 = vmatprep.subr.mxu0 0.0
        %1652 = vmatpush1.msra.mxu0 0.0
        %1653 = vmatprep.subr.mxu0 0.0
        %1654 = vmatpush1.msra.mxu0 0.0
        %1655 = vmatprep.subr.mxu0 0.0
        %1656 = vmatpush1.msra.mxu0 0.0
        %1657 = vmatprep.subr.mxu0 0.0
        %1658 = vmatpush1.msra.mxu0 0.0
        %1659 = vmatprep.subr.mxu0 0.0
        %1660 = vmatpush1.msra.mxu0 0.0
        %1661 = vmatprep.subr.mxu0 0.0
        %1662 = vmatpush1.msra.mxu0 0.0
        %1663 = vmatprep.subr.mxu0 0.0
        %1664 = vmatpush1.msra.mxu0 0.0
        %1665 = vmatprep.subr.mxu0 0.0
        %1666 = vmatpush1.msra.mxu0 0.0
        %1667 = vmatprep.subr.mxu0 0.0
        %1668 = vmatpush1.msra.mxu0 0.0
        %1669 = vmatprep.subr.mxu0 0.0
        %1670 = vmatpush1.msra.mxu0 0.0
        %1671 = vmatprep.subr.mxu0 0.0
        %1672 = vmatpush1.msra.mxu0 0.0
        %1673 = vmatprep.subr.mxu0 0.0
        %1674 = vmatpush1.msra.mxu0 0.0
        %1675 = vmatprep.subr.mxu0 0.0
        %1676 = vmatpush1.msra.mxu0 0.0
        %1677 = vmatprep.subr.mxu0 0.0
        %1678 = vmatpush1.msra.mxu0 0.0
        %1679 = vmatprep.subr.mxu0 0.0
        %1680 = vmatpush1.msra.mxu0 0.0
        %1681 = vmatprep.mubr.f32.mxu0 0.0
        %1682 = vmatmul.mubr.f32.gmra.mrb[0].mxu0 %v1590
        %v1683 = vpop.f32.mrb[0].mxu0
        %v1684 = vadd.f32 0.0, %v1683
        %v1685 = vpop.f32.mrb[0].mxu0
        %1686 = vmatprep.mubr.f32.mxu0 0.0
        %1687 = vmatmul.mubr.f32.gmra.mrb[0].mxu0 %v1596
        %v1688 = vpop.f32.mrb[0].mxu0
        %v1689 = vadd.f32 0.0, %v1688
        %v1690 = vpop.f32.mrb[0].mxu0
        %1691 = vdwg.mxu0
        %1692 = vmatprep.subr.mxu0 0.0
        %1693 = vmatpush1.msra.mxu0 %v1507
        %1694 = vmatprep.subr.mxu0 0.0
        %1695 = vmatpush1.msra.mxu0 %v1508
        %1696 = vmatprep.subr.mxu0 0.0
        %1697 = vmatpush1.msra.mxu0 %v1509
        %1698 = vmatprep.subr.mxu0 0.0
        %1699 = vmatpush1.msra.mxu0 %v1510
        %1700 = vmatprep.subr.mxu0 0.0
        %1701 = vmatpush1.msra.mxu0 %v1511
        %1702 = vmatprep.subr.mxu0 0.0
        %1703 = vmatpush1.msra.mxu0 %v1512
        %1704 = vmatprep.subr.mxu0 0.0
        %1705 = vmatpush1.msra.mxu0 %v1513
        %1706 = vmatprep.subr.mxu0 0.0
        %1707 = vmatpush1.msra.mxu0 %v1514
        %1708 = vmatprep.subr.mxu0 0.0
        %1709 = vmatpush1.msra.mxu0 %v1515
        %1710 = vmatprep.subr.mxu0 0.0
        %1711 = vmatpush1.msra.mxu0 %v1516
        %1712 = vmatprep.subr.mxu0 0.0
        %1713 = vmatpush1.msra.mxu0 %v1517
        %1714 = vmatprep.subr.mxu0 0.0
        %1715 = vmatpush1.msra.mxu0 %v1518
        %1716 = vmatprep.subr.mxu0 0.0
        %1717 = vmatpush1.msra.mxu0 %v1519
        %1718 = vmatprep.subr.mxu0 0.0
        %1719 = vmatpush1.msra.mxu0 %v1520
        %1720 = vmatprep.subr.mxu0 0.0
        %1721 = vmatpush1.msra.mxu0 %v1521
        %1722 = vmatprep.subr.mxu0 0.0
        %1723 = vmatpush1.msra.mxu0 %v1522
        %1724 = vmatprep.subr.mxu0 0.0
        %1725 = vmatpush1.msra.mxu0 0.0
        %1726 = vmatprep.subr.mxu0 0.0
        %1727 = vmatpush1.msra.mxu0 0.0
        %1728 = vmatprep.subr.mxu0 0.0
        %1729 = vmatpush1.msra.mxu0 0.0
        %1730 = vmatprep.subr.mxu0 0.0
        %1731 = vmatpush1.msra.mxu0 0.0
        %1732 = vmatprep.subr.mxu0 0.0
        %1733 = vmatpush1.msra.mxu0 0.0
        %1734 = vmatprep.subr.mxu0 0.0
        %1735 = vmatpush1.msra.mxu0 0.0
        %1736 = vmatprep.subr.mxu0 0.0
        %1737 = vmatpush1.msra.mxu0 0.0
        %1738 = vmatprep.subr.mxu0 0.0
        %1739 = vmatpush1.msra.mxu0 0.0
        %1740 = vmatprep.subr.mxu0 0.0
        %1741 = vmatpush1.msra.mxu0 0.0
        %1742 = vmatprep.subr.mxu0 0.0
        %1743 = vmatpush1.msra.mxu0 0.0
        %1744 = vmatprep.subr.mxu0 0.0
        %1745 = vmatpush1.msra.mxu0 0.0
        %1746 = vmatprep.subr.mxu0 0.0
        %1747 = vmatpush1.msra.mxu0 0.0
        %1748 = vmatprep.subr.mxu0 0.0
        %1749 = vmatpush1.msra.mxu0 0.0
        %1750 = vmatprep.subr.mxu0 0.0
        %1751 = vmatpush1.msra.mxu0 0.0
        %1752 = vmatprep.subr.mxu0 0.0
        %1753 = vmatpush1.msra.mxu0 0.0
        %1754 = vmatprep.subr.mxu0 0.0
        %1755 = vmatpush1.msra.mxu0 0.0
        %1756 = vmatprep.mubr.f32.mxu0 0.0
        %1757 = vmatmul.mubr.f32.gmra.mrb[0].mxu0 %v1496
        %v1758 = vpop.f32.mrb[0].mxu0
        %v1759 = vadd.f32 %v1684, %v1758
        %v1760 = vpop.f32.mrb[0].mxu0
        %1761 = vmatprep.mubr.f32.mxu0 0.0
        %1762 = vmatmul.mubr.f32.gmra.mrb[0].mxu0 %v1502
        %v1763 = vpop.f32.mrb[0].mxu0
        %v1764 = vadd.f32 %v1689, %v1763
        %v1765 = vpop.f32.mrb[0].mxu0
        %1766 = vdwg.mxu0
        %1767 = vmatprep.subr.mxu0 0.0
        %1768 = vmatpush1.msra.mxu0 %v1601
        %1769 = vmatprep.subr.mxu0 0.0
        %1770 = vmatpush1.msra.mxu0 %v1602
        %1771 = vmatprep.subr.mxu0 0.0
        %1772 = vmatpush1.msra.mxu0 %v1603
        %1773 = vmatprep.subr.mxu0 0.0
        %1774 = vmatpush1.msra.mxu0 %v1604
        %1775 = vmatprep.subr.mxu0 0.0
        %1776 = vmatpush1.msra.mxu0 %v1605
        %1777 = vmatprep.subr.mxu0 0.0
        %1778 = vmatpush1.msra.mxu0 %v1606
        %1779 = vmatprep.subr.mxu0 0.0
        %1780 = vmatpush1.msra.mxu0 %v1607
        %1781 = vmatprep.subr.mxu0 0.0
        %1782 = vmatpush1.msra.mxu0 %v1608
        %1783 = vmatprep.subr.mxu0 0.0
        %1784 = vmatpush1.msra.mxu0 %v1609
        %1785 = vmatprep.subr.mxu0 0.0
        %1786 = vmatpush1.msra.mxu0 %v1610
        %1787 = vmatprep.subr.mxu0 0.0
        %1788 = vmatpush1.msra.mxu0 %v1611
        %1789 = vmatprep.subr.mxu0 0.0
        %1790 = vmatpush1.msra.mxu0 %v1612
        %1791 = vmatprep.subr.mxu0 0.0
        %1792 = vmatpush1.msra.mxu0 %v1613
        %1793 = vmatprep.subr.mxu0 0.0
        %1794 = vmatpush1.msra.mxu0 %v1614
        %1795 = vmatprep.subr.mxu0 0.0
        %1796 = vmatpush1.msra.mxu0 %v1615
        %1797 = vmatprep.subr.mxu0 0.0
        %1798 = vmatpush1.msra.mxu0 %v1616
        %1799 = vmatprep.subr.mxu0 0.0
        %1800 = vmatpush1.msra.mxu0 0.0
        %1801 = vmatprep.subr.mxu0 0.0
        %1802 = vmatpush1.msra.mxu0 0.0
        %1803 = vmatprep.subr.mxu0 0.0
        %1804 = vmatpush1.msra.mxu0 0.0
        %1805 = vmatprep.subr.mxu0 0.0
        %1806 = vmatpush1.msra.mxu0 0.0
        %1807 = vmatprep.subr.mxu0 0.0
        %1808 = vmatpush1.msra.mxu0 0.0
        %1809 = vmatprep.subr.mxu0 0.0
        %1810 = vmatpush1.msra.mxu0 0.0
        %1811 = vmatprep.subr.mxu0 0.0
        %1812 = vmatpush1.msra.mxu0 0.0
        %1813 = vmatprep.subr.mxu0 0.0
        %1814 = vmatpush1.msra.mxu0 0.0
        %1815 = vmatprep.subr.mxu0 0.0
        %1816 = vmatpush1.msra.mxu0 0.0
        %1817 = vmatprep.subr.mxu0 0.0
        %1818 = vmatpush1.msra.mxu0 0.0
        %1819 = vmatprep.subr.mxu0 0.0
        %1820 = vmatpush1.msra.mxu0 0.0
        %1821 = vmatprep.subr.mxu0 0.0
        %1822 = vmatpush1.msra.mxu0 0.0
        %1823 = vmatprep.subr.mxu0 0.0
        %1824 = vmatpush1.msra.mxu0 0.0
        %1825 = vmatprep.subr.mxu0 0.0
        %1826 = vmatpush1.msra.mxu0 0.0
        %1827 = vmatprep.subr.mxu0 0.0
        %1828 = vmatpush1.msra.mxu0 0.0
        %1829 = vmatprep.subr.mxu0 0.0
        %1830 = vmatpush1.msra.mxu0 0.0
        %1831 = vmatprep.mubr.f32.mxu0 0.0
        %1832 = vmatmul.mubr.f32.gmra.mrb[0].mxu0 %v1592
        %v1833 = vpop.f32.mrb[0].mxu0
        %v1834 = vadd.f32 0.0, %v1833
        %v1835 = vpop.f32.mrb[0].mxu0
        %1836 = vmatprep.mubr.f32.mxu0 0.0
        %1837 = vmatmul.mubr.f32.gmra.mrb[0].mxu0 %v1598
        %v1838 = vpop.f32.mrb[0].mxu0
        %v1839 = vadd.f32 0.0, %v1838
        %v1840 = vpop.f32.mrb[0].mxu0
        %1841 = vdwg.mxu0
        %1842 = vmatprep.subr.mxu0 0.0
        %1843 = vmatpush1.msra.mxu0 %v1507
        %1844 = vmatprep.subr.mxu0 0.0
        %1845 = vmatpush1.msra.mxu0 %v1508
        %1846 = vmatprep.subr.mxu0 0.0
        %1847 = vmatpush1.msra.mxu0 %v1509
        %1848 = vmatprep.subr.mxu0 0.0
        %1849 = vmatpush1.msra.mxu0 %v1510
        %1850 = vmatprep.subr.mxu0 0.0
        %1851 = vmatpush1.msra.mxu0 %v1511
        %1852 = vmatprep.subr.mxu0 0.0
        %1853 = vmatpush1.msra.mxu0 %v1512
        %1854 = vmatprep.subr.mxu0 0.0
        %1855 = vmatpush1.msra.mxu0 %v1513
        %1856 = vmatprep.subr.mxu0 0.0
        %1857 = vmatpush1.msra.mxu0 %v1514
        %1858 = vmatprep.subr.mxu0 0.0
        %1859 = vmatpush1.msra.mxu0 %v1515
        %1860 = vmatprep.subr.mxu0 0.0
        %1861 = vmatpush1.msra.mxu0 %v1516
        %1862 = vmatprep.subr.mxu0 0.0
        %1863 = vmatpush1.msra.mxu0 %v1517
        %1864 = vmatprep.subr.mxu0 0.0
        %1865 = vmatpush1.msra.mxu0 %v1518
        %1866 = vmatprep.subr.mxu0 0.0
        %1867 = vmatpush1.msra.mxu0 %v1519
        %1868 = vmatprep.subr.mxu0 0.0
        %1869 = vmatpush1.msra.mxu0 %v1520
        %1870 = vmatprep.subr.mxu0 0.0
        %1871 = vmatpush1.msra.mxu0 %v1521
        %1872 = vmatprep.subr.mxu0 0.0
        %1873 = vmatpush1.msra.mxu0 %v1522
        %1874 = vmatprep.subr.mxu0 0.0
        %1875 = vmatpush1.msra.mxu0 0.0
        %1876 = vmatprep.subr.mxu0 0.0
        %1877 = vmatpush1.msra.mxu0 0.0
        %1878 = vmatprep.subr.mxu0 0.0
        %1879 = vmatpush1.msra.mxu0 0.0
        %1880 = vmatprep.subr.mxu0 0.0
        %1881 = vmatpush1.msra.mxu0 0.0
        %1882 = vmatprep.subr.mxu0 0.0
        %1883 = vmatpush1.msra.mxu0 0.0
        %1884 = vmatprep.subr.mxu0 0.0
        %1885 = vmatpush1.msra.mxu0 0.0
        %1886 = vmatprep.subr.mxu0 0.0
        %1887 = vmatpush1.msra.mxu0 0.0
        %1888 = vmatprep.subr.mxu0 0.0
        %1889 = vmatpush1.msra.mxu0 0.0
        %1890 = vmatprep.subr.mxu0 0.0
        %1891 = vmatpush1.msra.mxu0 0.0
        %1892 = vmatprep.subr.mxu0 0.0
        %1893 = vmatpush1.msra.mxu0 0.0
        %1894 = vmatprep.subr.mxu0 0.0
        %1895 = vmatpush1.msra.mxu0 0.0
        %1896 = vmatprep.subr.mxu0 0.0
        %1897 = vmatpush1.msra.mxu0 0.0
        %1898 = vmatprep.subr.mxu0 0.0
        %1899 = vmatpush1.msra.mxu0 0.0
        %1900 = vmatprep.subr.mxu0 0.0
        %1901 = vmatpush1.msra.mxu0 0.0
        %1902 = vmatprep.subr.mxu0 0.0
        %1903 = vmatpush1.msra.mxu0 0.0
        %1904 = vmatprep.subr.mxu0 0.0
        %1905 = vmatpush1.msra.mxu0 0.0
        %1906 = vmatprep.mubr.f32.mxu0 0.0
        %1907 = vmatmul.mubr.f32.gmra.mrb[0].mxu0 %v1498
        %v1908 = vpop.f32.mrb[0].mxu0
        %v1909 = vadd.f32 %v1834, %v1908
        %v1910 = vpop.f32.mrb[0].mxu0
        %1911 = vmatprep.mubr.f32.mxu0 0.0
        %1912 = vmatmul.mubr.f32.gmra.mrb[0].mxu0 %v1504
        %v1913 = vpop.f32.mrb[0].mxu0
        %v1914 = vadd.f32 %v1839, %v1913
        %v1915 = vpop.f32.mrb[0].mxu0
        %1916 = vdwg.mxu0
        %v1917 = vadd.f32 %v1416, %v1759
        %v1918 = vadd.f32 %v1417, %v1764
        %v1919 = vadd.f32 %v1418, %v1909
        %v1920 = vadd.f32 %v1419, %v1914
        %v1921 = vadd.f32 %v1917, %v254
        %v1922 = vadd.f32 %v1918, %v254
        %1923 = vst [vmem:[%s244] sm:$0xff] %v1921
        %1924 = vst [vmem:[%s244 + $0x10] sm:$0xff] %v1922
        %v1925 = vadd.f32 %v1919, %v254
        %v1926 = vadd.f32 %v1920, %v254
        %1927 = vst [vmem:[%s244 + $0x8] sm:$0xff] %v1925
        %1928 = vst [vmem:[%s244 + $0x18] sm:$0xff] %v1926
        %s1929 = sand.u32 %s119, 1
        %s1930 = scalar_lea.sflag [#allocation4], %s1929
        %s1931 = sand.u32 %s119, 1
        %s1932 = smul.addr %s1931, 32
        %s1933 = scalar_lea.vmem [#allocation8], %s1932
        // Predicated region
        $region49: #{tpu_custom_call.1} parent=35 // pred_check
          %p1934 = pneg %p129
        $region50: #{tpu_custom_call.1} parent=35 // pred_check_branch
          %1936 = sbr.rel (%p1934) target = $region52
        $region51: #{tpu_custom_call.1} parent=35 // pred_region
          %s1938 = ssub.s32 512, 512
          %1939 = vsyncadd %s1930, %s1938
          %s1940 = smul.addr %s22, 4
          %s1941 = smul.addr %s1940, 128
          %s1942 = scalar_lea.hbm %s4, %s1941
          %s1943 = sshll.u32 %s1933, 4
          %s1944 = int_to_ptr.vmem [resolvable:$true] %s1943
          %1949 = dma.vmem_to_hbm [thread:$0]  %s1944, 512, %s1942, %s1930, 256, 256, 16
        $region52: #{tpu_custom_call.1} parent=35 // pred_fallthru
          _
      $region36: #{tpu_custom_call.1} parent=5 // pred_fallthru
        _
      %p1950 = scmp.le.s32.totalorder 2, %s17
      // Predicated region
      $region53: #{tpu_custom_call.1} parent=5 // pred_check
        %p1951 = pneg %p1950
      $region54: #{tpu_custom_call.1} parent=5 // pred_check_branch
        %1953 = sbr.rel (%p1951) target = $region56
      $region55: #{tpu_custom_call.1} parent=5 // pred_region
        %s1954 = ssub.s32 %s17, 2
        // Predicated region
        $region57: #{tpu_custom_call.1} parent=55 // pred_check
          %p1955 = pneg %p135
        $region58: #{tpu_custom_call.1} parent=55 // pred_check_branch
          %1957 = sbr.rel (%p1955) target = $region60
        $region59: #{tpu_custom_call.1} parent=55 // pred_region
          %s1958 = sand.u32 %s120, 1
          %s1959 = scalar_lea.sflag [#allocation4], %s1958
          %s1960 = sand.u32 %s120, 1
          %s1961 = smul.addr %s1960, 32
          %s1962 = scalar_lea.vmem [#allocation8], %s1961
          %1963 = dma.done %s1959, 512
        $region60: #{tpu_custom_call.1} parent=55 // pred_fallthru
          _
      $region56: #{tpu_custom_call.1} parent=5 // pred_fallthru
        _
    $region6: #{tpu_custom_call.1} parent=1 // loop_footer
      %s21 = sadd.s32 1, %s17
    $region7: #{tpu_custom_call.1} parent=1 // loop_footer_branch
      %16 = sbr.rel target = $region3
    $region8: #{tpu_custom_call.1} parent=1 // loop_exit
      _
    %1964 = vsyncpa [#allocation3], 1
    %s1965 = scalar_lea.sflag [#allocation3], 1
    %1966 = vsyncpa %s1965, 1
    %1967 = vsyncpa [#allocation6], 1
    %1968 = vsyncpa [#allocation4], 1
    %s1969 = scalar_lea.sflag [#allocation4], 1
    %1970 = vsyncpa %s1969, 1

// kernel: tpu_custom_call.1
$region0: #{tpu_custom_call.1}
  #allocation0 [shape = 'u32[]', space=smem, size = 0x4, offset = 0x4, fixed_abs, tag = 'smem constant byte address 0x4 - core index']
  #allocation1 [shape = 'u32[144,128]{1,0:T(1,128)}', space=vmem, size = 0x12000, scoped, tag = 'internal scratch']
  %s0 = inlined_call_operand.hbm [shape: f32[2,16,256], index: 0, kind: input, shape index: {}]
  %s1 = inlined_call_operand.hbm [shape: f32[3,16,16], index: 1, kind: input, shape index: {}]
  %s2 = inlined_call_operand.hbm [shape: f32[7,128,128], index: 2, kind: input, shape index: {}]
  %s3 = inlined_call_operand.vmem [shape: f32[1,128], index: 3, kind: input, shape index: {}]
  %s4 = inlined_call_operand.hbm [shape: f32[2,16,256], index: 4, kind: output, shape index: {}]
  %s5 = sld [smem:[#allocation0]]
  $region61: #{tpu_custom_call.1} parent=0
    _
  %s7 = ssub.s32 1, %s5
  %s8 = scalar_select 0, %s7, %s5
  $region1: #{tpu_custom_call.1} parent=0
    #allocation2 [shape = 'u8[32768]{0}', space=vmem, size = 0x8000, scoped, tag = 'input window, operand 0']
    #allocation3 [shape = 's32[2]{0}', space=sflag, size = 0x8, scoped, tag = 'scoped memory for tpu_custom_call.1']
    #allocation4 [shape = 's32[2]{0}', space=sflag, size = 0x8, scoped, tag = 'scoped memory for tpu_custom_call.1']
    #allocation5 [shape = 'u8[24576]{0}', space=vmem, size = 0x6000, scoped, tag = 'input window, operand 1, single buffered']
    #allocation6 [shape = 's32[1]{0}', space=sflag, size = 0x4, scoped, tag = 'scoped memory for tpu_custom_call.1']
    #allocation7 [shape = 'u8[458752]{0}', space=vmem, size = 0x70000, scoped, tag = 'input window, operand 2, single buffered']
    #allocation8 [shape = 'u8[32768]{0}', space=vmem, size = 0x8000, scoped, tag = 'output window, operand 0']
    %9 = vsyncpa [#allocation3], 0
    %s10 = scalar_lea.sflag [#allocation3], 1
    %11 = vsyncpa %s10, 0
    %12 = vsyncpa [#allocation6], 0
    %13 = vsyncpa [#allocation4], 0
    %s14 = scalar_lea.sflag [#allocation4], 1
    %15 = vsyncpa %s14, 0
    loop: start=0, step=1, limit=4
    $region2: #{tpu_custom_call.1} parent=1 // loop_pre_header
      _
    $region3: #{tpu_custom_call.1} parent=1 // loop_header
      %s17 = sphi 0, %s21
      %p18 = scmp.ge.s32.totalorder %s17, 4
      %s27 = sphi 0, %s29
      %s30 = sphi 0, %s27
      %s31 = sphi 0, %s30
      %s47 = sphi 0, %s31
      %s51 = sphi 0, %s51
      %s53 = sphi 0, %s51
      %s54 = sphi 0, %s53
      %s68 = sphi 0, %s54
      %s72 = sphi 0, %s72
      %s74 = sphi 0, %s72
      %s75 = sphi 0, %s74
      %s89 = sphi 0, %s75
      %s93 = sphi 0, %s93
      %s95 = sphi 0, %s93
      %s96 = sphi 0, %s95
      %s110 = sphi 0, %s96
      %s116 = sphi 0, %s118
      %s119 = sphi 0, %s116
      %s120 = sphi 0, %s119
      %s136 = sphi 0, %s120
    $region4: #{tpu_custom_call.1} parent=1 // loop_header_branch
      %20 = sbr.rel (%p18) target = $region8
    $region5: #{tpu_custom_call.1} parent=1 // loop_body
      %s22 = ssub.s32 %s17, 1
      %s23 = ssub.s32 %s17, 2
      %s24 = sadd.s32 %s17, 1
      %s25 = ssub.s32 %s17, %s24
      %p26 = scmp.eq.s32.totalorder %s25, 0
      %s28 = sadd.s32 %s27, 1
      %s29 = scalar_select %p26, %s27, %s28
      %p32 = pneg %p26
      %p33 = scmp.eq.s32.totalorder %s17, 1
      %p34 = por %p32, %p33
      %p35 = scmp.ne.s32.totalorder %s27, %s30
      %p36 = scmp.eq.s32.totalorder %s17, 0
      %p37 = por %p35, %p36
      %p38 = scmp.ne.s32.totalorder %s27, %s30
      %p39 = scmp.eq.s32.totalorder %s22, 1
      %p40 = por %p38, %p39
      %p41 = scmp.ne.s32.totalorder %s30, %s31
      %p42 = scmp.eq.s32.totalorder %s22, 0
      %p43 = por %p41, %p42
      %p44 = scmp.ne.s32.totalorder %s30, %s31
      %p45 = scmp.eq.s32.totalorder %s23, 1
      %p46 = por %p44, %p45
      %p48 = scmp.ne.s32.totalorder %s31, %s47
      %p49 = scmp.eq.s32.totalorder %s23, 0
      %p50 = por %p48, %p49
      %s52 = sadd.s32 %s51, 1
      %p55 = scmp.eq.s32.totalorder %s17, 1
      %p56 = scmp.ne.s32.totalorder %s51, %s53
      %p57 = scmp.eq.s32.totalorder %s17, 0
      %p58 = por %p56, %p57
      %p59 = scmp.ne.s32.totalorder %s51, %s53
      %p60 = scmp.eq.s32.totalorder %s22, 1
      %p61 = por %p59, %p60
      %p62 = scmp.ne.s32.totalorder %s53, %s54
      %p63 = scmp.eq.s32.totalorder %s22, 0
      %p64 = por %p62, %p63
      %p65 = scmp.ne.s32.totalorder %s53, %s54
      %p66 = scmp.eq.s32.totalorder %s23, 1
      %p67 = por %p65, %p66
      %p69 = scmp.ne.s32.totalorder %s54, %s68
      %p70 = scmp.eq.s32.totalorder %s23, 0
      %p71 = por %p69, %p70
      %s73 = sadd.s32 %s72, 1
      %p76 = scmp.eq.s32.totalorder %s17, 1
      %p77 = scmp.ne.s32.totalorder %s72, %s74
      %p78 = scmp.eq.s32.totalorder %s17, 0
      %p79 = por %p77, %p78
      %p80 = scmp.ne.s32.totalorder %s72, %s74
      %p81 = scmp.eq.s32.totalorder %s22, 1
      %p82 = por %p80, %p81
      %p83 = scmp.ne.s32.totalorder %s74, %s75
      %p84 = scmp.eq.s32.totalorder %s22, 0
      %p85 = por %p83, %p84
      %p86 = scmp.ne.s32.totalorder %s74, %s75
      %p87 = scmp.eq.s32.totalorder %s23, 1
      %p88 = por %p86, %p87
      %p90 = scmp.ne.s32.totalorder %s75, %s89
      %p91 = scmp.eq.s32.totalorder %s23, 0
      %p92 = por %p90, %p91
      %s94 = sadd.s32 %s93, 1
      %p97 = scmp.eq.s32.totalorder %s17, 1
      %p98 = scmp.ne.s32.totalorder %s93, %s95
      %p99 = scmp.eq.s32.totalorder %s17, 0
      %p100 = por %p98, %p99
      %p101 = scmp.ne.s32.totalorder %s93, %s95
      %p102 = scmp.eq.s32.totalorder %s22, 1
      %p103 = por %p101, %p102
      %p104 = scmp.ne.s32.totalorder %s95, %s96
      %p105 = scmp.eq.s32.totalorder %s22, 0
      %p106 = por %p104, %p105
      %p107 = scmp.ne.s32.totalorder %s95, %s96
      %p108 = scmp.eq.s32.totalorder %s23, 1
      %p109 = por %p107, %p108
      %p111 = scmp.ne.s32.totalorder %s96, %s110
      %p112 = scmp.eq.s32.totalorder %s23, 0
      %p113 = por %p111, %p112
      %s114 = ssub.s32 %s17, %s24
      %p115 = scmp.eq.s32.totalorder %s114, 0
      %s117 = sadd.s32 %s116, 1
      %s118 = scalar_select %p115, %s116, %s117
      %p121 = pneg %p115
      %p122 = scmp.eq.s32.totalorder %s17, 1
      %p123 = por %p121, %p122
      %p124 = scmp.ne.s32.totalorder %s116, %s119
      %p125 = scmp.eq.s32.totalorder %s17, 0
      %p126 = por %p124, %p125
      %p127 = scmp.ne.s32.totalorder %s116, %s119
      %p128 = scmp.eq.s32.totalorder %s22, 1
      %p129 = por %p127, %p128
      %p130 = scmp.ne.s32.totalorder %s119, %s120
      %p131 = scmp.eq.s32.totalorder %s22, 0
      %p132 = por %p130, %p131
      %p133 = scmp.ne.s32.totalorder %s119, %s120
      %p134 = scmp.eq.s32.totalorder %s23, 1
      %p135 = por %p133, %p134
      %p137 = scmp.ne.s32.totalorder %s120, %s136
      %p138 = scmp.eq.s32.totalorder %s23, 0
      %p139 = por %p137, %p138
      %p140 = scmp.le.s32.totalorder 1, %s17
      %p141 = scmp.lt.s32.totalorder %s17, 3
      %p142 = pnand %p140, %p141
      %p143 = pneg %p142
      // Predicated region
      $region9: #{tpu_custom_call.1} parent=5 // pred_check
        _
      $region10: #{tpu_custom_call.1} parent=5 // pred_check_branch
        %145 = sbr.rel (%p142) target = $region12
      $region11: #{tpu_custom_call.1} parent=5 // pred_region
        %s146 = ssub.s32 %s17, 1
        // Predicated region
        $region13: #{tpu_custom_call.1} parent=11 // pred_check
          %p147 = pneg %p64
        $region14: #{tpu_custom_call.1} parent=11 // pred_check_branch
          %149 = sbr.rel (%p147) target = $region16
        $region15: #{tpu_custom_call.1} parent=11 // pred_region
          %s151 = ssub.s32 768, 768
          %152 = vsyncadd [#allocation6], %s151
          %s153 = sshll.u32 [#allocation5], 4
          %s154 = int_to_ptr.vmem [resolvable:$true] %s153
          %159 = dma.hbm_to_vmem [thread:$0]  %s1, 768, %s154, [#allocation6], 128, 128, 8
        $region16: #{tpu_custom_call.1} parent=11 // pred_fallthru
          _
        // Predicated region
        $region17: #{tpu_custom_call.1} parent=11 // pred_check
          %p160 = pneg %p85
        $region18: #{tpu_custom_call.1} parent=11 // pred_check_branch
          %162 = sbr.rel (%p160) target = $region20
        $region19: #{tpu_custom_call.1} parent=11 // pred_region
          %s164 = ssub.s32 14336, 14336
          %165 = vsyncadd [#allocation6], %s164
          %s166 = sshll.u32 [#allocation7], 4
          %s167 = int_to_ptr.vmem [resolvable:$true] %s166
          %172 = dma.hbm_to_vmem [thread:$0]  %s2, 14336, %s167, [#allocation6], 128, 128, 8
        $region20: #{tpu_custom_call.1} parent=11 // pred_fallthru
          _
        // Predicated region
        $region21: #{tpu_custom_call.1} parent=11 // pred_check
          %p173 = pneg %p106
        $region22: #{tpu_custom_call.1} parent=11 // pred_check_branch
          %175 = sbr.rel (%p173) target = $region24
        $region23: #{tpu_custom_call.1} parent=11 // pred_region
          _
        $region24: #{tpu_custom_call.1} parent=11 // pred_fallthru
          _
      $region12: #{tpu_custom_call.1} parent=5 // pred_fallthru
        _
      %p176 = scmp.lt.s32.totalorder %s17, 2
      // Predicated region
      $region25: #{tpu_custom_call.1} parent=5 // pred_check
        %p177 = pneg %p176
      $region26: #{tpu_custom_call.1} parent=5 // pred_check_branch
        %179 = sbr.rel (%p177) target = $region28
      $region27: #{tpu_custom_call.1} parent=5 // pred_region
        // Predicated region
        $region29: #{tpu_custom_call.1} parent=27 // pred_check
          %p180 = pneg %p37
        $region30: #{tpu_custom_call.1} parent=27 // pred_check_branch
          %182 = sbr.rel (%p180) target = $region32
        $region31: #{tpu_custom_call.1} parent=27 // pred_region
          %s183 = sand.u32 %s27, 1
          %s184 = scalar_lea.sflag [#allocation3], %s183
          %s185 = sand.u32 %s27, 1
          %s186 = smul.addr %s185, 32
          %s187 = scalar_lea.vmem [#allocation2], %s186
          %s189 = ssub.s32 512, 512
          %190 = vsyncadd %s184, %s189
          %s191 = smul.addr %s17, 4
          %s192 = smul.addr %s191, 128
          %s193 = scalar_lea.hbm %s0, %s192
          %s194 = sshll.u32 %s187, 4
          %s195 = int_to_ptr.vmem [resolvable:$true] %s194
          %200 = dma.hbm_to_vmem [thread:$0]  %s193, 512, %s195, %s184, 256, 256, 16
        $region32: #{tpu_custom_call.1} parent=27 // pred_fallthru
          _
      $region28: #{tpu_custom_call.1} parent=5 // pred_fallthru
        _
      %p201 = scmp.le.s32.totalorder 1, %s17
      %p202 = scmp.lt.s32.totalorder %s17, 3
      %p203 = pnand %p201, %p202
      %p204 = pneg %p203
      // Predicated region
      $region33: #{tpu_custom_call.1} parent=5 // pred_check
        _
      $region34: #{tpu_custom_call.1} parent=5 // pred_check_branch
        %206 = sbr.rel (%p203) target = $region36
      $region35: #{tpu_custom_call.1} parent=5 // pred_region
        %s207 = ssub.s32 %s17, 1
        %s208 = sand.u32 %s30, 1
        %s209 = scalar_lea.sflag [#allocation3], %s208
        %s210 = sand.u32 %s30, 1
        %s211 = smul.addr %s210, 32
        %s212 = scalar_lea.vmem [#allocation2], %s211
        // Predicated region
        $region37: #{tpu_custom_call.1} parent=35 // pred_check
          %p213 = pneg %p43
        $region38: #{tpu_custom_call.1} parent=35 // pred_check_branch
          %215 = sbr.rel (%p213) target = $region40
        $region39: #{tpu_custom_call.1} parent=35 // pred_region
          %216 = dma.done %s209, 512
        $region40: #{tpu_custom_call.1} parent=35 // pred_fallthru
          _
        // Predicated region
        $region41: #{tpu_custom_call.1} parent=35 // pred_check
          %p217 = pneg %p64
        $region42: #{tpu_custom_call.1} parent=35 // pred_check_branch
          %219 = sbr.rel (%p217) target = $region44
        $region43: #{tpu_custom_call.1} parent=35 // pred_region
          %220 = dma.done [#allocation6], 768
        $region44: #{tpu_custom_call.1} parent=35 // pred_fallthru
          _
        // Predicated region
        $region45: #{tpu_custom_call.1} parent=35 // pred_check
          %p221 = pneg %p85
        $region46: #{tpu_custom_call.1} parent=35 // pred_check_branch
          %223 = sbr.rel (%p221) target = $region48
        $region47: #{tpu_custom_call.1} parent=35 // pred_region
          %224 = dma.done [#allocation6], 14336
        $region48: #{tpu_custom_call.1} parent=35 // pred_fallthru
          _
        %s225 = sand.u32 %s30, 1
        %s226 = scalar_lea.sflag [#allocation3], %s225
        %s227 = sand.u32 %s30, 1
        %s228 = smul.addr %s227, 32
        %s229 = scalar_lea.vmem [#allocation2], %s228
        %p230 = pneg %p43
        %p231 = pneg %p40
        %p232 = pneg %p64
        %p233 = pneg %p61
        %p234 = pneg %p85
        %p235 = pneg %p82
        %p236 = pneg %p106
        %p237 = pneg %p103
        %p238 = pneg %p132
        %p239 = pneg %p129
        %s240 = sand.u32 %s119, 1
        %s241 = scalar_lea.sflag [#allocation4], %s240
        %s242 = sand.u32 %s119, 1
        %s243 = smul.addr %s242, 32
        %s244 = scalar_lea.vmem [#allocation8], %s243
        %v245 = vld [vmem:[%s212] sm:$0xff]
        %v246 = vld [vmem:[%s212 + $0x8] sm:$0xff]
        %v247 = vld [vmem:[%s212 + $0x10] sm:$0xff]
        %v248 = vld [vmem:[%s212 + $0x18] sm:$0xff]
        %v249 = vld [vmem:[%s3] sm:$0x1]
        %v251 = vlaneseq
        %v252 = vshrl.u32 %v251, 7
        %v253 = vsub.s32 0, %v252
        %v254 = vrot.slane %v249, %v253
        %v256 = vld [vmem:[#allocation7] sm:$0xff]
        %v257 = vld [vmem:[#allocation7 + $0x8] sm:$0xff]
        %v258 = vld [vmem:[#allocation7 + $0x10] sm:$0xff]
        %v259 = vld [vmem:[#allocation7 + $0x18] sm:$0xff]
        %v260 = vld [vmem:[#allocation7 + $0x20] sm:$0xff]
        %v261 = vld [vmem:[#allocation7 + $0x28] sm:$0xff]
        %v262 = vld [vmem:[#allocation7 + $0x30] sm:$0xff]
        %v263 = vld [vmem:[#allocation7 + $0x38] sm:$0xff]
        %v264 = vld [vmem:[#allocation7 + $0x40] sm:$0xff]
        %v265 = vld [vmem:[#allocation7 + $0x48] sm:$0xff]
        %v266 = vld [vmem:[#allocation7 + $0x50] sm:$0xff]
        %v267 = vld [vmem:[#allocation7 + $0x58] sm:$0xff]
        %v268 = vld [vmem:[#allocation7 + $0x60] sm:$0xff]
        %v269 = vld [vmem:[#allocation7 + $0x68] sm:$0xff]
        %v270 = vld [vmem:[#allocation7 + $0x70] sm:$0xff]
        %v271 = vld [vmem:[#allocation7 + $0x78] sm:$0xff]
        %v272 = vld [vmem:[#allocation5] sm:$0xff]
        %v273 = vld [vmem:[#allocation5 + $0x8] sm:$0xff]
        %vm274 = vcmask 130048
        %v276 = vsel %vm274, %v272, 0
        %v279 = vsel %vm274, %v273, 0
        %281 = vmatprep.subr.mxu0 %v246
        %282 = vmatpush1.msra.mxu0 %v245
        %283 = vmatprep.subr.mxu0 %v248
        %284 = vmatpush1.msra.mxu0 %v247
        %285 = vmatprep.subr.mxu0 0.0
        %286 = vmatpush1.msra.mxu0 0.0
        %287 = vmatprep.subr.mxu0 0.0
        %288 = vmatpush1.msra.mxu0 0.0
        %289 = vmatprep.subr.mxu0 0.0
        %290 = vmatpush1.msra.mxu0 0.0
        %291 = vmatprep.subr.mxu0 0.0
        %292 = vmatpush1.msra.mxu0 0.0
        %293 = vmatprep.subr.mxu0 0.0
        %294 = vmatpush1.msra.mxu0 0.0
        %295 = vmatprep.subr.mxu0 0.0
        %296 = vmatpush1.msra.mxu0 0.0
        %297 = vmatprep.subr.mxu0 0.0
        %298 = vmatpush1.msra.mxu0 0.0
        %299 = vmatprep.subr.mxu0 0.0
        %300 = vmatpush1.msra.mxu0 0.0
        %301 = vmatprep.subr.mxu0 0.0
        %302 = vmatpush1.msra.mxu0 0.0
        %303 = vmatprep.subr.mxu0 0.0
        %304 = vmatpush1.msra.mxu0 0.0
        %305 = vmatprep.subr.mxu0 0.0
        %306 = vmatpush1.msra.mxu0 0.0
        %307 = vmatprep.subr.mxu0 0.0
        %308 = vmatpush1.msra.mxu0 0.0
        %309 = vmatprep.subr.mxu0 0.0
        %310 = vmatpush1.msra.mxu0 0.0
        %311 = vmatprep.subr.mxu0 0.0
        %312 = vmatpush1.msra.mxu0 0.0
        %313 = vmatprep.subr.mxu0 0.0
        %314 = vmatpush1.msra.mxu0 0.0
        %315 = vmatprep.subr.mxu0 0.0
        %316 = vmatpush1.msra.mxu0 0.0
        %317 = vmatprep.subr.mxu0 0.0
        %318 = vmatpush1.msra.mxu0 0.0
        %319 = vmatprep.subr.mxu0 0.0
        %320 = vmatpush1.msra.mxu0 0.0
        %321 = vmatprep.subr.mxu0 0.0
        %322 = vmatpush1.msra.mxu0 0.0
        %323 = vmatprep.subr.mxu0 0.0
        %324 = vmatpush1.msra.mxu0 0.0
        %325 = vmatprep.subr.mxu0 0.0
        %326 = vmatpush1.msra.mxu0 0.0
        %327 = vmatprep.subr.mxu0 0.0
        %328 = vmatpush1.msra.mxu0 0.0
        %329 = vmatprep.subr.mxu0 0.0
        %330 = vmatpush1.msra.mxu0 0.0
        %331 = vmatprep.subr.mxu0 0.0
        %332 = vmatpush1.msra.mxu0 0.0
        %333 = vmatprep.subr.mxu0 0.0
        %334 = vmatpush1.msra.mxu0 0.0
        %335 = vmatprep.subr.mxu0 0.0
        %336 = vmatpush1.msra.mxu0 0.0
        %337 = vmatprep.subr.mxu0 0.0
        %338 = vmatpush1.msra.mxu0 0.0
        %339 = vmatprep.subr.mxu0 0.0
        %340 = vmatpush1.msra.mxu0 0.0
        %341 = vmatprep.subr.mxu0 0.0
        %342 = vmatpush1.msra.mxu0 0.0
        %343 = vmatprep.subr.mxu0 0.0
        %344 = vmatpush1.msra.mxu0 0.0
        %345 = vmatprep.mubr.f32.mxu0 0.0
        %346 = vmatmul.mubr.f32.gmra.mrb[0].mxu0 %v276
        %v347 = vpop.f32.mrb[0].mxu0
        %v348 = vadd.f32 0.0, %v347
        %v349 = vpop.f32.mrb[0].mxu0
        %v350 = vadd.f32 0.0, %v349
        %351 = vmatprep.mubr.f32.mxu0 0.0
        %352 = vmatmul.mubr.f32.gmra.mrb[0].mxu0 %v279
        %v353 = vpop.f32.mrb[0].mxu0
        %v354 = vadd.f32 0.0, %v353
        %v355 = vpop.f32.mrb[0].mxu0
        %v356 = vadd.f32 0.0, %v355
        %357 = vdwg.mxu0
        %s358 = scalar_lea.vmem [#allocation7], 128
        %v359 = vld [vmem:[%s358] sm:$0xff]
        %v360 = vld [vmem:[%s358 + $0x8] sm:$0xff]
        %v361 = vld [vmem:[%s358 + $0x10] sm:$0xff]
        %v362 = vld [vmem:[%s358 + $0x18] sm:$0xff]
        %v363 = vld [vmem:[%s358 + $0x20] sm:$0xff]
        %v364 = vld [vmem:[%s358 + $0x28] sm:$0xff]
        %v365 = vld [vmem:[%s358 + $0x30] sm:$0xff]
        %v366 = vld [vmem:[%s358 + $0x38] sm:$0xff]
        %v367 = vld [vmem:[%s358 + $0x40] sm:$0xff]
        %v368 = vld [vmem:[%s358 + $0x48] sm:$0xff]
        %v369 = vld [vmem:[%s358 + $0x50] sm:$0xff]
        %v370 = vld [vmem:[%s358 + $0x58] sm:$0xff]
        %v371 = vld [vmem:[%s358 + $0x60] sm:$0xff]
        %v372 = vld [vmem:[%s358 + $0x68] sm:$0xff]
        %v373 = vld [vmem:[%s358 + $0x70] sm:$0xff]
        %v374 = vld [vmem:[%s358 + $0x78] sm:$0xff]
        %375 = vmatprep.subr.mxu0 %v350
        %376 = vmatpush1.msra.mxu0 %v348
        %377 = vmatprep.subr.mxu0 %v356
        %378 = vmatpush1.msra.mxu0 %v354
        %379 = vmatprep.subr.mxu0 0.0
        %380 = vmatpush1.msra.mxu0 0.0
        %381 = vmatprep.subr.mxu0 0.0
        %382 = vmatpush1.msra.mxu0 0.0
        %383 = vmatprep.subr.mxu0 0.0
        %384 = vmatpush1.msra.mxu0 0.0
        %385 = vmatprep.subr.mxu0 0.0
        %386 = vmatpush1.msra.mxu0 0.0
        %387 = vmatprep.subr.mxu0 0.0
        %388 = vmatpush1.msra.mxu0 0.0
        %389 = vmatprep.subr.mxu0 0.0
        %390 = vmatpush1.msra.mxu0 0.0
        %391 = vmatprep.subr.mxu0 0.0
        %392 = vmatpush1.msra.mxu0 0.0
        %393 = vmatprep.subr.mxu0 0.0
        %394 = vmatpush1.msra.mxu0 0.0
        %395 = vmatprep.subr.mxu0 0.0
        %396 = vmatpush1.msra.mxu0 0.0
        %397 = vmatprep.subr.mxu0 0.0
        %398 = vmatpush1.msra.mxu0 0.0
        %399 = vmatprep.subr.mxu0 0.0
        %400 = vmatpush1.msra.mxu0 0.0
        %401 = vmatprep.subr.mxu0 0.0
        %402 = vmatpush1.msra.mxu0 0.0
        %403 = vmatprep.subr.mxu0 0.0
        %404 = vmatpush1.msra.mxu0 0.0
        %405 = vmatprep.subr.mxu0 0.0
        %406 = vmatpush1.msra.mxu0 0.0
        %407 = vmatprep.subr.mxu0 0.0
        %408 = vmatpush1.msra.mxu0 0.0
        %409 = vmatprep.subr.mxu0 0.0
        %410 = vmatpush1.msra.mxu0 0.0
        %411 = vmatprep.subr.mxu0 0.0
        %412 = vmatpush1.msra.mxu0 0.0
        %413 = vmatprep.subr.mxu0 0.0
        %414 = vmatpush1.msra.mxu0 0.0
        %415 = vmatprep.subr.mxu0 0.0
        %416 = vmatpush1.msra.mxu0 0.0
        %417 = vmatprep.subr.mxu0 0.0
        %418 = vmatpush1.msra.mxu0 0.0
        %419 = vmatprep.subr.mxu0 0.0
        %420 = vmatpush1.msra.mxu0 0.0
        %421 = vmatprep.subr.mxu0 0.0
        %422 = vmatpush1.msra.mxu0 0.0
        %423 = vmatprep.subr.mxu0 0.0
        %424 = vmatpush1.msra.mxu0 0.0
        %425 = vmatprep.subr.mxu0 0.0
        %426 = vmatpush1.msra.mxu0 0.0
        %427 = vmatprep.subr.mxu0 0.0
        %428 = vmatpush1.msra.mxu0 0.0
        %429 = vmatprep.subr.mxu0 0.0
        %430 = vmatpush1.msra.mxu0 0.0
        %431 = vmatprep.subr.mxu0 0.0
        %432 = vmatpush1.msra.mxu0 0.0
        %433 = vmatprep.subr.mxu0 0.0
        %434 = vmatpush1.msra.mxu0 0.0
        %435 = vmatprep.subr.mxu0 0.0
        %436 = vmatpush1.msra.mxu0 0.0
        %437 = vmatprep.subr.mxu0 0.0
        %438 = vmatpush1.msra.mxu0 0.0
        %439 = vmatprep.mubr.f32.mxu0 0.0
        %440 = vmatmul.mubr.f32.gmra.mrb[0].mxu0 %v276
        %v441 = vpop.f32.mrb[0].mxu0
        %v442 = vadd.f32 0.0, %v441
        %v443 = vpop.f32.mrb[0].mxu0
        %v444 = vadd.f32 0.0, %v443
        %445 = vmatprep.mubr.f32.mxu0 0.0
        %446 = vmatmul.mubr.f32.gmra.mrb[0].mxu0 %v279
        %v447 = vpop.f32.mrb[0].mxu0
        %v448 = vadd.f32 0.0, %v447
        %v449 = vpop.f32.mrb[0].mxu0
        %v450 = vadd.f32 0.0, %v449
        %451 = vdwg.mxu0
        %s452 = scalar_lea.vmem [#allocation7], 256
        %v453 = vld [vmem:[%s452] sm:$0xff]
        %v454 = vld [vmem:[%s452 + $0x8] sm:$0xff]
        %v455 = vld [vmem:[%s452 + $0x10] sm:$0xff]
        %v456 = vld [vmem:[%s452 + $0x18] sm:$0xff]
        %v457 = vld [vmem:[%s452 + $0x20] sm:$0xff]
        %v458 = vld [vmem:[%s452 + $0x28] sm:$0xff]
        %v459 = vld [vmem:[%s452 + $0x30] sm:$0xff]
        %v460 = vld [vmem:[%s452 + $0x38] sm:$0xff]
        %v461 = vld [vmem:[%s452 + $0x40] sm:$0xff]
        %v462 = vld [vmem:[%s452 + $0x48] sm:$0xff]
        %v463 = vld [vmem:[%s452 + $0x50] sm:$0xff]
        %v464 = vld [vmem:[%s452 + $0x58] sm:$0xff]
        %v465 = vld [vmem:[%s452 + $0x60] sm:$0xff]
        %v466 = vld [vmem:[%s452 + $0x68] sm:$0xff]
        %v467 = vld [vmem:[%s452 + $0x70] sm:$0xff]
        %v468 = vld [vmem:[%s452 + $0x78] sm:$0xff]
        %469 = vmatprep.subr.mxu0 0.0
        %470 = vmatpush1.msra.mxu0 %v453
        %471 = vmatprep.subr.mxu0 0.0
        %472 = vmatpush1.msra.mxu0 %v454
        %473 = vmatprep.subr.mxu0 0.0
        %474 = vmatpush1.msra.mxu0 %v455
        %475 = vmatprep.subr.mxu0 0.0
        %476 = vmatpush1.msra.mxu0 %v456
        %477 = vmatprep.subr.mxu0 0.0
        %478 = vmatpush1.msra.mxu0 %v457
        %479 = vmatprep.subr.mxu0 0.0
        %480 = vmatpush1.msra.mxu0 %v458
        %481 = vmatprep.subr.mxu0 0.0
        %482 = vmatpush1.msra.mxu0 %v459
        %483 = vmatprep.subr.mxu0 0.0
        %484 = vmatpush1.msra.mxu0 %v460
        %485 = vmatprep.subr.mxu0 0.0
        %486 = vmatpush1.msra.mxu0 %v461
        %487 = vmatprep.subr.mxu0 0.0
        %488 = vmatpush1.msra.mxu0 %v462
        %489 = vmatprep.subr.mxu0 0.0
        %490 = vmatpush1.msra.mxu0 %v463
        %491 = vmatprep.subr.mxu0 0.0
        %492 = vmatpush1.msra.mxu0 %v464
        %493 = vmatprep.subr.mxu0 0.0
        %494 = vmatpush1.msra.mxu0 %v465
        %495 = vmatprep.subr.mxu0 0.0
        %496 = vmatpush1.msra.mxu0 %v466
        %497 = vmatprep.subr.mxu0 0.0
        %498 = vmatpush1.msra.mxu0 %v467
        %499 = vmatprep.subr.mxu0 0.0
        %500 = vmatpush1.msra.mxu0 %v468
        %501 = vmatprep.subr.mxu0 0.0
        %502 = vmatpush1.msra.mxu0 0.0
        %503 = vmatprep.subr.mxu0 0.0
        %504 = vmatpush1.msra.mxu0 0.0
        %505 = vmatprep.subr.mxu0 0.0
        %506 = vmatpush1.msra.mxu0 0.0
        %507 = vmatprep.subr.mxu0 0.0
        %508 = vmatpush1.msra.mxu0 0.0
        %509 = vmatprep.subr.mxu0 0.0
        %510 = vmatpush1.msra.mxu0 0.0
        %511 = vmatprep.subr.mxu0 0.0
        %512 = vmatpush1.msra.mxu0 0.0
        %513 = vmatprep.subr.mxu0 0.0
        %514 = vmatpush1.msra.mxu0 0.0
        %515 = vmatprep.subr.mxu0 0.0
        %516 = vmatpush1.msra.mxu0 0.0
        %517 = vmatprep.subr.mxu0 0.0
        %518 = vmatpush1.msra.mxu0 0.0
        %519 = vmatprep.subr.mxu0 0.0
        %520 = vmatpush1.msra.mxu0 0.0
        %521 = vmatprep.subr.mxu0 0.0
        %522 = vmatpush1.msra.mxu0 0.0
        %523 = vmatprep.subr.mxu0 0.0
        %524 = vmatpush1.msra.mxu0 0.0
        %525 = vmatprep.subr.mxu0 0.0
        %526 = vmatpush1.msra.mxu0 0.0
        %527 = vmatprep.subr.mxu0 0.0
        %528 = vmatpush1.msra.mxu0 0.0
        %529 = vmatprep.subr.mxu0 0.0
        %530 = vmatpush1.msra.mxu0 0.0
        %531 = vmatprep.subr.mxu0 0.0
        %532 = vmatpush1.msra.mxu0 0.0
        %533 = vmatprep.mubr.f32.mxu0 0.0
        %534 = vmatmul.mubr.f32.gmra.mrb[0].mxu0 %v442
        %v535 = vpop.f32.mrb[0].mxu0
        %v536 = vadd.f32 0.0, %v535
        %v537 = vpop.f32.mrb[0].mxu0
        %538 = vmatprep.mubr.f32.mxu0 0.0
        %539 = vmatmul.mubr.f32.gmra.mrb[0].mxu0 %v448
        %v540 = vpop.f32.mrb[0].mxu0
        %v541 = vadd.f32 0.0, %v540
        %v542 = vpop.f32.mrb[0].mxu0
        %543 = vdwg.mxu0
        %544 = vmatprep.subr.mxu0 0.0
        %545 = vmatpush1.msra.mxu0 %v359
        %546 = vmatprep.subr.mxu0 0.0
        %547 = vmatpush1.msra.mxu0 %v360
        %548 = vmatprep.subr.mxu0 0.0
        %549 = vmatpush1.msra.mxu0 %v361
        %550 = vmatprep.subr.mxu0 0.0
        %551 = vmatpush1.msra.mxu0 %v362
        %552 = vmatprep.subr.mxu0 0.0
        %553 = vmatpush1.msra.mxu0 %v363
        %554 = vmatprep.subr.mxu0 0.0
        %555 = vmatpush1.msra.mxu0 %v364
        %556 = vmatprep.subr.mxu0 0.0
        %557 = vmatpush1.msra.mxu0 %v365
        %558 = vmatprep.subr.mxu0 0.0
        %559 = vmatpush1.msra.mxu0 %v366
        %560 = vmatprep.subr.mxu0 0.0
        %561 = vmatpush1.msra.mxu0 %v367
        %562 = vmatprep.subr.mxu0 0.0
        %563 = vmatpush1.msra.mxu0 %v368
        %564 = vmatprep.subr.mxu0 0.0
        %565 = vmatpush1.msra.mxu0 %v369
        %566 = vmatprep.subr.mxu0 0.0
        %567 = vmatpush1.msra.mxu0 %v370
        %568 = vmatprep.subr.mxu0 0.0
        %569 = vmatpush1.msra.mxu0 %v371
        %570 = vmatprep.subr.mxu0 0.0
        %571 = vmatpush1.msra.mxu0 %v372
        %572 = vmatprep.subr.mxu0 0.0
        %573 = vmatpush1.msra.mxu0 %v373
        %574 = vmatprep.subr.mxu0 0.0
        %575 = vmatpush1.msra.mxu0 %v374
        %576 = vmatprep.subr.mxu0 0.0
        %577 = vmatpush1.msra.mxu0 0.0
        %578 = vmatprep.subr.mxu0 0.0
        %579 = vmatpush1.msra.mxu0 0.0
        %580 = vmatprep.subr.mxu0 0.0
        %581 = vmatpush1.msra.mxu0 0.0
        %582 = vmatprep.subr.mxu0 0.0
        %583 = vmatpush1.msra.mxu0 0.0
        %584 = vmatprep.subr.mxu0 0.0
        %585 = vmatpush1.msra.mxu0 0.0
        %586 = vmatprep.subr.mxu0 0.0
        %587 = vmatpush1.msra.mxu0 0.0
        %588 = vmatprep.subr.mxu0 0.0
        %589 = vmatpush1.msra.mxu0 0.0
        %590 = vmatprep.subr.mxu0 0.0
        %591 = vmatpush1.msra.mxu0 0.0
        %592 = vmatprep.subr.mxu0 0.0
        %593 = vmatpush1.msra.mxu0 0.0
        %594 = vmatprep.subr.mxu0 0.0
        %595 = vmatpush1.msra.mxu0 0.0
        %596 = vmatprep.subr.mxu0 0.0
        %597 = vmatpush1.msra.mxu0 0.0
        %598 = vmatprep.subr.mxu0 0.0
        %599 = vmatpush1.msra.mxu0 0.0
        %600 = vmatprep.subr.mxu0 0.0
        %601 = vmatpush1.msra.mxu0 0.0
        %602 = vmatprep.subr.mxu0 0.0
        %603 = vmatpush1.msra.mxu0 0.0
        %604 = vmatprep.subr.mxu0 0.0
        %605 = vmatpush1.msra.mxu0 0.0
        %606 = vmatprep.subr.mxu0 0.0
        %607 = vmatpush1.msra.mxu0 0.0
        %608 = vmatprep.mubr.f32.mxu0 0.0
        %609 = vmatmul.mubr.f32.gmra.mrb[0].mxu0 %v348
        %v610 = vpop.f32.mrb[0].mxu0
        %v611 = vadd.f32 %v536, %v610
        %v612 = vpop.f32.mrb[0].mxu0
        %613 = vmatprep.mubr.f32.mxu0 0.0
        %614 = vmatmul.mubr.f32.gmra.mrb[0].mxu0 %v354
        %v615 = vpop.f32.mrb[0].mxu0
        %v616 = vadd.f32 %v541, %v615
        %v617 = vpop.f32.mrb[0].mxu0
        %618 = vdwg.mxu0
        %619 = vmatprep.subr.mxu0 0.0
        %620 = vmatpush1.msra.mxu0 %v453
        %621 = vmatprep.subr.mxu0 0.0
        %622 = vmatpush1.msra.mxu0 %v454
        %623 = vmatprep.subr.mxu0 0.0
        %624 = vmatpush1.msra.mxu0 %v455
        %625 = vmatprep.subr.mxu0 0.0
        %626 = vmatpush1.msra.mxu0 %v456
        %627 = vmatprep.subr.mxu0 0.0
        %628 = vmatpush1.msra.mxu0 %v457
        %629 = vmatprep.subr.mxu0 0.0
        %630 = vmatpush1.msra.mxu0 %v458
        %631 = vmatprep.subr.mxu0 0.0
        %632 = vmatpush1.msra.mxu0 %v459
        %633 = vmatprep.subr.mxu0 0.0
        %634 = vmatpush1.msra.mxu0 %v460
        %635 = vmatprep.subr.mxu0 0.0
        %636 = vmatpush1.msra.mxu0 %v461
        %637 = vmatprep.subr.mxu0 0.0
        %638 = vmatpush1.msra.mxu0 %v462
        %639 = vmatprep.subr.mxu0 0.0
        %640 = vmatpush1.msra.mxu0 %v463
        %641 = vmatprep.subr.mxu0 0.0
        %642 = vmatpush1.msra.mxu0 %v464
        %643 = vmatprep.subr.mxu0 0.0
        %644 = vmatpush1.msra.mxu0 %v465
        %645 = vmatprep.subr.mxu0 0.0
        %646 = vmatpush1.msra.mxu0 %v466
        %647 = vmatprep.subr.mxu0 0.0
        %648 = vmatpush1.msra.mxu0 %v467
        %649 = vmatprep.subr.mxu0 0.0
        %650 = vmatpush1.msra.mxu0 %v468
        %651 = vmatprep.subr.mxu0 0.0
        %652 = vmatpush1.msra.mxu0 0.0
        %653 = vmatprep.subr.mxu0 0.0
        %654 = vmatpush1.msra.mxu0 0.0
        %655 = vmatprep.subr.mxu0 0.0
        %656 = vmatpush1.msra.mxu0 0.0
        %657 = vmatprep.subr.mxu0 0.0
        %658 = vmatpush1.msra.mxu0 0.0
        %659 = vmatprep.subr.mxu0 0.0
        %660 = vmatpush1.msra.mxu0 0.0
        %661 = vmatprep.subr.mxu0 0.0
        %662 = vmatpush1.msra.mxu0 0.0
        %663 = vmatprep.subr.mxu0 0.0
        %664 = vmatpush1.msra.mxu0 0.0
        %665 = vmatprep.subr.mxu0 0.0
        %666 = vmatpush1.msra.mxu0 0.0
        %667 = vmatprep.subr.mxu0 0.0
        %668 = vmatpush1.msra.mxu0 0.0
        %669 = vmatprep.subr.mxu0 0.0
        %670 = vmatpush1.msra.mxu0 0.0
        %671 = vmatprep.subr.mxu0 0.0
        %672 = vmatpush1.msra.mxu0 0.0
        %673 = vmatprep.subr.mxu0 0.0
        %674 = vmatpush1.msra.mxu0 0.0
        %675 = vmatprep.subr.mxu0 0.0
        %676 = vmatpush1.msra.mxu0 0.0
        %677 = vmatprep.subr.mxu0 0.0
        %678 = vmatpush1.msra.mxu0 0.0
        %679 = vmatprep.subr.mxu0 0.0
        %680 = vmatpush1.msra.mxu0 0.0
        %681 = vmatprep.subr.mxu0 0.0
        %682 = vmatpush1.msra.mxu0 0.0
        %683 = vmatprep.mubr.f32.mxu0 0.0
        %684 = vmatmul.mubr.f32.gmra.mrb[0].mxu0 %v444
        %v685 = vpop.f32.mrb[0].mxu0
        %v686 = vadd.f32 0.0, %v685
        %v687 = vpop.f32.mrb[0].mxu0
        %688 = vmatprep.mubr.f32.mxu0 0.0
        %689 = vmatmul.mubr.f32.gmra.mrb[0].mxu0 %v450
        %v690 = vpop.f32.mrb[0].mxu0
        %v691 = vadd.f32 0.0, %v690
        %v692 = vpop.f32.mrb[0].mxu0
        %693 = vdwg.mxu0
        %694 = vmatprep.subr.mxu0 0.0
        %695 = vmatpush1.msra.mxu0 %v359
        %696 = vmatprep.subr.mxu0 0.0
        %697 = vmatpush1.msra.mxu0 %v360
        %698 = vmatprep.subr.mxu0 0.0
        %699 = vmatpush1.msra.mxu0 %v361
        %700 = vmatprep.subr.mxu0 0.0
        %701 = vmatpush1.msra.mxu0 %v362
        %702 = vmatprep.subr.mxu0 0.0
        %703 = vmatpush1.msra.mxu0 %v363
        %704 = vmatprep.subr.mxu0 0.0
        %705 = vmatpush1.msra.mxu0 %v364
        %706 = vmatprep.subr.mxu0 0.0
        %707 = vmatpush1.msra.mxu0 %v365
        %708 = vmatprep.subr.mxu0 0.0
        %709 = vmatpush1.msra.mxu0 %v366
        %710 = vmatprep.subr.mxu0 0.0
        %711 = vmatpush1.msra.mxu0 %v367
        %712 = vmatprep.subr.mxu0 0.0
        %713 = vmatpush1.msra.mxu0 %v368
        %714 = vmatprep.subr.mxu0 0.0
        %715 = vmatpush1.msra.mxu0 %v369
        %716 = vmatprep.subr.mxu0 0.0
        %717 = vmatpush1.msra.mxu0 %v370
        %718 = vmatprep.subr.mxu0 0.0
        %719 = vmatpush1.msra.mxu0 %v371
        %720 = vmatprep.subr.mxu0 0.0
        %721 = vmatpush1.msra.mxu0 %v372
        %722 = vmatprep.subr.mxu0 0.0
        %723 = vmatpush1.msra.mxu0 %v373
        %724 = vmatprep.subr.mxu0 0.0
        %725 = vmatpush1.msra.mxu0 %v374
        %726 = vmatprep.subr.mxu0 0.0
        %727 = vmatpush1.msra.mxu0 0.0
        %728 = vmatprep.subr.mxu0 0.0
        %729 = vmatpush1.msra.mxu0 0.0
        %730 = vmatprep.subr.mxu0 0.0
        %731 = vmatpush1.msra.mxu0 0.0
        %732 = vmatprep.subr.mxu0 0.0
        %733 = vmatpush1.msra.mxu0 0.0
        %734 = vmatprep.subr.mxu0 0.0
        %735 = vmatpush1.msra.mxu0 0.0
        %736 = vmatprep.subr.mxu0 0.0
        %737 = vmatpush1.msra.mxu0 0.0
        %738 = vmatprep.subr.mxu0 0.0
        %739 = vmatpush1.msra.mxu0 0.0
        %740 = vmatprep.subr.mxu0 0.0
        %741 = vmatpush1.msra.mxu0 0.0
        %742 = vmatprep.subr.mxu0 0.0
        %743 = vmatpush1.msra.mxu0 0.0
        %744 = vmatprep.subr.mxu0 0.0
        %745 = vmatpush1.msra.mxu0 0.0
        %746 = vmatprep.subr.mxu0 0.0
        %747 = vmatpush1.msra.mxu0 0.0
        %748 = vmatprep.subr.mxu0 0.0
        %749 = vmatpush1.msra.mxu0 0.0
        %750 = vmatprep.subr.mxu0 0.0
        %751 = vmatpush1.msra.mxu0 0.0
        %752 = vmatprep.subr.mxu0 0.0
        %753 = vmatpush1.msra.mxu0 0.0
        %754 = vmatprep.subr.mxu0 0.0
        %755 = vmatpush1.msra.mxu0 0.0
        %756 = vmatprep.subr.mxu0 0.0
        %757 = vmatpush1.msra.mxu0 0.0
        %758 = vmatprep.mubr.f32.mxu0 0.0
        %759 = vmatmul.mubr.f32.gmra.mrb[0].mxu0 %v350
        %v760 = vpop.f32.mrb[0].mxu0
        %v761 = vadd.f32 %v686, %v760
        %v762 = vpop.f32.mrb[0].mxu0
        %763 = vmatprep.mubr.f32.mxu0 0.0
        %764 = vmatmul.mubr.f32.gmra.mrb[0].mxu0 %v356
        %v765 = vpop.f32.mrb[0].mxu0
        %v766 = vadd.f32 %v691, %v765
        %v767 = vpop.f32.mrb[0].mxu0
        %768 = vdwg.mxu0
        %769 = vmatprep.subr.mxu0 0.0
        %770 = vmatpush1.msra.mxu0 %v256
        %771 = vmatprep.subr.mxu0 0.0
        %772 = vmatpush1.msra.mxu0 %v257
        %773 = vmatprep.subr.mxu0 0.0
        %774 = vmatpush1.msra.mxu0 %v258
        %775 = vmatprep.subr.mxu0 0.0
        %776 = vmatpush1.msra.mxu0 %v259
        %777 = vmatprep.subr.mxu0 0.0
        %778 = vmatpush1.msra.mxu0 %v260
        %779 = vmatprep.subr.mxu0 0.0
        %780 = vmatpush1.msra.mxu0 %v261
        %781 = vmatprep.subr.mxu0 0.0
        %782 = vmatpush1.msra.mxu0 %v262
        %783 = vmatprep.subr.mxu0 0.0
        %784 = vmatpush1.msra.mxu0 %v263
        %785 = vmatprep.subr.mxu0 0.0
        %786 = vmatpush1.msra.mxu0 %v264
        %787 = vmatprep.subr.mxu0 0.0
        %788 = vmatpush1.msra.mxu0 %v265
        %789 = vmatprep.subr.mxu0 0.0
        %790 = vmatpush1.msra.mxu0 %v266
        %791 = vmatprep.subr.mxu0 0.0
        %792 = vmatpush1.msra.mxu0 %v267
        %793 = vmatprep.subr.mxu0 0.0
        %794 = vmatpush1.msra.mxu0 %v268
        %795 = vmatprep.subr.mxu0 0.0
        %796 = vmatpush1.msra.mxu0 %v269
        %797 = vmatprep.subr.mxu0 0.0
        %798 = vmatpush1.msra.mxu0 %v270
        %799 = vmatprep.subr.mxu0 0.0
        %800 = vmatpush1.msra.mxu0 %v271
        %801 = vmatprep.subr.mxu0 0.0
        %802 = vmatpush1.msra.mxu0 0.0
        %803 = vmatprep.subr.mxu0 0.0
        %804 = vmatpush1.msra.mxu0 0.0
        %805 = vmatprep.subr.mxu0 0.0
        %806 = vmatpush1.msra.mxu0 0.0
        %807 = vmatprep.subr.mxu0 0.0
        %808 = vmatpush1.msra.mxu0 0.0
        %809 = vmatprep.subr.mxu0 0.0
        %810 = vmatpush1.msra.mxu0 0.0
        %811 = vmatprep.subr.mxu0 0.0
        %812 = vmatpush1.msra.mxu0 0.0
        %813 = vmatprep.subr.mxu0 0.0
        %814 = vmatpush1.msra.mxu0 0.0
        %815 = vmatprep.subr.mxu0 0.0
        %816 = vmatpush1.msra.mxu0 0.0
        %817 = vmatprep.subr.mxu0 0.0
        %818 = vmatpush1.msra.mxu0 0.0
        %819 = vmatprep.subr.mxu0 0.0
        %820 = vmatpush1.msra.mxu0 0.0
        %821 = vmatprep.subr.mxu0 0.0
        %822 = vmatpush1.msra.mxu0 0.0
        %823 = vmatprep.subr.mxu0 0.0
        %824 = vmatpush1.msra.mxu0 0.0
        %825 = vmatprep.subr.mxu0 0.0
        %826 = vmatpush1.msra.mxu0 0.0
        %827 = vmatprep.subr.mxu0 0.0
        %828 = vmatpush1.msra.mxu0 0.0
        %829 = vmatprep.subr.mxu0 0.0
        %830 = vmatpush1.msra.mxu0 0.0
        %831 = vmatprep.subr.mxu0 0.0
        %832 = vmatpush1.msra.mxu0 0.0
        %833 = vmatprep.mubr.f32.mxu0 0.0
        %834 = vmatmul.mubr.f32.gmra.mrb[0].mxu0 %v245
        %v835 = vpop.f32.mrb[0].mxu0
        %v836 = vadd.f32 %v611, %v835
        %v837 = vpop.f32.mrb[0].mxu0
        %838 = vmatprep.mubr.f32.mxu0 0.0
        %839 = vmatmul.mubr.f32.gmra.mrb[0].mxu0 %v247
        %v840 = vpop.f32.mrb[0].mxu0
        %v841 = vadd.f32 %v616, %v840
        %v842 = vpop.f32.mrb[0].mxu0
        %843 = vdwg.mxu0
        %844 = vmatprep.subr.mxu0 0.0
        %845 = vmatpush1.msra.mxu0 %v256
        %846 = vmatprep.subr.mxu0 0.0
        %847 = vmatpush1.msra.mxu0 %v257
        %848 = vmatprep.subr.mxu0 0.0
        %849 = vmatpush1.msra.mxu0 %v258
        %850 = vmatprep.subr.mxu0 0.0
        %851 = vmatpush1.msra.mxu0 %v259
        %852 = vmatprep.subr.mxu0 0.0
        %853 = vmatpush1.msra.mxu0 %v260
        %854 = vmatprep.subr.mxu0 0.0
        %855 = vmatpush1.msra.mxu0 %v261
        %856 = vmatprep.subr.mxu0 0.0
        %857 = vmatpush1.msra.mxu0 %v262
        %858 = vmatprep.subr.mxu0 0.0
        %859 = vmatpush1.msra.mxu0 %v263
        %860 = vmatprep.subr.mxu0 0.0
        %861 = vmatpush1.msra.mxu0 %v264
        %862 = vmatprep.subr.mxu0 0.0
        %863 = vmatpush1.msra.mxu0 %v265
        %864 = vmatprep.subr.mxu0 0.0
        %865 = vmatpush1.msra.mxu0 %v266
        %866 = vmatprep.subr.mxu0 0.0
        %867 = vmatpush1.msra.mxu0 %v267
        %868 = vmatprep.subr.mxu0 0.0
        %869 = vmatpush1.msra.mxu0 %v268
        %870 = vmatprep.subr.mxu0 0.0
        %871 = vmatpush1.msra.mxu0 %v269
        %872 = vmatprep.subr.mxu0 0.0
        %873 = vmatpush1.msra.mxu0 %v270
        %874 = vmatprep.subr.mxu0 0.0
        %875 = vmatpush1.msra.mxu0 %v271
        %876 = vmatprep.subr.mxu0 0.0
        %877 = vmatpush1.msra.mxu0 0.0
        %878 = vmatprep.subr.mxu0 0.0
        %879 = vmatpush1.msra.mxu0 0.0
        %880 = vmatprep.subr.mxu0 0.0
        %881 = vmatpush1.msra.mxu0 0.0
        %882 = vmatprep.subr.mxu0 0.0
        %883 = vmatpush1.msra.mxu0 0.0
        %884 = vmatprep.subr.mxu0 0.0
        %885 = vmatpush1.msra.mxu0 0.0
        %886 = vmatprep.subr.mxu0 0.0
        %887 = vmatpush1.msra.mxu0 0.0
        %888 = vmatprep.subr.mxu0 0.0
        %889 = vmatpush1.msra.mxu0 0.0
        %890 = vmatprep.subr.mxu0 0.0
        %891 = vmatpush1.msra.mxu0 0.0
        %892 = vmatprep.subr.mxu0 0.0
        %893 = vmatpush1.msra.mxu0 0.0
        %894 = vmatprep.subr.mxu0 0.0
        %895 = vmatpush1.msra.mxu0 0.0
        %896 = vmatprep.subr.mxu0 0.0
        %897 = vmatpush1.msra.mxu0 0.0
        %898 = vmatprep.subr.mxu0 0.0
        %899 = vmatpush1.msra.mxu0 0.0
        %900 = vmatprep.subr.mxu0 0.0
        %901 = vmatpush1.msra.mxu0 0.0
        %902 = vmatprep.subr.mxu0 0.0
        %903 = vmatpush1.msra.mxu0 0.0
        %904 = vmatprep.subr.mxu0 0.0
        %905 = vmatpush1.msra.mxu0 0.0
        %906 = vmatprep.subr.mxu0 0.0
        %907 = vmatpush1.msra.mxu0 0.0
        %908 = vmatprep.mubr.f32.mxu0 0.0
        %909 = vmatmul.mubr.f32.gmra.mrb[0].mxu0 %v246
        %v910 = vpop.f32.mrb[0].mxu0
        %v911 = vadd.f32 %v761, %v910
        %v912 = vpop.f32.mrb[0].mxu0
        %913 = vmatprep.mubr.f32.mxu0 0.0
        %914 = vmatmul.mubr.f32.gmra.mrb[0].mxu0 %v248
        %v915 = vpop.f32.mrb[0].mxu0
        %v916 = vadd.f32 %v766, %v915
        %v917 = vpop.f32.mrb[0].mxu0
        %918 = vdwg.mxu0
        %s919 = scalar_lea.vmem [#allocation5], 16
        %v920 = vld [vmem:[%s919] sm:$0xff]
        %v921 = vld [vmem:[%s919 + $0x8] sm:$0xff]
        %v923 = vsel %vm274, %v920, 0
        %v926 = vsel %vm274, %v921, 0
        %928 = vmatprep.subr.mxu0 %v246
        %929 = vmatpush1.msra.mxu0 %v245
        %930 = vmatprep.subr.mxu0 %v248
        %931 = vmatpush1.msra.mxu0 %v247
        %932 = vmatprep.subr.mxu0 0.0
        %933 = vmatpush1.msra.mxu0 0.0
        %934 = vmatprep.subr.mxu0 0.0
        %935 = vmatpush1.msra.mxu0 0.0
        %936 = vmatprep.subr.mxu0 0.0
        %937 = vmatpush1.msra.mxu0 0.0
        %938 = vmatprep.subr.mxu0 0.0
        %939 = vmatpush1.msra.mxu0 0.0
        %940 = vmatprep.subr.mxu0 0.0
        %941 = vmatpush1.msra.mxu0 0.0
        %942 = vmatprep.subr.mxu0 0.0
        %943 = vmatpush1.msra.mxu0 0.0
        %944 = vmatprep.subr.mxu0 0.0
        %945 = vmatpush1.msra.mxu0 0.0
        %946 = vmatprep.subr.mxu0 0.0
        %947 = vmatpush1.msra.mxu0 0.0
        %948 = vmatprep.subr.mxu0 0.0
        %949 = vmatpush1.msra.mxu0 0.0
        %950 = vmatprep.subr.mxu0 0.0
        %951 = vmatpush1.msra.mxu0 0.0
        %952 = vmatprep.subr.mxu0 0.0
        %953 = vmatpush1.msra.mxu0 0.0
        %954 = vmatprep.subr.mxu0 0.0
        %955 = vmatpush1.msra.mxu0 0.0
        %956 = vmatprep.subr.mxu0 0.0
        %957 = vmatpush1.msra.mxu0 0.0
        %958 = vmatprep.subr.mxu0 0.0
        %959 = vmatpush1.msra.mxu0 0.0
        %960 = vmatprep.subr.mxu0 0.0
        %961 = vmatpush1.msra.mxu0 0.0
        %962 = vmatprep.subr.mxu0 0.0
        %963 = vmatpush1.msra.mxu0 0.0
        %964 = vmatprep.subr.mxu0 0.0
        %965 = vmatpush1.msra.mxu0 0.0
        %966 = vmatprep.subr.mxu0 0.0
        %967 = vmatpush1.msra.mxu0 0.0
        %968 = vmatprep.subr.mxu0 0.0
        %969 = vmatpush1.msra.mxu0 0.0
        %970 = vmatprep.subr.mxu0 0.0
        %971 = vmatpush1.msra.mxu0 0.0
        %972 = vmatprep.subr.mxu0 0.0
        %973 = vmatpush1.msra.mxu0 0.0
        %974 = vmatprep.subr.mxu0 0.0
        %975 = vmatpush1.msra.mxu0 0.0
        %976 = vmatprep.subr.mxu0 0.0
        %977 = vmatpush1.msra.mxu0 0.0
        %978 = vmatprep.subr.mxu0 0.0
        %979 = vmatpush1.msra.mxu0 0.0
        %980 = vmatprep.subr.mxu0 0.0
        %981 = vmatpush1.msra.mxu0 0.0
        %982 = vmatprep.subr.mxu0 0.0
        %983 = vmatpush1.msra.mxu0 0.0
        %984 = vmatprep.subr.mxu0 0.0
        %985 = vmatpush1.msra.mxu0 0.0
        %986 = vmatprep.subr.mxu0 0.0
        %987 = vmatpush1.msra.mxu0 0.0
        %988 = vmatprep.subr.mxu0 0.0
        %989 = vmatpush1.msra.mxu0 0.0
        %990 = vmatprep.subr.mxu0 0.0
        %991 = vmatpush1.msra.mxu0 0.0
        %992 = vmatprep.mubr.f32.mxu0 0.0
        %993 = vmatmul.mubr.f32.gmra.mrb[0].mxu0 %v923
        %v994 = vpop.f32.mrb[0].mxu0
        %v995 = vadd.f32 0.0, %v994
        %v996 = vpop.f32.mrb[0].mxu0
        %v997 = vadd.f32 0.0, %v996
        %998 = vmatprep.mubr.f32.mxu0 0.0
        %999 = vmatmul.mubr.f32.gmra.mrb[0].mxu0 %v926
        %v1000 = vpop.f32.mrb[0].mxu0
        %v1001 = vadd.f32 0.0, %v1000
        %v1002 = vpop.f32.mrb[0].mxu0
        %v1003 = vadd.f32 0.0, %v1002
        %1004 = vdwg.mxu0
        %s1005 = scalar_lea.vmem [#allocation7], 384
        %v1006 = vld [vmem:[%s1005] sm:$0xff]
        %v1007 = vld [vmem:[%s1005 + $0x8] sm:$0xff]
        %v1008 = vld [vmem:[%s1005 + $0x10] sm:$0xff]
        %v1009 = vld [vmem:[%s1005 + $0x18] sm:$0xff]
        %v1010 = vld [vmem:[%s1005 + $0x20] sm:$0xff]
        %v1011 = vld [vmem:[%s1005 + $0x28] sm:$0xff]
        %v1012 = vld [vmem:[%s1005 + $0x30] sm:$0xff]
        %v1013 = vld [vmem:[%s1005 + $0x38] sm:$0xff]
        %v1014 = vld [vmem:[%s1005 + $0x40] sm:$0xff]
        %v1015 = vld [vmem:[%s1005 + $0x48] sm:$0xff]
        %v1016 = vld [vmem:[%s1005 + $0x50] sm:$0xff]
        %v1017 = vld [vmem:[%s1005 + $0x58] sm:$0xff]
        %v1018 = vld [vmem:[%s1005 + $0x60] sm:$0xff]
        %v1019 = vld [vmem:[%s1005 + $0x68] sm:$0xff]
        %v1020 = vld [vmem:[%s1005 + $0x70] sm:$0xff]
        %v1021 = vld [vmem:[%s1005 + $0x78] sm:$0xff]
        %1022 = vmatprep.subr.mxu0 %v997
        %1023 = vmatpush1.msra.mxu0 %v995
        %1024 = vmatprep.subr.mxu0 %v1003
        %1025 = vmatpush1.msra.mxu0 %v1001
        %1026 = vmatprep.subr.mxu0 0.0
        %1027 = vmatpush1.msra.mxu0 0.0
        %1028 = vmatprep.subr.mxu0 0.0
        %1029 = vmatpush1.msra.mxu0 0.0
        %1030 = vmatprep.subr.mxu0 0.0
        %1031 = vmatpush1.msra.mxu0 0.0
        %1032 = vmatprep.subr.mxu0 0.0
        %1033 = vmatpush1.msra.mxu0 0.0
        %1034 = vmatprep.subr.mxu0 0.0
        %1035 = vmatpush1.msra.mxu0 0.0
        %1036 = vmatprep.subr.mxu0 0.0
        %1037 = vmatpush1.msra.mxu0 0.0
        %1038 = vmatprep.subr.mxu0 0.0
        %1039 = vmatpush1.msra.mxu0 0.0
        %1040 = vmatprep.subr.mxu0 0.0
        %1041 = vmatpush1.msra.mxu0 0.0
        %1042 = vmatprep.subr.mxu0 0.0
        %1043 = vmatpush1.msra.mxu0 0.0
        %1044 = vmatprep.subr.mxu0 0.0
        %1045 = vmatpush1.msra.mxu0 0.0
        %1046 = vmatprep.subr.mxu0 0.0
        %1047 = vmatpush1.msra.mxu0 0.0
        %1048 = vmatprep.subr.mxu0 0.0
        %1049 = vmatpush1.msra.mxu0 0.0
        %1050 = vmatprep.subr.mxu0 0.0
        %1051 = vmatpush1.msra.mxu0 0.0
        %1052 = vmatprep.subr.mxu0 0.0
        %1053 = vmatpush1.msra.mxu0 0.0
        %1054 = vmatprep.subr.mxu0 0.0
        %1055 = vmatpush1.msra.mxu0 0.0
        %1056 = vmatprep.subr.mxu0 0.0
        %1057 = vmatpush1.msra.mxu0 0.0
        %1058 = vmatprep.subr.mxu0 0.0
        %1059 = vmatpush1.msra.mxu0 0.0
        %1060 = vmatprep.subr.mxu0 0.0
        %1061 = vmatpush1.msra.mxu0 0.0
        %1062 = vmatprep.subr.mxu0 0.0
        %1063 = vmatpush1.msra.mxu0 0.0
        %1064 = vmatprep.subr.mxu0 0.0
        %1065 = vmatpush1.msra.mxu0 0.0
        %1066 = vmatprep.subr.mxu0 0.0
        %1067 = vmatpush1.msra.mxu0 0.0
        %1068 = vmatprep.subr.mxu0 0.0
        %1069 = vmatpush1.msra.mxu0 0.0
        %1070 = vmatprep.subr.mxu0 0.0
        %1071 = vmatpush1.msra.mxu0 0.0
        %1072 = vmatprep.subr.mxu0 0.0
        %1073 = vmatpush1.msra.mxu0 0.0
        %1074 = vmatprep.subr.mxu0 0.0
        %1075 = vmatpush1.msra.mxu0 0.0
        %1076 = vmatprep.subr.mxu0 0.0
        %1077 = vmatpush1.msra.mxu0 0.0
        %1078 = vmatprep.subr.mxu0 0.0
        %1079 = vmatpush1.msra.mxu0 0.0
        %1080 = vmatprep.subr.mxu0 0.0
        %1081 = vmatpush1.msra.mxu0 0.0
        %1082 = vmatprep.subr.mxu0 0.0
        %1083 = vmatpush1.msra.mxu0 0.0
        %1084 = vmatprep.subr.mxu0 0.0
        %1085 = vmatpush1.msra.mxu0 0.0
        %1086 = vmatprep.mubr.f32.mxu0 0.0
        %1087 = vmatmul.mubr.f32.gmra.mrb[0].mxu0 %v923
        %v1088 = vpop.f32.mrb[0].mxu0
        %v1089 = vadd.f32 0.0, %v1088
        %v1090 = vpop.f32.mrb[0].mxu0
        %v1091 = vadd.f32 0.0, %v1090
        %1092 = vmatprep.mubr.f32.mxu0 0.0
        %1093 = vmatmul.mubr.f32.gmra.mrb[0].mxu0 %v926
        %v1094 = vpop.f32.mrb[0].mxu0
        %v1095 = vadd.f32 0.0, %v1094
        %v1096 = vpop.f32.mrb[0].mxu0
        %v1097 = vadd.f32 0.0, %v1096
        %1098 = vdwg.mxu0
        %s1099 = scalar_lea.vmem [#allocation7], 512
        %v1100 = vld [vmem:[%s1099] sm:$0xff]
        %v1101 = vld [vmem:[%s1099 + $0x8] sm:$0xff]
        %v1102 = vld [vmem:[%s1099 + $0x10] sm:$0xff]
        %v1103 = vld [vmem:[%s1099 + $0x18] sm:$0xff]
        %v1104 = vld [vmem:[%s1099 + $0x20] sm:$0xff]
        %v1105 = vld [vmem:[%s1099 + $0x28] sm:$0xff]
        %v1106 = vld [vmem:[%s1099 + $0x30] sm:$0xff]
        %v1107 = vld [vmem:[%s1099 + $0x38] sm:$0xff]
        %v1108 = vld [vmem:[%s1099 + $0x40] sm:$0xff]
        %v1109 = vld [vmem:[%s1099 + $0x48] sm:$0xff]
        %v1110 = vld [vmem:[%s1099 + $0x50] sm:$0xff]
        %v1111 = vld [vmem:[%s1099 + $0x58] sm:$0xff]
        %v1112 = vld [vmem:[%s1099 + $0x60] sm:$0xff]
        %v1113 = vld [vmem:[%s1099 + $0x68] sm:$0xff]
        %v1114 = vld [vmem:[%s1099 + $0x70] sm:$0xff]
        %v1115 = vld [vmem:[%s1099 + $0x78] sm:$0xff]
        %1116 = vmatprep.subr.mxu0 0.0
        %1117 = vmatpush1.msra.mxu0 %v1100
        %1118 = vmatprep.subr.mxu0 0.0
        %1119 = vmatpush1.msra.mxu0 %v1101
        %1120 = vmatprep.subr.mxu0 0.0
        %1121 = vmatpush1.msra.mxu0 %v1102
        %1122 = vmatprep.subr.mxu0 0.0
        %1123 = vmatpush1.msra.mxu0 %v1103
        %1124 = vmatprep.subr.mxu0 0.0
        %1125 = vmatpush1.msra.mxu0 %v1104
        %1126 = vmatprep.subr.mxu0 0.0
        %1127 = vmatpush1.msra.mxu0 %v1105
        %1128 = vmatprep.subr.mxu0 0.0
        %1129 = vmatpush1.msra.mxu0 %v1106
        %1130 = vmatprep.subr.mxu0 0.0
        %1131 = vmatpush1.msra.mxu0 %v1107
        %1132 = vmatprep.subr.mxu0 0.0
        %1133 = vmatpush1.msra.mxu0 %v1108
        %1134 = vmatprep.subr.mxu0 0.0
        %1135 = vmatpush1.msra.mxu0 %v1109
        %1136 = vmatprep.subr.mxu0 0.0
        %1137 = vmatpush1.msra.mxu0 %v1110
        %1138 = vmatprep.subr.mxu0 0.0
        %1139 = vmatpush1.msra.mxu0 %v1111
        %1140 = vmatprep.subr.mxu0 0.0
        %1141 = vmatpush1.msra.mxu0 %v1112
        %1142 = vmatprep.subr.mxu0 0.0
        %1143 = vmatpush1.msra.mxu0 %v1113
        %1144 = vmatprep.subr.mxu0 0.0
        %1145 = vmatpush1.msra.mxu0 %v1114
        %1146 = vmatprep.subr.mxu0 0.0
        %1147 = vmatpush1.msra.mxu0 %v1115
        %1148 = vmatprep.subr.mxu0 0.0
        %1149 = vmatpush1.msra.mxu0 0.0
        %1150 = vmatprep.subr.mxu0 0.0
        %1151 = vmatpush1.msra.mxu0 0.0
        %1152 = vmatprep.subr.mxu0 0.0
        %1153 = vmatpush1.msra.mxu0 0.0
        %1154 = vmatprep.subr.mxu0 0.0
        %1155 = vmatpush1.msra.mxu0 0.0
        %1156 = vmatprep.subr.mxu0 0.0
        %1157 = vmatpush1.msra.mxu0 0.0
        %1158 = vmatprep.subr.mxu0 0.0
        %1159 = vmatpush1.msra.mxu0 0.0
        %1160 = vmatprep.subr.mxu0 0.0
        %1161 = vmatpush1.msra.mxu0 0.0
        %1162 = vmatprep.subr.mxu0 0.0
        %1163 = vmatpush1.msra.mxu0 0.0
        %1164 = vmatprep.subr.mxu0 0.0
        %1165 = vmatpush1.msra.mxu0 0.0
        %1166 = vmatprep.subr.mxu0 0.0
        %1167 = vmatpush1.msra.mxu0 0.0
        %1168 = vmatprep.subr.mxu0 0.0
        %1169 = vmatpush1.msra.mxu0 0.0
        %1170 = vmatprep.subr.mxu0 0.0
        %1171 = vmatpush1.msra.mxu0 0.0
        %1172 = vmatprep.subr.mxu0 0.0
        %1173 = vmatpush1.msra.mxu0 0.0
        %1174 = vmatprep.subr.mxu0 0.0
        %1175 = vmatpush1.msra.mxu0 0.0
        %1176 = vmatprep.subr.mxu0 0.0
        %1177 = vmatpush1.msra.mxu0 0.0
        %1178 = vmatprep.subr.mxu0 0.0
        %1179 = vmatpush1.msra.mxu0 0.0
        %1180 = vmatprep.mubr.f32.mxu0 0.0
        %1181 = vmatmul.mubr.f32.gmra.mrb[0].mxu0 %v1089
        %v1182 = vpop.f32.mrb[0].mxu0
        %v1183 = vadd.f32 0.0, %v1182
        %v1184 = vpop.f32.mrb[0].mxu0
        %1185 = vmatprep.mubr.f32.mxu0 0.0
        %1186 = vmatmul.mubr.f32.gmra.mrb[0].mxu0 %v1095
        %v1187 = vpop.f32.mrb[0].mxu0
        %v1188 = vadd.f32 0.0, %v1187
        %v1189 = vpop.f32.mrb[0].mxu0
        %1190 = vdwg.mxu0
        %1191 = vmatprep.subr.mxu0 0.0
        %1192 = vmatpush1.msra.mxu0 %v1006
        %1193 = vmatprep.subr.mxu0 0.0
        %1194 = vmatpush1.msra.mxu0 %v1007
        %1195 = vmatprep.subr.mxu0 0.0
        %1196 = vmatpush1.msra.mxu0 %v1008
        %1197 = vmatprep.subr.mxu0 0.0
        %1198 = vmatpush1.msra.mxu0 %v1009
        %1199 = vmatprep.subr.mxu0 0.0
        %1200 = vmatpush1.msra.mxu0 %v1010
        %1201 = vmatprep.subr.mxu0 0.0
        %1202 = vmatpush1.msra.mxu0 %v1011
        %1203 = vmatprep.subr.mxu0 0.0
        %1204 = vmatpush1.msra.mxu0 %v1012
        %1205 = vmatprep.subr.mxu0 0.0
        %1206 = vmatpush1.msra.mxu0 %v1013
        %1207 = vmatprep.subr.mxu0 0.0
        %1208 = vmatpush1.msra.mxu0 %v1014
        %1209 = vmatprep.subr.mxu0 0.0
        %1210 = vmatpush1.msra.mxu0 %v1015
        %1211 = vmatprep.subr.mxu0 0.0
        %1212 = vmatpush1.msra.mxu0 %v1016
        %1213 = vmatprep.subr.mxu0 0.0
        %1214 = vmatpush1.msra.mxu0 %v1017
        %1215 = vmatprep.subr.mxu0 0.0
        %1216 = vmatpush1.msra.mxu0 %v1018
        %1217 = vmatprep.subr.mxu0 0.0
        %1218 = vmatpush1.msra.mxu0 %v1019
        %1219 = vmatprep.subr.mxu0 0.0
        %1220 = vmatpush1.msra.mxu0 %v1020
        %1221 = vmatprep.subr.mxu0 0.0
        %1222 = vmatpush1.msra.mxu0 %v1021
        %1223 = vmatprep.subr.mxu0 0.0
        %1224 = vmatpush1.msra.mxu0 0.0
        %1225 = vmatprep.subr.mxu0 0.0
        %1226 = vmatpush1.msra.mxu0 0.0
        %1227 = vmatprep.subr.mxu0 0.0
        %1228 = vmatpush1.msra.mxu0 0.0
        %1229 = vmatprep.subr.mxu0 0.0
        %1230 = vmatpush1.msra.mxu0 0.0
        %1231 = vmatprep.subr.mxu0 0.0
        %1232 = vmatpush1.msra.mxu0 0.0
        %1233 = vmatprep.subr.mxu0 0.0
        %1234 = vmatpush1.msra.mxu0 0.0
        %1235 = vmatprep.subr.mxu0 0.0
        %1236 = vmatpush1.msra.mxu0 0.0
        %1237 = vmatprep.subr.mxu0 0.0
        %1238 = vmatpush1.msra.mxu0 0.0
        %1239 = vmatprep.subr.mxu0 0.0
        %1240 = vmatpush1.msra.mxu0 0.0
        %1241 = vmatprep.subr.mxu0 0.0
        %1242 = vmatpush1.msra.mxu0 0.0
        %1243 = vmatprep.subr.mxu0 0.0
        %1244 = vmatpush1.msra.mxu0 0.0
        %1245 = vmatprep.subr.mxu0 0.0
        %1246 = vmatpush1.msra.mxu0 0.0
        %1247 = vmatprep.subr.mxu0 0.0
        %1248 = vmatpush1.msra.mxu0 0.0
        %1249 = vmatprep.subr.mxu0 0.0
        %1250 = vmatpush1.msra.mxu0 0.0
        %1251 = vmatprep.subr.mxu0 0.0
        %1252 = vmatpush1.msra.mxu0 0.0
        %1253 = vmatprep.subr.mxu0 0.0
        %1254 = vmatpush1.msra.mxu0 0.0
        %1255 = vmatprep.mubr.f32.mxu0 0.0
        %1256 = vmatmul.mubr.f32.gmra.mrb[0].mxu0 %v995
        %v1257 = vpop.f32.mrb[0].mxu0
        %v1258 = vadd.f32 %v1183, %v1257
        %v1259 = vpop.f32.mrb[0].mxu0
        %1260 = vmatprep.mubr.f32.mxu0 0.0
        %1261 = vmatmul.mubr.f32.gmra.mrb[0].mxu0 %v1001
        %v1262 = vpop.f32.mrb[0].mxu0
        %v1263 = vadd.f32 %v1188, %v1262
        %v1264 = vpop.f32.mrb[0].mxu0
        %1265 = vdwg.mxu0
        %1266 = vmatprep.subr.mxu0 0.0
        %1267 = vmatpush1.msra.mxu0 %v1100
        %1268 = vmatprep.subr.mxu0 0.0
        %1269 = vmatpush1.msra.mxu0 %v1101
        %1270 = vmatprep.subr.mxu0 0.0
        %1271 = vmatpush1.msra.mxu0 %v1102
        %1272 = vmatprep.subr.mxu0 0.0
        %1273 = vmatpush1.msra.mxu0 %v1103
        %1274 = vmatprep.subr.mxu0 0.0
        %1275 = vmatpush1.msra.mxu0 %v1104
        %1276 = vmatprep.subr.mxu0 0.0
        %1277 = vmatpush1.msra.mxu0 %v1105
        %1278 = vmatprep.subr.mxu0 0.0
        %1279 = vmatpush1.msra.mxu0 %v1106
        %1280 = vmatprep.subr.mxu0 0.0
        %1281 = vmatpush1.msra.mxu0 %v1107
        %1282 = vmatprep.subr.mxu0 0.0
        %1283 = vmatpush1.msra.mxu0 %v1108
        %1284 = vmatprep.subr.mxu0 0.0
        %1285 = vmatpush1.msra.mxu0 %v1109
        %1286 = vmatprep.subr.mxu0 0.0
        %1287 = vmatpush1.msra.mxu0 %v1110
        %1288 = vmatprep.subr.mxu0 0.0
        %1289 = vmatpush1.msra.mxu0 %v1111
        %1290 = vmatprep.subr.mxu0 0.0
        %1291 = vmatpush1.msra.mxu0 %v1112
        %1292 = vmatprep.subr.mxu0 0.0
        %1293 = vmatpush1.msra.mxu0 %v1113
        %1294 = vmatprep.subr.mxu0 0.0
        %1295 = vmatpush1.msra.mxu0 %v1114
        %1296 = vmatprep.subr.mxu0 0.0
        %1297 = vmatpush1.msra.mxu0 %v1115
        %1298 = vmatprep.subr.mxu0 0.0
        %1299 = vmatpush1.msra.mxu0 0.0
        %1300 = vmatprep.subr.mxu0 0.0
        %1301 = vmatpush1.msra.mxu0 0.0
        %1302 = vmatprep.subr.mxu0 0.0
        %1303 = vmatpush1.msra.mxu0 0.0
        %1304 = vmatprep.subr.mxu0 0.0
        %1305 = vmatpush1.msra.mxu0 0.0
        %1306 = vmatprep.subr.mxu0 0.0
        %1307 = vmatpush1.msra.mxu0 0.0
        %1308 = vmatprep.subr.mxu0 0.0
        %1309 = vmatpush1.msra.mxu0 0.0
        %1310 = vmatprep.subr.mxu0 0.0
        %1311 = vmatpush1.msra.mxu0 0.0
        %1312 = vmatprep.subr.mxu0 0.0
        %1313 = vmatpush1.msra.mxu0 0.0
        %1314 = vmatprep.subr.mxu0 0.0
        %1315 = vmatpush1.msra.mxu0 0.0
        %1316 = vmatprep.subr.mxu0 0.0
        %1317 = vmatpush1.msra.mxu0 0.0
        %1318 = vmatprep.subr.mxu0 0.0
        %1319 = vmatpush1.msra.mxu0 0.0
        %1320 = vmatprep.subr.mxu0 0.0
        %1321 = vmatpush1.msra.mxu0 0.0
        %1322 = vmatprep.subr.mxu0 0.0
        %1323 = vmatpush1.msra.mxu0 0.0
        %1324 = vmatprep.subr.mxu0 0.0
        %1325 = vmatpush1.msra.mxu0 0.0
        %1326 = vmatprep.subr.mxu0 0.0
        %1327 = vmatpush1.msra.mxu0 0.0
        %1328 = vmatprep.subr.mxu0 0.0
        %1329 = vmatpush1.msra.mxu0 0.0
        %1330 = vmatprep.mubr.f32.mxu0 0.0
        %1331 = vmatmul.mubr.f32.gmra.mrb[0].mxu0 %v1091
        %v1332 = vpop.f32.mrb[0].mxu0
        %v1333 = vadd.f32 0.0, %v1332
        %v1334 = vpop.f32.mrb[0].mxu0
        %1335 = vmatprep.mubr.f32.mxu0 0.0
        %1336 = vmatmul.mubr.f32.gmra.mrb[0].mxu0 %v1097
        %v1337 = vpop.f32.mrb[0].mxu0
        %v1338 = vadd.f32 0.0, %v1337
        %v1339 = vpop.f32.mrb[0].mxu0
        %1340 = vdwg.mxu0
        %1341 = vmatprep.subr.mxu0 0.0
        %1342 = vmatpush1.msra.mxu0 %v1006
        %1343 = vmatprep.subr.mxu0 0.0
        %1344 = vmatpush1.msra.mxu0 %v1007
        %1345 = vmatprep.subr.mxu0 0.0
        %1346 = vmatpush1.msra.mxu0 %v1008
        %1347 = vmatprep.subr.mxu0 0.0
        %1348 = vmatpush1.msra.mxu0 %v1009
        %1349 = vmatprep.subr.mxu0 0.0
        %1350 = vmatpush1.msra.mxu0 %v1010
        %1351 = vmatprep.subr.mxu0 0.0
        %1352 = vmatpush1.msra.mxu0 %v1011
        %1353 = vmatprep.subr.mxu0 0.0
        %1354 = vmatpush1.msra.mxu0 %v1012
        %1355 = vmatprep.subr.mxu0 0.0
        %1356 = vmatpush1.msra.mxu0 %v1013
        %1357 = vmatprep.subr.mxu0 0.0
        %1358 = vmatpush1.msra.mxu0 %v1014
        %1359 = vmatprep.subr.mxu0 0.0
        %1360 = vmatpush1.msra.mxu0 %v1015
        %1361 = vmatprep.subr.mxu0 0.0
        %1362 = vmatpush1.msra.mxu0 %v1016
        %1363 = vmatprep.subr.mxu0 0.0
        %1364 = vmatpush1.msra.mxu0 %v1017
        %1365 = vmatprep.subr.mxu0 0.0
        %1366 = vmatpush1.msra.mxu0 %v1018
        %1367 = vmatprep.subr.mxu0 0.0
        %1368 = vmatpush1.msra.mxu0 %v1019
        %1369 = vmatprep.subr.mxu0 0.0
        %1370 = vmatpush1.msra.mxu0 %v1020
        %1371 = vmatprep.subr.mxu0 0.0
        %1372 = vmatpush1.msra.mxu0 %v1021
        %1373 = vmatprep.subr.mxu0 0.0
        %1374 = vmatpush1.msra.mxu0 0.0
        %1375 = vmatprep.subr.mxu0 0.0
        %1376 = vmatpush1.msra.mxu0 0.0
        %1377 = vmatprep.subr.mxu0 0.0
        %1378 = vmatpush1.msra.mxu0 0.0
        %1379 = vmatprep.subr.mxu0 0.0
        %1380 = vmatpush1.msra.mxu0 0.0
        %1381 = vmatprep.subr.mxu0 0.0
        %1382 = vmatpush1.msra.mxu0 0.0
        %1383 = vmatprep.subr.mxu0 0.0
        %1384 = vmatpush1.msra.mxu0 0.0
        %1385 = vmatprep.subr.mxu0 0.0
        %1386 = vmatpush1.msra.mxu0 0.0
        %1387 = vmatprep.subr.mxu0 0.0
        %1388 = vmatpush1.msra.mxu0 0.0
        %1389 = vmatprep.subr.mxu0 0.0
        %1390 = vmatpush1.msra.mxu0 0.0
        %1391 = vmatprep.subr.mxu0 0.0
        %1392 = vmatpush1.msra.mxu0 0.0
        %1393 = vmatprep.subr.mxu0 0.0
        %1394 = vmatpush1.msra.mxu0 0.0
        %1395 = vmatprep.subr.mxu0 0.0
        %1396 = vmatpush1.msra.mxu0 0.0
        %1397 = vmatprep.subr.mxu0 0.0
        %1398 = vmatpush1.msra.mxu0 0.0
        %1399 = vmatprep.subr.mxu0 0.0
        %1400 = vmatpush1.msra.mxu0 0.0
        %1401 = vmatprep.subr.mxu0 0.0
        %1402 = vmatpush1.msra.mxu0 0.0
        %1403 = vmatprep.subr.mxu0 0.0
        %1404 = vmatpush1.msra.mxu0 0.0
        %1405 = vmatprep.mubr.f32.mxu0 0.0
        %1406 = vmatmul.mubr.f32.gmra.mrb[0].mxu0 %v997
        %v1407 = vpop.f32.mrb[0].mxu0
        %v1408 = vadd.f32 %v1333, %v1407
        %v1409 = vpop.f32.mrb[0].mxu0
        %1410 = vmatprep.mubr.f32.mxu0 0.0
        %1411 = vmatmul.mubr.f32.gmra.mrb[0].mxu0 %v1003
        %v1412 = vpop.f32.mrb[0].mxu0
        %v1413 = vadd.f32 %v1338, %v1412
        %v1414 = vpop.f32.mrb[0].mxu0
        %1415 = vdwg.mxu0
        %v1416 = vadd.f32 %v836, %v1258
        %v1417 = vadd.f32 %v841, %v1263
        %v1418 = vadd.f32 %v911, %v1408
        %v1419 = vadd.f32 %v916, %v1413
        %s1420 = scalar_lea.vmem [#allocation5], 32
        %v1421 = vld [vmem:[%s1420] sm:$0xff]
        %v1422 = vld [vmem:[%s1420 + $0x8] sm:$0xff]
        %v1424 = vsel %vm274, %v1421, 0
        %v1427 = vsel %vm274, %v1422, 0
        %1429 = vmatprep.subr.mxu0 %v246
        %1430 = vmatpush1.msra.mxu0 %v245
        %1431 = vmatprep.subr.mxu0 %v248
        %1432 = vmatpush1.msra.mxu0 %v247
        %1433 = vmatprep.subr.mxu0 0.0
        %1434 = vmatpush1.msra.mxu0 0.0
        %1435 = vmatprep.subr.mxu0 0.0
        %1436 = vmatpush1.msra.mxu0 0.0
        %1437 = vmatprep.subr.mxu0 0.0
        %1438 = vmatpush1.msra.mxu0 0.0
        %1439 = vmatprep.subr.mxu0 0.0
        %1440 = vmatpush1.msra.mxu0 0.0
        %1441 = vmatprep.subr.mxu0 0.0
        %1442 = vmatpush1.msra.mxu0 0.0
        %1443 = vmatprep.subr.mxu0 0.0
        %1444 = vmatpush1.msra.mxu0 0.0
        %1445 = vmatprep.subr.mxu0 0.0
        %1446 = vmatpush1.msra.mxu0 0.0
        %1447 = vmatprep.subr.mxu0 0.0
        %1448 = vmatpush1.msra.mxu0 0.0
        %1449 = vmatprep.subr.mxu0 0.0
        %1450 = vmatpush1.msra.mxu0 0.0
        %1451 = vmatprep.subr.mxu0 0.0
        %1452 = vmatpush1.msra.mxu0 0.0
        %1453 = vmatprep.subr.mxu0 0.0
        %1454 = vmatpush1.msra.mxu0 0.0
        %1455 = vmatprep.subr.mxu0 0.0
        %1456 = vmatpush1.msra.mxu0 0.0
        %1457 = vmatprep.subr.mxu0 0.0
        %1458 = vmatpush1.msra.mxu0 0.0
        %1459 = vmatprep.subr.mxu0 0.0
        %1460 = vmatpush1.msra.mxu0 0.0
        %1461 = vmatprep.subr.mxu0 0.0
        %1462 = vmatpush1.msra.mxu0 0.0
        %1463 = vmatprep.subr.mxu0 0.0
        %1464 = vmatpush1.msra.mxu0 0.0
        %1465 = vmatprep.subr.mxu0 0.0
        %1466 = vmatpush1.msra.mxu0 0.0
        %1467 = vmatprep.subr.mxu0 0.0
        %1468 = vmatpush1.msra.mxu0 0.0
        %1469 = vmatprep.subr.mxu0 0.0
        %1470 = vmatpush1.msra.mxu0 0.0
        %1471 = vmatprep.subr.mxu0 0.0
        %1472 = vmatpush1.msra.mxu0 0.0
        %1473 = vmatprep.subr.mxu0 0.0
        %1474 = vmatpush1.msra.mxu0 0.0
        %1475 = vmatprep.subr.mxu0 0.0
        %1476 = vmatpush1.msra.mxu0 0.0
        %1477 = vmatprep.subr.mxu0 0.0
        %1478 = vmatpush1.msra.mxu0 0.0
        %1479 = vmatprep.subr.mxu0 0.0
        %1480 = vmatpush1.msra.mxu0 0.0
        %1481 = vmatprep.subr.mxu0 0.0
        %1482 = vmatpush1.msra.mxu0 0.0
        %1483 = vmatprep.subr.mxu0 0.0
        %1484 = vmatpush1.msra.mxu0 0.0
        %1485 = vmatprep.subr.mxu0 0.0
        %1486 = vmatpush1.msra.mxu0 0.0
        %1487 = vmatprep.subr.mxu0 0.0
        %1488 = vmatpush1.msra.mxu0 0.0
        %1489 = vmatprep.subr.mxu0 0.0
        %1490 = vmatpush1.msra.mxu0 0.0
        %1491 = vmatprep.subr.mxu0 0.0
        %1492 = vmatpush1.msra.mxu0 0.0
        %1493 = vmatprep.mubr.f32.mxu0 0.0
        %1494 = vmatmul.mubr.f32.gmra.mrb[0].mxu0 %v1424
        %v1495 = vpop.f32.mrb[0].mxu0
        %v1496 = vadd.f32 0.0, %v1495
        %v1497 = vpop.f32.mrb[0].mxu0
        %v1498 = vadd.f32 0.0, %v1497
        %1499 = vmatprep.mubr.f32.mxu0 0.0
        %1500 = vmatmul.mubr.f32.gmra.mrb[0].mxu0 %v1427
        %v1501 = vpop.f32.mrb[0].mxu0
        %v1502 = vadd.f32 0.0, %v1501
        %v1503 = vpop.f32.mrb[0].mxu0
        %v1504 = vadd.f32 0.0, %v1503
        %1505 = vdwg.mxu0
        %s1506 = scalar_lea.vmem [#allocation7], 640
        %v1507 = vld [vmem:[%s1506] sm:$0xff]
        %v1508 = vld [vmem:[%s1506 + $0x8] sm:$0xff]
        %v1509 = vld [vmem:[%s1506 + $0x10] sm:$0xff]
        %v1510 = vld [vmem:[%s1506 + $0x18] sm:$0xff]
        %v1511 = vld [vmem:[%s1506 + $0x20] sm:$0xff]
        %v1512 = vld [vmem:[%s1506 + $0x28] sm:$0xff]
        %v1513 = vld [vmem:[%s1506 + $0x30] sm:$0xff]
        %v1514 = vld [vmem:[%s1506 + $0x38] sm:$0xff]
        %v1515 = vld [vmem:[%s1506 + $0x40] sm:$0xff]
        %v1516 = vld [vmem:[%s1506 + $0x48] sm:$0xff]
        %v1517 = vld [vmem:[%s1506 + $0x50] sm:$0xff]
        %v1518 = vld [vmem:[%s1506 + $0x58] sm:$0xff]
        %v1519 = vld [vmem:[%s1506 + $0x60] sm:$0xff]
        %v1520 = vld [vmem:[%s1506 + $0x68] sm:$0xff]
        %v1521 = vld [vmem:[%s1506 + $0x70] sm:$0xff]
        %v1522 = vld [vmem:[%s1506 + $0x78] sm:$0xff]
        %1523 = vmatprep.subr.mxu0 %v1498
        %1524 = vmatpush1.msra.mxu0 %v1496
        %1525 = vmatprep.subr.mxu0 %v1504
        %1526 = vmatpush1.msra.mxu0 %v1502
        %1527 = vmatprep.subr.mxu0 0.0
        %1528 = vmatpush1.msra.mxu0 0.0
        %1529 = vmatprep.subr.mxu0 0.0
        %1530 = vmatpush1.msra.mxu0 0.0
        %1531 = vmatprep.subr.mxu0 0.0
        %1532 = vmatpush1.msra.mxu0 0.0
        %1533 = vmatprep.subr.mxu0 0.0
        %1534 = vmatpush1.msra.mxu0 0.0
        %1535 = vmatprep.subr.mxu0 0.0
        %1536 = vmatpush1.msra.mxu0 0.0
        %1537 = vmatprep.subr.mxu0 0.0
        %1538 = vmatpush1.msra.mxu0 0.0
        %1539 = vmatprep.subr.mxu0 0.0
        %1540 = vmatpush1.msra.mxu0 0.0
        %1541 = vmatprep.subr.mxu0 0.0
        %1542 = vmatpush1.msra.mxu0 0.0
        %1543 = vmatprep.subr.mxu0 0.0
        %1544 = vmatpush1.msra.mxu0 0.0
        %1545 = vmatprep.subr.mxu0 0.0
        %1546 = vmatpush1.msra.mxu0 0.0
        %1547 = vmatprep.subr.mxu0 0.0
        %1548 = vmatpush1.msra.mxu0 0.0
        %1549 = vmatprep.subr.mxu0 0.0
        %1550 = vmatpush1.msra.mxu0 0.0
        %1551 = vmatprep.subr.mxu0 0.0
        %1552 = vmatpush1.msra.mxu0 0.0
        %1553 = vmatprep.subr.mxu0 0.0
        %1554 = vmatpush1.msra.mxu0 0.0
        %1555 = vmatprep.subr.mxu0 0.0
        %1556 = vmatpush1.msra.mxu0 0.0
        %1557 = vmatprep.subr.mxu0 0.0
        %1558 = vmatpush1.msra.mxu0 0.0
        %1559 = vmatprep.subr.mxu0 0.0
        %1560 = vmatpush1.msra.mxu0 0.0
        %1561 = vmatprep.subr.mxu0 0.0
        %1562 = vmatpush1.msra.mxu0 0.0
        %1563 = vmatprep.subr.mxu0 0.0
        %1564 = vmatpush1.msra.mxu0 0.0
        %1565 = vmatprep.subr.mxu0 0.0
        %1566 = vmatpush1.msra.mxu0 0.0
        %1567 = vmatprep.subr.mxu0 0.0
        %1568 = vmatpush1.msra.mxu0 0.0
        %1569 = vmatprep.subr.mxu0 0.0
        %1570 = vmatpush1.msra.mxu0 0.0
        %1571 = vmatprep.subr.mxu0 0.0
        %1572 = vmatpush1.msra.mxu0 0.0
        %1573 = vmatprep.subr.mxu0 0.0
        %1574 = vmatpush1.msra.mxu0 0.0
        %1575 = vmatprep.subr.mxu0 0.0
        %1576 = vmatpush1.msra.mxu0 0.0
        %1577 = vmatprep.subr.mxu0 0.0
        %1578 = vmatpush1.msra.mxu0 0.0
        %1579 = vmatprep.subr.mxu0 0.0
        %1580 = vmatpush1.msra.mxu0 0.0
        %1581 = vmatprep.subr.mxu0 0.0
        %1582 = vmatpush1.msra.mxu0 0.0
        %1583 = vmatprep.subr.mxu0 0.0
        %1584 = vmatpush1.msra.mxu0 0.0
        %1585 = vmatprep.subr.mxu0 0.0
        %1586 = vmatpush1.msra.mxu0 0.0
        %1587 = vmatprep.mubr.f32.mxu0 0.0
        %1588 = vmatmul.mubr.f32.gmra.mrb[0].mxu0 %v1424
        %v1589 = vpop.f32.mrb[0].mxu0
        %v1590 = vadd.f32 0.0, %v1589
        %v1591 = vpop.f32.mrb[0].mxu0
        %v1592 = vadd.f32 0.0, %v1591
        %1593 = vmatprep.mubr.f32.mxu0 0.0
        %1594 = vmatmul.mubr.f32.gmra.mrb[0].mxu0 %v1427
        %v1595 = vpop.f32.mrb[0].mxu0
        %v1596 = vadd.f32 0.0, %v1595
        %v1597 = vpop.f32.mrb[0].mxu0
        %v1598 = vadd.f32 0.0, %v1597
        %1599 = vdwg.mxu0
        %s1600 = scalar_lea.vmem [#allocation7], 768
        %v1601 = vld [vmem:[%s1600] sm:$0xff]
        %v1602 = vld [vmem:[%s1600 + $0x8] sm:$0xff]
        %v1603 = vld [vmem:[%s1600 + $0x10] sm:$0xff]
        %v1604 = vld [vmem:[%s1600 + $0x18] sm:$0xff]
        %v1605 = vld [vmem:[%s1600 + $0x20] sm:$0xff]
        %v1606 = vld [vmem:[%s1600 + $0x28] sm:$0xff]
        %v1607 = vld [vmem:[%s1600 + $0x30] sm:$0xff]
        %v1608 = vld [vmem:[%s1600 + $0x38] sm:$0xff]
        %v1609 = vld [vmem:[%s1600 + $0x40] sm:$0xff]
        %v1610 = vld [vmem:[%s1600 + $0x48] sm:$0xff]
        %v1611 = vld [vmem:[%s1600 + $0x50] sm:$0xff]
        %v1612 = vld [vmem:[%s1600 + $0x58] sm:$0xff]
        %v1613 = vld [vmem:[%s1600 + $0x60] sm:$0xff]
        %v1614 = vld [vmem:[%s1600 + $0x68] sm:$0xff]
        %v1615 = vld [vmem:[%s1600 + $0x70] sm:$0xff]
        %v1616 = vld [vmem:[%s1600 + $0x78] sm:$0xff]
        %1617 = vmatprep.subr.mxu0 0.0
        %1618 = vmatpush1.msra.mxu0 %v1601
        %1619 = vmatprep.subr.mxu0 0.0
        %1620 = vmatpush1.msra.mxu0 %v1602
        %1621 = vmatprep.subr.mxu0 0.0
        %1622 = vmatpush1.msra.mxu0 %v1603
        %1623 = vmatprep.subr.mxu0 0.0
        %1624 = vmatpush1.msra.mxu0 %v1604
        %1625 = vmatprep.subr.mxu0 0.0
        %1626 = vmatpush1.msra.mxu0 %v1605
        %1627 = vmatprep.subr.mxu0 0.0
        %1628 = vmatpush1.msra.mxu0 %v1606
        %1629 = vmatprep.subr.mxu0 0.0
        %1630 = vmatpush1.msra.mxu0 %v1607
        %1631 = vmatprep.subr.mxu0 0.0
        %1632 = vmatpush1.msra.mxu0 %v1608
        %1633 = vmatprep.subr.mxu0 0.0
        %1634 = vmatpush1.msra.mxu0 %v1609
        %1635 = vmatprep.subr.mxu0 0.0
        %1636 = vmatpush1.msra.mxu0 %v1610
        %1637 = vmatprep.subr.mxu0 0.0
        %1638 = vmatpush1.msra.mxu0 %v1611
        %1639 = vmatprep.subr.mxu0 0.0
        %1640 = vmatpush1.msra.mxu0 %v1612
        %1641 = vmatprep.subr.mxu0 0.0
        %1642 = vmatpush1.msra.mxu0 %v1613
        %1643 = vmatprep.subr.mxu0 0.0
        %1644 = vmatpush1.msra.mxu0 %v1614
        %1645 = vmatprep.subr.mxu0 0.0
        %1646 = vmatpush1.msra.mxu0 %v1615
        %1647 = vmatprep.subr.mxu0 0.0
        %1648 = vmatpush1.msra.mxu0 %v1616
        %1649 = vmatprep.subr.mxu0 0.0
        %1650 = vmatpush1.msra.mxu0 0.0
        %1651 = vmatprep.subr.mxu0 0.0
        %1652 = vmatpush1.msra.mxu0 0.0
        %1653 = vmatprep.subr.mxu0 0.0
        %1654 = vmatpush1.msra.mxu0 0.0
        %1655 = vmatprep.subr.mxu0 0.0
        %1656 = vmatpush1.msra.mxu0 0.0
        %1657 = vmatprep.subr.mxu0 0.0
        %1658 = vmatpush1.msra.mxu0 0.0
        %1659 = vmatprep.subr.mxu0 0.0
        %1660 = vmatpush1.msra.mxu0 0.0
        %1661 = vmatprep.subr.mxu0 0.0
        %1662 = vmatpush1.msra.mxu0 0.0
        %1663 = vmatprep.subr.mxu0 0.0
        %1664 = vmatpush1.msra.mxu0 0.0
        %1665 = vmatprep.subr.mxu0 0.0
        %1666 = vmatpush1.msra.mxu0 0.0
        %1667 = vmatprep.subr.mxu0 0.0
        %1668 = vmatpush1.msra.mxu0 0.0
        %1669 = vmatprep.subr.mxu0 0.0
        %1670 = vmatpush1.msra.mxu0 0.0
        %1671 = vmatprep.subr.mxu0 0.0
        %1672 = vmatpush1.msra.mxu0 0.0
        %1673 = vmatprep.subr.mxu0 0.0
        %1674 = vmatpush1.msra.mxu0 0.0
        %1675 = vmatprep.subr.mxu0 0.0
        %1676 = vmatpush1.msra.mxu0 0.0
        %1677 = vmatprep.subr.mxu0 0.0
        %1678 = vmatpush1.msra.mxu0 0.0
        %1679 = vmatprep.subr.mxu0 0.0
        %1680 = vmatpush1.msra.mxu0 0.0
        %1681 = vmatprep.mubr.f32.mxu0 0.0
        %1682 = vmatmul.mubr.f32.gmra.mrb[0].mxu0 %v1590
        %v1683 = vpop.f32.mrb[0].mxu0
        %v1684 = vadd.f32 0.0, %v1683
        %v1685 = vpop.f32.mrb[0].mxu0
        %1686 = vmatprep.mubr.f32.mxu0 0.0
        %1687 = vmatmul.mubr.f32.gmra.mrb[0].mxu0 %v1596
        %v1688 = vpop.f32.mrb[0].mxu0
        %v1689 = vadd.f32 0.0, %v1688
        %v1690 = vpop.f32.mrb[0].mxu0
        %1691 = vdwg.mxu0
        %1692 = vmatprep.subr.mxu0 0.0
        %1693 = vmatpush1.msra.mxu0 %v1507
        %1694 = vmatprep.subr.mxu0 0.0
        %1695 = vmatpush1.msra.mxu0 %v1508
        %1696 = vmatprep.subr.mxu0 0.0
        %1697 = vmatpush1.msra.mxu0 %v1509
        %1698 = vmatprep.subr.mxu0 0.0
        %1699 = vmatpush1.msra.mxu0 %v1510
        %1700 = vmatprep.subr.mxu0 0.0
        %1701 = vmatpush1.msra.mxu0 %v1511
        %1702 = vmatprep.subr.mxu0 0.0
        %1703 = vmatpush1.msra.mxu0 %v1512
        %1704 = vmatprep.subr.mxu0 0.0
        %1705 = vmatpush1.msra.mxu0 %v1513
        %1706 = vmatprep.subr.mxu0 0.0
        %1707 = vmatpush1.msra.mxu0 %v1514
        %1708 = vmatprep.subr.mxu0 0.0
        %1709 = vmatpush1.msra.mxu0 %v1515
        %1710 = vmatprep.subr.mxu0 0.0
        %1711 = vmatpush1.msra.mxu0 %v1516
        %1712 = vmatprep.subr.mxu0 0.0
        %1713 = vmatpush1.msra.mxu0 %v1517
        %1714 = vmatprep.subr.mxu0 0.0
        %1715 = vmatpush1.msra.mxu0 %v1518
        %1716 = vmatprep.subr.mxu0 0.0
        %1717 = vmatpush1.msra.mxu0 %v1519
        %1718 = vmatprep.subr.mxu0 0.0
        %1719 = vmatpush1.msra.mxu0 %v1520
        %1720 = vmatprep.subr.mxu0 0.0
        %1721 = vmatpush1.msra.mxu0 %v1521
        %1722 = vmatprep.subr.mxu0 0.0
        %1723 = vmatpush1.msra.mxu0 %v1522
        %1724 = vmatprep.subr.mxu0 0.0
        %1725 = vmatpush1.msra.mxu0 0.0
        %1726 = vmatprep.subr.mxu0 0.0
        %1727 = vmatpush1.msra.mxu0 0.0
        %1728 = vmatprep.subr.mxu0 0.0
        %1729 = vmatpush1.msra.mxu0 0.0
        %1730 = vmatprep.subr.mxu0 0.0
        %1731 = vmatpush1.msra.mxu0 0.0
        %1732 = vmatprep.subr.mxu0 0.0
        %1733 = vmatpush1.msra.mxu0 0.0
        %1734 = vmatprep.subr.mxu0 0.0
        %1735 = vmatpush1.msra.mxu0 0.0
        %1736 = vmatprep.subr.mxu0 0.0
        %1737 = vmatpush1.msra.mxu0 0.0
        %1738 = vmatprep.subr.mxu0 0.0
        %1739 = vmatpush1.msra.mxu0 0.0
        %1740 = vmatprep.subr.mxu0 0.0
        %1741 = vmatpush1.msra.mxu0 0.0
        %1742 = vmatprep.subr.mxu0 0.0
        %1743 = vmatpush1.msra.mxu0 0.0
        %1744 = vmatprep.subr.mxu0 0.0
        %1745 = vmatpush1.msra.mxu0 0.0
        %1746 = vmatprep.subr.mxu0 0.0
        %1747 = vmatpush1.msra.mxu0 0.0
        %1748 = vmatprep.subr.mxu0 0.0
        %1749 = vmatpush1.msra.mxu0 0.0
        %1750 = vmatprep.subr.mxu0 0.0
        %1751 = vmatpush1.msra.mxu0 0.0
        %1752 = vmatprep.subr.mxu0 0.0
        %1753 = vmatpush1.msra.mxu0 0.0
        %1754 = vmatprep.subr.mxu0 0.0
        %1755 = vmatpush1.msra.mxu0 0.0
        %1756 = vmatprep.mubr.f32.mxu0 0.0
        %1757 = vmatmul.mubr.f32.gmra.mrb[0].mxu0 %v1496
        %v1758 = vpop.f32.mrb[0].mxu0
        %v1759 = vadd.f32 %v1684, %v1758
        %v1760 = vpop.f32.mrb[0].mxu0
        %1761 = vmatprep.mubr.f32.mxu0 0.0
        %1762 = vmatmul.mubr.f32.gmra.mrb[0].mxu0 %v1502
        %v1763 = vpop.f32.mrb[0].mxu0
        %v1764 = vadd.f32 %v1689, %v1763
        %v1765 = vpop.f32.mrb[0].mxu0
        %1766 = vdwg.mxu0
        %1767 = vmatprep.subr.mxu0 0.0
        %1768 = vmatpush1.msra.mxu0 %v1601
        %1769 = vmatprep.subr.mxu0 0.0
        %1770 = vmatpush1.msra.mxu0 %v1602
        %1771 = vmatprep.subr.mxu0 0.0
        %1772 = vmatpush1.msra.mxu0 %v1603
        %1773 = vmatprep.subr.mxu0 0.0
        %1774 = vmatpush1.msra.mxu0 %v1604
        %1775 = vmatprep.subr.mxu0 0.0
        %1776 = vmatpush1.msra.mxu0 %v1605
        %1777 = vmatprep.subr.mxu0 0.0
        %1778 = vmatpush1.msra.mxu0 %v1606
        %1779 = vmatprep.subr.mxu0 0.0
        %1780 = vmatpush1.msra.mxu0 %v1607
        %1781 = vmatprep.subr.mxu0 0.0
        %1782 = vmatpush1.msra.mxu0 %v1608
        %1783 = vmatprep.subr.mxu0 0.0
        %1784 = vmatpush1.msra.mxu0 %v1609
        %1785 = vmatprep.subr.mxu0 0.0
        %1786 = vmatpush1.msra.mxu0 %v1610
        %1787 = vmatprep.subr.mxu0 0.0
        %1788 = vmatpush1.msra.mxu0 %v1611
        %1789 = vmatprep.subr.mxu0 0.0
        %1790 = vmatpush1.msra.mxu0 %v1612
        %1791 = vmatprep.subr.mxu0 0.0
        %1792 = vmatpush1.msra.mxu0 %v1613
        %1793 = vmatprep.subr.mxu0 0.0
        %1794 = vmatpush1.msra.mxu0 %v1614
        %1795 = vmatprep.subr.mxu0 0.0
        %1796 = vmatpush1.msra.mxu0 %v1615
        %1797 = vmatprep.subr.mxu0 0.0
        %1798 = vmatpush1.msra.mxu0 %v1616
        %1799 = vmatprep.subr.mxu0 0.0
        %1800 = vmatpush1.msra.mxu0 0.0
        %1801 = vmatprep.subr.mxu0 0.0
        %1802 = vmatpush1.msra.mxu0 0.0
        %1803 = vmatprep.subr.mxu0 0.0
        %1804 = vmatpush1.msra.mxu0 0.0
        %1805 = vmatprep.subr.mxu0 0.0
        %1806 = vmatpush1.msra.mxu0 0.0
        %1807 = vmatprep.subr.mxu0 0.0
        %1808 = vmatpush1.msra.mxu0 0.0
        %1809 = vmatprep.subr.mxu0 0.0
        %1810 = vmatpush1.msra.mxu0 0.0
        %1811 = vmatprep.subr.mxu0 0.0
        %1812 = vmatpush1.msra.mxu0 0.0
        %1813 = vmatprep.subr.mxu0 0.0
        %1814 = vmatpush1.msra.mxu0 0.0
        %1815 = vmatprep.subr.mxu0 0.0
        %1816 = vmatpush1.msra.mxu0 0.0
        %1817 = vmatprep.subr.mxu0 0.0
        %1818 = vmatpush1.msra.mxu0 0.0
        %1819 = vmatprep.subr.mxu0 0.0
        %1820 = vmatpush1.msra.mxu0 0.0
        %1821 = vmatprep.subr.mxu0 0.0
        %1822 = vmatpush1.msra.mxu0 0.0
        %1823 = vmatprep.subr.mxu0 0.0
        %1824 = vmatpush1.msra.mxu0 0.0
        %1825 = vmatprep.subr.mxu0 0.0
        %1826 = vmatpush1.msra.mxu0 0.0
        %1827 = vmatprep.subr.mxu0 0.0
        %1828 = vmatpush1.msra.mxu0 0.0
        %1829 = vmatprep.subr.mxu0 0.0
        %1830 = vmatpush1.msra.mxu0 0.0
        %1831 = vmatprep.mubr.f32.mxu0 0.0
        %1832 = vmatmul.mubr.f32.gmra.mrb[0].mxu0 %v1592
        %v1833 = vpop.f32.mrb[0].mxu0
        %v1834 = vadd.f32 0.0, %v1833
        %v1835 = vpop.f32.mrb[0].mxu0
        %1836 = vmatprep.mubr.f32.mxu0 0.0
        %1837 = vmatmul.mubr.f32.gmra.mrb[0].mxu0 %v1598
        %v1838 = vpop.f32.mrb[0].mxu0
        %v1839 = vadd.f32 0.0, %v1838
        %v1840 = vpop.f32.mrb[0].mxu0
        %1841 = vdwg.mxu0
        %1842 = vmatprep.subr.mxu0 0.0
        %1843 = vmatpush1.msra.mxu0 %v1507
        %1844 = vmatprep.subr.mxu0 0.0
        %1845 = vmatpush1.msra.mxu0 %v1508
        %1846 = vmatprep.subr.mxu0 0.0
        %1847 = vmatpush1.msra.mxu0 %v1509
        %1848 = vmatprep.subr.mxu0 0.0
        %1849 = vmatpush1.msra.mxu0 %v1510
        %1850 = vmatprep.subr.mxu0 0.0
        %1851 = vmatpush1.msra.mxu0 %v1511
        %1852 = vmatprep.subr.mxu0 0.0
        %1853 = vmatpush1.msra.mxu0 %v1512
        %1854 = vmatprep.subr.mxu0 0.0
        %1855 = vmatpush1.msra.mxu0 %v1513
        %1856 = vmatprep.subr.mxu0 0.0
        %1857 = vmatpush1.msra.mxu0 %v1514
        %1858 = vmatprep.subr.mxu0 0.0
        %1859 = vmatpush1.msra.mxu0 %v1515
        %1860 = vmatprep.subr.mxu0 0.0
        %1861 = vmatpush1.msra.mxu0 %v1516
        %1862 = vmatprep.subr.mxu0 0.0
        %1863 = vmatpush1.msra.mxu0 %v1517
        %1864 = vmatprep.subr.mxu0 0.0
        %1865 = vmatpush1.msra.mxu0 %v1518
        %1866 = vmatprep.subr.mxu0 0.0
        %1867 = vmatpush1.msra.mxu0 %v1519
        %1868 = vmatprep.subr.mxu0 0.0
        %1869 = vmatpush1.msra.mxu0 %v1520
        %1870 = vmatprep.subr.mxu0 0.0
        %1871 = vmatpush1.msra.mxu0 %v1521
        %1872 = vmatprep.subr.mxu0 0.0
        %1873 = vmatpush1.msra.mxu0 %v1522
        %1874 = vmatprep.subr.mxu0 0.0
        %1875 = vmatpush1.msra.mxu0 0.0
        %1876 = vmatprep.subr.mxu0 0.0
        %1877 = vmatpush1.msra.mxu0 0.0
        %1878 = vmatprep.subr.mxu0 0.0
        %1879 = vmatpush1.msra.mxu0 0.0
        %1880 = vmatprep.subr.mxu0 0.0
        %1881 = vmatpush1.msra.mxu0 0.0
        %1882 = vmatprep.subr.mxu0 0.0
        %1883 = vmatpush1.msra.mxu0 0.0
        %1884 = vmatprep.subr.mxu0 0.0
        %1885 = vmatpush1.msra.mxu0 0.0
        %1886 = vmatprep.subr.mxu0 0.0
        %1887 = vmatpush1.msra.mxu0 0.0
        %1888 = vmatprep.subr.mxu0 0.0
        %1889 = vmatpush1.msra.mxu0 0.0
        %1890 = vmatprep.subr.mxu0 0.0
        %1891 = vmatpush1.msra.mxu0 0.0
        %1892 = vmatprep.subr.mxu0 0.0
        %1893 = vmatpush1.msra.mxu0 0.0
        %1894 = vmatprep.subr.mxu0 0.0
        %1895 = vmatpush1.msra.mxu0 0.0
        %1896 = vmatprep.subr.mxu0 0.0
        %1897 = vmatpush1.msra.mxu0 0.0
        %1898 = vmatprep.subr.mxu0 0.0
        %1899 = vmatpush1.msra.mxu0 0.0
        %1900 = vmatprep.subr.mxu0 0.0
        %1901 = vmatpush1.msra.mxu0 0.0
        %1902 = vmatprep.subr.mxu0 0.0
        %1903 = vmatpush1.msra.mxu0 0.0
        %1904 = vmatprep.subr.mxu0 0.0
        %1905 = vmatpush1.msra.mxu0 0.0
        %1906 = vmatprep.mubr.f32.mxu0 0.0
        %1907 = vmatmul.mubr.f32.gmra.mrb[0].mxu0 %v1498
        %v1908 = vpop.f32.mrb[0].mxu0
        %v1909 = vadd.f32 %v1834, %v1908
        %v1910 = vpop.f32.mrb[0].mxu0
        %1911 = vmatprep.mubr.f32.mxu0 0.0
        %1912 = vmatmul.mubr.f32.gmra.mrb[0].mxu0 %v1504
        %v1913 = vpop.f32.mrb[0].mxu0
        %v1914 = vadd.f32 %v1839, %v1913
        %v1915 = vpop.f32.mrb[0].mxu0
        %1916 = vdwg.mxu0
        %v1917 = vadd.f32 %v1416, %v1759
        %v1918 = vadd.f32 %v1417, %v1764
        %v1919 = vadd.f32 %v1418, %v1909
        %v1920 = vadd.f32 %v1419, %v1914
        %v1921 = vadd.f32 %v1917, %v254
        %v1922 = vadd.f32 %v1918, %v254
        %1923 = vst [vmem:[%s244] sm:$0xff] %v1921
        %1924 = vst [vmem:[%s244 + $0x10] sm:$0xff] %v1922
        %v1925 = vadd.f32 %v1919, %v254
        %v1926 = vadd.f32 %v1920, %v254
        %1927 = vst [vmem:[%s244 + $0x8] sm:$0xff] %v1925
        %1928 = vst [vmem:[%s244 + $0x18] sm:$0xff] %v1926
        %s1929 = sand.u32 %s119, 1
        %s1930 = scalar_lea.sflag [#allocation4], %s1929
        %s1931 = sand.u32 %s119, 1
        %s1932 = smul.addr %s1931, 32
        %s1933 = scalar_lea.vmem [#allocation8], %s1932
        // Predicated region
        $region49: #{tpu_custom_call.1} parent=35 // pred_check
          %p1934 = pneg %p129
        $region50: #{tpu_custom_call.1} parent=35 // pred_check_branch
          %1936 = sbr.rel (%p1934) target = $region52
        $region51: #{tpu_custom_call.1} parent=35 // pred_region
          %s1938 = ssub.s32 512, 512
          %1939 = vsyncadd %s1930, %s1938
          %s1940 = smul.addr %s22, 4
          %s1941 = smul.addr %s1940, 128
          %s1942 = scalar_lea.hbm %s4, %s1941
          %s1943 = sshll.u32 %s1933, 4
          %s1944 = int_to_ptr.vmem [resolvable:$true] %s1943
          %1949 = dma.vmem_to_hbm [thread:$0]  %s1944, 512, %s1942, %s1930, 256, 256, 16
        $region52: #{tpu_custom_call.1} parent=35 // pred_fallthru
          _
      $region36: #{tpu_custom_call.1} parent=5 // pred_fallthru
        _
      %p1950 = scmp.le.s32.totalorder 2, %s17
      // Predicated region
      $region53: #{tpu_custom_call.1} parent=5 // pred_check
        %p1951 = pneg %p1950
      $region54: #{tpu_custom_call.1} parent=5 // pred_check_branch
        %1953 = sbr.rel (%p1951) target = $region56
      $region55: #{tpu_custom_call.1} parent=5 // pred_region
        %s1954 = ssub.s32 %s17, 2
        // Predicated region
        $region57: #{tpu_custom_call.1} parent=55 // pred_check
          %p1955 = pneg %p135
        $region58: #{tpu_custom_call.1} parent=55 // pred_check_branch
          %1957 = sbr.rel (%p1955) target = $region60
        $region59: #{tpu_custom_call.1} parent=55 // pred_region
          %s1958 = sand.u32 %s120, 1
          %s1959 = scalar_lea.sflag [#allocation4], %s1958
          %s1960 = sand.u32 %s120, 1
          %s1961 = smul.addr %s1960, 32
          %s1962 = scalar_lea.vmem [#allocation8], %s1961
          %1963 = dma.done %s1959, 512
        $region60: #{tpu_custom_call.1} parent=55 // pred_fallthru
          _
      $region56: #{tpu_custom_call.1} parent=5 // pred_fallthru
        _
    $region6: #{tpu_custom_call.1} parent=1 // loop_footer
      %s21 = sadd.s32 1, %s17
    $region7: #{tpu_custom_call.1} parent=1 // loop_footer_branch
      %16 = sbr.rel target = $region3
    $region8: #{tpu_custom_call.1} parent=1 // loop_exit
      _
    %1964 = vsyncpa [#allocation3], 1
    %s1965 = scalar_lea.sflag [#allocation3], 1
    %1966 = vsyncpa %s1965, 1
    %1967 = vsyncpa [#allocation6], 1
    %1968 = vsyncpa [#allocation4], 1
    %s1969 = scalar_lea.sflag [#allocation4], 1
    %1970 = vsyncpa %s1969, 1

</llo_original>
